<compile_context>
chip_gen: v7x
topology: tpu7x:2x2x1
jax: 0.10.0
libtpu: 0.0.40
codegen_flags: <defaults>
</compile_context>

<pallas_src>
import functools

import numpy as np
import jax
import jax.numpy as jnp
from jax.experimental import pallas as pl
from jax.experimental.pallas import tpu as pltpu


def _relu(x):
    return jnp.maximum(x, 0.0)


def _sigmoid(x):
    # sigmoid(x) = 0.5 * (1 + tanh(x / 2)); tanh maps to the EUP slot and is stable.
    return 0.5 * jnp.tanh(0.5 * x) + 0.5


# ---------------------------------------------------------------------------
# Single fused kernel: encoder -> masked input projection -> LSTM -> head.
# Gate order matches PyTorch nn.LSTM: [input, forget, cell(g), output].
# ---------------------------------------------------------------------------
def _fused_forward_kernel(
        x_ref, mask_ref,
        w_enc1_ref, b_enc1_ref, w_enc2_ref, b_enc2_ref,
        w_ih_ref, w_hh_ref, b_lstm_ref,
        w_l0_ref, b_l0_ref, w_l1_ref, b_l1_ref, w_dec_ref, b_dec_ref,
        out_ref,
        xw_i_ref, xw_f_ref, xw_g_ref, xw_o_ref,
        *, seq_len, batch, hidden):
    f32 = jnp.float32

    # --- segment encoder: Linear -> ReLU -> Linear -> ReLU over all T*B rows.
    x = x_ref[...]                                            # (T*B, in_dim)
    h1 = _relu(jnp.dot(x, w_enc1_ref[...], preferred_element_type=f32)
               + b_enc1_ref[...])
    feat = _relu(jnp.dot(h1, w_enc2_ref[...], preferred_element_type=f32)
                 + b_enc2_ref[...])
    # pad_sequence semantics: padded timesteps carry zero encoded features.
    feat = feat * mask_ref[...]

    # --- input projection hoisted out of the recurrence (one big dot per gate).
    xw_refs = (xw_i_ref, xw_f_ref, xw_g_ref, xw_o_ref)
    for k in range(4):
        xw_refs[k][...] = jnp.dot(feat, w_ih_ref[k], preferred_element_type=f32)

    # Hoist loop-invariant per-gate weight / bias loads out of the recurrence.
    w_hh = [w_hh_ref[k] for k in range(4)]
    bias = [b_lstm_ref[k] for k in range(4)]

    def step(t, carry):
        h_prev, c_prev = carry
        r = pl.multiple_of(t * batch, 8)                      # aligned sublane slice
        x_i = xw_i_ref[pl.ds(r, batch), :]
        x_f = xw_f_ref[pl.ds(r, batch), :]
        x_g = xw_g_ref[pl.ds(r, batch), :]
        x_o = xw_o_ref[pl.ds(r, batch), :]
        i = _sigmoid(x_i + jnp.dot(h_prev, w_hh[0], preferred_element_type=f32) + bias[0])
        f = _sigmoid(x_f + jnp.dot(h_prev, w_hh[1], preferred_element_type=f32) + bias[1])
        g = jnp.tanh(x_g + jnp.dot(h_prev, w_hh[2], preferred_element_type=f32) + bias[2])
        o = _sigmoid(x_o + jnp.dot(h_prev, w_hh[3], preferred_element_type=f32) + bias[3])
        c_new = f * c_prev + i * g
        h_new = o * jnp.tanh(c_new)
        return h_new, c_new

    h0 = jnp.zeros((batch, hidden), f32)
    c0 = jnp.zeros((batch, hidden), f32)
    h_final, _ = jax.lax.fori_loop(0, seq_len, step, (h0, c0), unroll=True)

    # --- head: (Linear+ReLU)+res, (Linear+ReLU)+res, decoder.
    y = _relu(jnp.dot(h_final, w_l0_ref[...], preferred_element_type=f32)
              + b_l0_ref[...]) + h_final
    y = _relu(jnp.dot(y, w_l1_ref[...], preferred_element_type=f32)
              + b_l1_ref[...]) + y
    out_ref[...] = (jnp.dot(y, w_dec_ref[...], preferred_element_type=f32)
                    + b_dec_ref[...])


# ---------------------------------------------------------------------------
# Full forward (mirrors LSTMModuel.forward).
# ---------------------------------------------------------------------------
def lstm_model_forward(segment_sizes, features, p):
    segment_sizes = [int(s) for s in segment_sizes]   # static python ints, as in torch
    hidden = p["w_enc1"].shape[1]
    out_dim = p["w_dec"].shape[1]
    B = len(segment_sizes)
    Bp = max(8, ((B + 7) // 8) * 8)                    # pad batch to full sublane tile
    T = max(segment_sizes)

    # Static gather / mask tables implementing pad_sequence (time-major layout).
    # TODO(synk): this single-row gather and the per-gate weight splits are plain
    # XLA glue on a few KB; an in-kernel gather via scalar prefetch is possible but
    # not worthwhile at these sizes.
    offs = np.concatenate([[0], np.cumsum(segment_sizes)[:-1]]).astype(np.int32)
    row_idx = np.zeros((T * Bp,), np.int32)
    mask_np = np.zeros((T * Bp, hidden), np.float32)
    for b, s in enumerate(segment_sizes):
        for t in range(s):
            r = t * Bp + b
            row_idx[r] = offs[b] + t
            mask_np[r, :] = 1.0
    x_pad = jnp.take(features, jnp.asarray(row_idx), axis=0)   # (T*Bp, in_dim)
    mask = jnp.asarray(mask_np)

    # Pre-split LSTM weights per gate (i, f, g, o); static slices, done once.
    H = hidden
    w_ih_g = jnp.stack([p["w_ih"][:, k * H:(k + 1) * H] for k in range(4)])   # (4,H,H)
    w_hh_g = jnp.stack([p["w_hh"][:, k * H:(k + 1) * H] for k in range(4)])   # (4,H,H)
    # NOTE: p["b_lstm"] must already be (b_ih + b_hh) of the torch nn.LSTM.
    b_g = jnp.stack([p["b_lstm"][:, k * H:(k + 1) * H] for k in range(4)])    # (4,1,H)

    kernel = functools.partial(_fused_forward_kernel,
                               seq_len=T, batch=Bp, hidden=H)
    vmem = pl.BlockSpec(memory_space=pltpu.MemorySpace.VMEM)
    out = pl.pallas_call(
        kernel,
        out_shape=jax.ShapeDtypeStruct((Bp, out_dim), jnp.float32),
        in_specs=[vmem] * 15,
        out_specs=vmem,
        scratch_shapes=[pltpu.VMEM((T * Bp, H), jnp.float32)] * 4,  # per-gate x@W_ih
    )(x_pad, mask,
      p["w_enc1"], p["b_enc1"], p["w_enc2"], p["b_enc2"],
      w_ih_g, w_hh_g, b_g,
      p["w_l0"], p["b_l0"], p["w_l1"], p["b_l1"], p["w_dec"], p["b_dec"])

    return jnp.squeeze(out[:B])                         # matches .squeeze()


# ---------------------------------------------------------------------------
# Pure-JAX reference (mirror of the PyTorch forward) for a sanity check.
# ---------------------------------------------------------------------------
def _reference(segment_sizes, features, p):
    x = jnp.maximum(features @ p["w_enc1"] + p["b_enc1"], 0.0)
    x = jnp.maximum(x @ p["w_enc2"] + p["b_enc2"], 0.0)
    H = x.shape[1]
    T = max(segment_sizes)
    seqs, ct = [], 0
    for s in segment_sizes:
        seg = x[ct:ct + s]
        ct += s
        if s < T:
            seg = jnp.concatenate([seg, jnp.zeros((T - s, H), jnp.float32)], 0)
        seqs.append(seg)
    xp = jnp.stack(seqs, axis=1)             # (T, B, H), batch_first=False
    B = xp.shape[1]
    h = jnp.zeros((B, H), jnp.float32)
    c = jnp.zeros((B, H), jnp.float32)
    for t in range(T):                       # LSTM over padded seq (not packed)
        z = xp[t] @ p["w_ih"] + h @ p["w_hh"] + p["b_lstm"]
        i = jax.nn.sigmoid(z[:, 0 * H:1 * H])
        f = jax.nn.sigmoid(z[:, 1 * H:2 * H])
        g = jnp.tanh(z[:, 2 * H:3 * H])
        o = jax.nn.sigmoid(z[:, 3 * H:4 * H])
        c = f * c + i * g
        h = o * jnp.tanh(c)
    y = jnp.maximum(h @ p["w_l0"] + p["b_l0"], 0.0) + h
    y = jnp.maximum(y @ p["w_l1"] + p["b_l1"], 0.0) + y
    out = y @ p["w_dec"] + p["b_dec"]
    return jnp.squeeze(out)


if __name__ == "__main__":
    key = jax.random.PRNGKey(0)
    in_dim, hidden_dim, out_dim = 16, 32, 1
    segment_sizes = [3, 5, 2, 6]             # batch of 4 variable-length segments
    n_rows = sum(segment_sizes)              # 16 feature rows, seq len T = 6

    ks = jax.random.split(key, 14)
    s = 0.1
    params = {
        "w_enc1": jax.random.normal(ks[0], (in_dim, hidden_dim), jnp.float32) * s,
        "b_enc1": jax.random.normal(ks[1], (1, hidden_dim), jnp.float32) * s,
        "w_enc2": jax.random.normal(ks[2], (hidden_dim, hidden_dim), jnp.float32) * s,
        "b_enc2": jax.random.normal(ks[3], (1, hidden_dim), jnp.float32) * s,
        "w_ih": jax.random.normal(ks[4], (hidden_dim, 4 * hidden_dim), jnp.float32) * s,
        "w_hh": jax.random.normal(ks[5], (hidden_dim, 4 * hidden_dim), jnp.float32) * s,
        # represents (b_ih + b_hh) of torch nn.LSTM, pre-summed
        "b_lstm": jax.random.normal(ks[6], (1, 4 * hidden_dim), jnp.float32) * s,
        "w_l0": jax.random.normal(ks[7], (hidden_dim, hidden_dim), jnp.float32) * s,
        "b_l0": jax.random.normal(ks[8], (1, hidden_dim), jnp.float32) * s,
        "w_l1": jax.random.normal(ks[9], (hidden_dim, hidden_dim), jnp.float32) * s,
        "b_l1": jax.random.normal(ks[10], (1, hidden_dim), jnp.float32) * s,
        "w_dec": jax.random.normal(ks[11], (hidden_dim, out_dim), jnp.float32) * s,
        "b_dec": jax.random.normal(ks[12], (1, out_dim), jnp.float32) * s,
    }
    features = jax.random.normal(ks[13], (n_rows, in_dim), jnp.float32)

    out = lstm_model_forward(segment_sizes, features, params)
    out = jax.block_until_ready(out)

    ref = _reference(segment_sizes, features, params)
    assert out.shape == ref.shape, (out.shape, ref.shape)
    assert bool(jnp.all(jnp.isfinite(out))), out
    assert jnp.allclose(out, ref, rtol=1e-2, atol=1e-2), (out, ref)
    print("KERNEL_OK")
</pallas_src>

<mosaic_0001>
module attributes {stable_mosaic.version = 11 : i64} {
  func.func @_fused_forward_kernel(%arg0: memref<48x16xf32, #tpu.memory_space<vmem>>, %arg1: memref<48x32xf32, #tpu.memory_space<vmem>>, %arg2: memref<16x32xf32, #tpu.memory_space<vmem>>, %arg3: memref<1x32xf32, #tpu.memory_space<vmem>>, %arg4: memref<32x32xf32, #tpu.memory_space<vmem>>, %arg5: memref<1x32xf32, #tpu.memory_space<vmem>>, %arg6: memref<4x32x32xf32, #tpu.memory_space<vmem>>, %arg7: memref<4x32x32xf32, #tpu.memory_space<vmem>>, %arg8: memref<4x1x32xf32, #tpu.memory_space<vmem>>, %arg9: memref<32x32xf32, #tpu.memory_space<vmem>>, %arg10: memref<1x32xf32, #tpu.memory_space<vmem>>, %arg11: memref<32x32xf32, #tpu.memory_space<vmem>>, %arg12: memref<1x32xf32, #tpu.memory_space<vmem>>, %arg13: memref<32x1xf32, #tpu.memory_space<vmem>>, %arg14: memref<1x1xf32, #tpu.memory_space<vmem>>, %arg15: memref<8x1xf32, #tpu.memory_space<vmem>>, %arg16: memref<48x32xf32, #tpu.memory_space<vmem>>, %arg17: memref<48x32xf32, #tpu.memory_space<vmem>>, %arg18: memref<48x32xf32, #tpu.memory_space<vmem>>, %arg19: memref<48x32xf32, #tpu.memory_space<vmem>>) attributes {dimension_semantics = [], scalar_prefetch = 0 : i64, scratch_operands = 4 : i64, tpu.core_type = #tpu.core_type<tc>} {
    %c0 = arith.constant 0 : index
    %c0_0 = arith.constant 0 : index
    %0 = vector.load %arg0[%c0, %c0_0] : memref<48x16xf32, #tpu.memory_space<vmem>>, vector<48x16xf32>
    %c0_1 = arith.constant 0 : index
    %c0_2 = arith.constant 0 : index
    %1 = vector.load %arg2[%c0_1, %c0_2] : memref<16x32xf32, #tpu.memory_space<vmem>>, vector<16x32xf32>
    %cst = arith.constant dense<0.000000e+00> : vector<48x32xf32>
    %2 = tpu.matmul %0, %1, %cst {dimension_numbers = #tpu.dot_dimension_numbers<[1], [0], [0], [1], [0, 0, 1, 1], [], []>} : vector<48x16xf32>, vector<16x32xf32>, vector<48x32xf32> -> vector<48x32xf32>
    %c0_3 = arith.constant 0 : index
    %c0_4 = arith.constant 0 : index
    %3 = vector.load %arg3[%c0_3, %c0_4] : memref<1x32xf32, #tpu.memory_space<vmem>>, vector<1x32xf32>
    %4 = vector.broadcast %3 : vector<1x32xf32> to vector<48x32xf32>
    %5 = arith.addf %2, %4 : vector<48x32xf32>
    %cst_5 = arith.constant 0.000000e+00 : f32
    %6 = vector.broadcast %cst_5 : f32 to vector<48x32xf32>
    %7 = arith.maximumf %5, %6 : vector<48x32xf32>
    %c0_6 = arith.constant 0 : index
    %c0_7 = arith.constant 0 : index
    %8 = vector.load %arg4[%c0_6, %c0_7] : memref<32x32xf32, #tpu.memory_space<vmem>>, vector<32x32xf32>
    %cst_8 = arith.constant dense<0.000000e+00> : vector<48x32xf32>
    %9 = tpu.matmul %7, %8, %cst_8 {dimension_numbers = #tpu.dot_dimension_numbers<[1], [0], [0], [1], [0, 0, 1, 1], [], []>} : vector<48x32xf32>, vector<32x32xf32>, vector<48x32xf32> -> vector<48x32xf32>
    %c0_9 = arith.constant 0 : index
    %c0_10 = arith.constant 0 : index
    %10 = vector.load %arg5[%c0_9, %c0_10] : memref<1x32xf32, #tpu.memory_space<vmem>>, vector<1x32xf32>
    %11 = vector.broadcast %10 : vector<1x32xf32> to vector<48x32xf32>
    %12 = arith.addf %9, %11 : vector<48x32xf32>
    %cst_11 = arith.constant 0.000000e+00 : f32
    %13 = vector.broadcast %cst_11 : f32 to vector<48x32xf32>
    %14 = arith.maximumf %12, %13 : vector<48x32xf32>
    %c0_12 = arith.constant 0 : index
    %c0_13 = arith.constant 0 : index
    %15 = vector.load %arg1[%c0_12, %c0_13] : memref<48x32xf32, #tpu.memory_space<vmem>>, vector<48x32xf32>
    %16 = arith.mulf %14, %15 : vector<48x32xf32>
    %c0_14 = arith.constant 0 : index
    %c0_15 = arith.constant 0 : index
    %c0_16 = arith.constant 0 : index
    %17 = vector.load %arg6[%c0_14, %c0_15, %c0_16] : memref<4x32x32xf32, #tpu.memory_space<vmem>>, vector<1x32x32xf32>
    %18 = vector.shape_cast %17 : vector<1x32x32xf32> to vector<32x32xf32>
    %cst_17 = arith.constant dense<0.000000e+00> : vector<48x32xf32>
    %19 = tpu.matmul %16, %18, %cst_17 {dimension_numbers = #tpu.dot_dimension_numbers<[1], [0], [0], [1], [0, 0, 1, 1], [], []>} : vector<48x32xf32>, vector<32x32xf32>, vector<48x32xf32> -> vector<48x32xf32>
    %c0_18 = arith.constant 0 : index
    %c0_19 = arith.constant 0 : index
    %20 = vector.load %arg16[%c0_18, %c0_19] : memref<48x32xf32, #tpu.memory_space<vmem>>, vector<48x32xf32>
    tpu.vector_store %arg16[%c0_18, %c0_19], %19 {strides = array<i32>} : memref<48x32xf32, #tpu.memory_space<vmem>>, vector<48x32xf32>,
    %c1 = arith.constant 1 : index
    %c0_20 = arith.constant 0 : index
    %c0_21 = arith.constant 0 : index
    %21 = vector.load %arg6[%c1, %c0_20, %c0_21] : memref<4x32x32xf32, #tpu.memory_space<vmem>>, vector<1x32x32xf32>
    %22 = vector.shape_cast %21 : vector<1x32x32xf32> to vector<32x32xf32>
    %cst_22 = arith.constant dense<0.000000e+00> : vector<48x32xf32>
    %23 = tpu.matmul %16, %22, %cst_22 {dimension_numbers = #tpu.dot_dimension_numbers<[1], [0], [0], [1], [0, 0, 1, 1], [], []>} : vector<48x32xf32>, vector<32x32xf32>, vector<48x32xf32> -> vector<48x32xf32>
    %c0_23 = arith.constant 0 : index
    %c0_24 = arith.constant 0 : index
    %24 = vector.load %arg17[%c0_23, %c0_24] : memref<48x32xf32, #tpu.memory_space<vmem>>, vector<48x32xf32>
    tpu.vector_store %arg17[%c0_23, %c0_24], %23 {strides = array<i32>} : memref<48x32xf32, #tpu.memory_space<vmem>>, vector<48x32xf32>,
    %c2 = arith.constant 2 : index
    %c0_25 = arith.constant 0 : index
    %c0_26 = arith.constant 0 : index
    %25 = vector.load %arg6[%c2, %c0_25, %c0_26] : memref<4x32x32xf32, #tpu.memory_space<vmem>>, vector<1x32x32xf32>
    %26 = vector.shape_cast %25 : vector<1x32x32xf32> to vector<32x32xf32>
    %cst_27 = arith.constant dense<0.000000e+00> : vector<48x32xf32>
    %27 = tpu.matmul %16, %26, %cst_27 {dimension_numbers = #tpu.dot_dimension_numbers<[1], [0], [0], [1], [0, 0, 1, 1], [], []>} : vector<48x32xf32>, vector<32x32xf32>, vector<48x32xf32> -> vector<48x32xf32>
    %c0_28 = arith.constant 0 : index
    %c0_29 = arith.constant 0 : index
    %28 = vector.load %arg18[%c0_28, %c0_29] : memref<48x32xf32, #tpu.memory_space<vmem>>, vector<48x32xf32>
    tpu.vector_store %arg18[%c0_28, %c0_29], %27 {strides = array<i32>} : memref<48x32xf32, #tpu.memory_space<vmem>>, vector<48x32xf32>,
    %c3 = arith.constant 3 : index
    %c0_30 = arith.constant 0 : index
    %c0_31 = arith.constant 0 : index
    %29 = vector.load %arg6[%c3, %c0_30, %c0_31] : memref<4x32x32xf32, #tpu.memory_space<vmem>>, vector<1x32x32xf32>
    %30 = vector.shape_cast %29 : vector<1x32x32xf32> to vector<32x32xf32>
    %cst_32 = arith.constant dense<0.000000e+00> : vector<48x32xf32>
    %31 = tpu.matmul %16, %30, %cst_32 {dimension_numbers = #tpu.dot_dimension_numbers<[1], [0], [0], [1], [0, 0, 1, 1], [], []>} : vector<48x32xf32>, vector<32x32xf32>, vector<48x32xf32> -> vector<48x32xf32>
    %c0_33 = arith.constant 0 : index
    %c0_34 = arith.constant 0 : index
    %32 = vector.load %arg19[%c0_33, %c0_34] : memref<48x32xf32, #tpu.memory_space<vmem>>, vector<48x32xf32>
    tpu.vector_store %arg19[%c0_33, %c0_34], %31 {strides = array<i32>} : memref<48x32xf32, #tpu.memory_space<vmem>>, vector<48x32xf32>,
    %c0_35 = arith.constant 0 : index
    %c0_36 = arith.constant 0 : index
    %c0_37 = arith.constant 0 : index
    %33 = vector.load %arg7[%c0_35, %c0_36, %c0_37] : memref<4x32x32xf32, #tpu.memory_space<vmem>>, vector<1x32x32xf32>
    %34 = vector.shape_cast %33 : vector<1x32x32xf32> to vector<32x32xf32>
    %c1_38 = arith.constant 1 : index
    %c0_39 = arith.constant 0 : index
    %c0_40 = arith.constant 0 : index
    %35 = vector.load %arg7[%c1_38, %c0_39, %c0_40] : memref<4x32x32xf32, #tpu.memory_space<vmem>>, vector<1x32x32xf32>
    %36 = vector.shape_cast %35 : vector<1x32x32xf32> to vector<32x32xf32>
    %c2_41 = arith.constant 2 : index
    %c0_42 = arith.constant 0 : index
    %c0_43 = arith.constant 0 : index
    %37 = vector.load %arg7[%c2_41, %c0_42, %c0_43] : memref<4x32x32xf32, #tpu.memory_space<vmem>>, vector<1x32x32xf32>
    %38 = vector.shape_cast %37 : vector<1x32x32xf32> to vector<32x32xf32>
    %c3_44 = arith.constant 3 : index
    %c0_45 = arith.constant 0 : index
    %c0_46 = arith.constant 0 : index
    %39 = vector.load %arg7[%c3_44, %c0_45, %c0_46] : memref<4x32x32xf32, #tpu.memory_space<vmem>>, vector<1x32x32xf32>
    %40 = vector.shape_cast %39 : vector<1x32x32xf32> to vector<32x32xf32>
    %c0_47 = arith.constant 0 : index
    %c0_48 = arith.constant 0 : index
    %c0_49 = arith.constant 0 : index
    %41 = vector.load %arg8[%c0_47, %c0_48, %c0_49] : memref<4x1x32xf32, #tpu.memory_space<vmem>>, vector<1x1x32xf32>
    %42 = vector.shape_cast %41 : vector<1x1x32xf32> to vector<1x32xf32>
    %c1_50 = arith.constant 1 : index
    %c0_51 = arith.constant 0 : index
    %c0_52 = arith.constant 0 : index
    %43 = vector.load %arg8[%c1_50, %c0_51, %c0_52] : memref<4x1x32xf32, #tpu.memory_space<vmem>>, vector<1x1x32xf32>
    %44 = vector.shape_cast %43 : vector<1x1x32xf32> to vector<1x32xf32>
    %c2_53 = arith.constant 2 : index
    %c0_54 = arith.constant 0 : index
    %c0_55 = arith.constant 0 : index
    %45 = vector.load %arg8[%c2_53, %c0_54, %c0_55] : memref<4x1x32xf32, #tpu.memory_space<vmem>>, vector<1x1x32xf32>
    %46 = vector.shape_cast %45 : vector<1x1x32xf32> to vector<1x32xf32>
    %c3_56 = arith.constant 3 : index
    %c0_57 = arith.constant 0 : index
    %c0_58 = arith.constant 0 : index
    %47 = vector.load %arg8[%c3_56, %c0_57, %c0_58] : memref<4x1x32xf32, #tpu.memory_space<vmem>>, vector<1x1x32xf32>
    %48 = vector.shape_cast %47 : vector<1x1x32xf32> to vector<1x32xf32>
    %cst_59 = arith.constant 0.000000e+00 : f32
    %49 = vector.broadcast %cst_59 : f32 to vector<8x32xf32>
    %cst_60 = arith.constant 0.000000e+00 : f32
    %50 = vector.broadcast %cst_60 : f32 to vector<8x32xf32>
    %c0_i32 = arith.constant 0 : i32
    %c8_i32 = arith.constant 8 : i32
    %51 = arith.muli %c0_i32, %c8_i32 : i32
    %52 = tpu.assume_multiple %51, 8 : i32
    %53 = arith.index_cast %52 : i32 to index
    %c0_61 = arith.constant 0 : index
    %54 = vector.load %arg16[%53, %c0_61] : memref<48x32xf32, #tpu.memory_space<vmem>>, vector<8x32xf32>
    %55 = arith.index_cast %52 : i32 to index
    %c0_62 = arith.constant 0 : index
    %56 = vector.load %arg17[%55, %c0_62] : memref<48x32xf32, #tpu.memory_space<vmem>>, vector<8x32xf32>
    %57 = arith.index_cast %52 : i32 to index
    %c0_63 = arith.constant 0 : index
    %58 = vector.load %arg18[%57, %c0_63] : memref<48x32xf32, #tpu.memory_space<vmem>>, vector<8x32xf32>
    %59 = arith.index_cast %52 : i32 to index
    %c0_64 = arith.constant 0 : index
    %60 = vector.load %arg19[%59, %c0_64] : memref<48x32xf32, #tpu.memory_space<vmem>>, vector<8x32xf32>
    %cst_65 = arith.constant dense<0.000000e+00> : vector<8x32xf32>
    %61 = tpu.matmul %49, %34, %cst_65 {dimension_numbers = #tpu.dot_dimension_numbers<[1], [0], [0], [1], [0, 0, 1, 1], [], []>} : vector<8x32xf32>, vector<32x32xf32>, vector<8x32xf32> -> vector<8x32xf32>
    %62 = arith.addf %54, %61 : vector<8x32xf32>
    %63 = vector.broadcast %42 : vector<1x32xf32> to vector<8x32xf32>
    %64 = arith.addf %62, %63 : vector<8x32xf32>
    %cst_66 = arith.constant 5.000000e-01 : f32
    %65 = vector.broadcast %cst_66 : f32 to vector<8x32xf32>
    %66 = arith.mulf %65, %64 : vector<8x32xf32>
    %67 = math.tanh %66 : vector<8x32xf32>
    %cst_67 = arith.constant 5.000000e-01 : f32
    %68 = vector.broadcast %cst_67 : f32 to vector<8x32xf32>
    %69 = arith.mulf %68, %67 : vector<8x32xf32>
    %cst_68 = arith.constant 5.000000e-01 : f32
    %70 = vector.broadcast %cst_68 : f32 to vector<8x32xf32>
    %71 = arith.addf %69, %70 : vector<8x32xf32>
    %cst_69 = arith.constant dense<0.000000e+00> : vector<8x32xf32>
    %72 = tpu.matmul %49, %36, %cst_69 {dimension_numbers = #tpu.dot_dimension_numbers<[1], [0], [0], [1], [0, 0, 1, 1], [], []>} : vector<8x32xf32>, vector<32x32xf32>, vector<8x32xf32> -> vector<8x32xf32>
    %73 = arith.addf %56, %72 : vector<8x32xf32>
    %74 = vector.broadcast %44 : vector<1x32xf32> to vector<8x32xf32>
    %75 = arith.addf %73, %74 : vector<8x32xf32>
    %cst_70 = arith.constant 5.000000e-01 : f32
    %76 = vector.broadcast %cst_70 : f32 to vector<8x32xf32>
    %77 = arith.mulf %76, %75 : vector<8x32xf32>
    %78 = math.tanh %77 : vector<8x32xf32>
    %cst_71 = arith.constant 5.000000e-01 : f32
    %79 = vector.broadcast %cst_71 : f32 to vector<8x32xf32>
    %80 = arith.mulf %79, %78 : vector<8x32xf32>
    %cst_72 = arith.constant 5.000000e-01 : f32
    %81 = vector.broadcast %cst_72 : f32 to vector<8x32xf32>
    %82 = arith.addf %80, %81 : vector<8x32xf32>
    %cst_73 = arith.constant dense<0.000000e+00> : vector<8x32xf32>
    %83 = tpu.matmul %49, %38, %cst_73 {dimension_numbers = #tpu.dot_dimension_numbers<[1], [0], [0], [1], [0, 0, 1, 1], [], []>} : vector<8x32xf32>, vector<32x32xf32>, vector<8x32xf32> -> vector<8x32xf32>
    %84 = arith.addf %58, %83 : vector<8x32xf32>
    %85 = vector.broadcast %46 : vector<1x32xf32> to vector<8x32xf32>
    %86 = arith.addf %84, %85 : vector<8x32xf32>
    %87 = math.tanh %86 : vector<8x32xf32>
    %cst_74 = arith.constant dense<0.000000e+00> : vector<8x32xf32>
    %88 = tpu.matmul %49, %40, %cst_74 {dimension_numbers = #tpu.dot_dimension_numbers<[1], [0], [0], [1], [0, 0, 1, 1], [], []>} : vector<8x32xf32>, vector<32x32xf32>, vector<8x32xf32> -> vector<8x32xf32>
    %89 = arith.addf %60, %88 : vector<8x32xf32>
    %90 = vector.broadcast %48 : vector<1x32xf32> to vector<8x32xf32>
    %91 = arith.addf %89, %90 : vector<8x32xf32>
    %cst_75 = arith.constant 5.000000e-01 : f32
    %92 = vector.broadcast %cst_75 : f32 to vector<8x32xf32>
    %93 = arith.mulf %92, %91 : vector<8x32xf32>
    %94 = math.tanh %93 : vector<8x32xf32>
    %cst_76 = arith.constant 5.000000e-01 : f32
    %95 = vector.broadcast %cst_76 : f32 to vector<8x32xf32>
    %96 = arith.mulf %95, %94 : vector<8x32xf32>
    %cst_77 = arith.constant 5.000000e-01 : f32
    %97 = vector.broadcast %cst_77 : f32 to vector<8x32xf32>
    %98 = arith.addf %96, %97 : vector<8x32xf32>
    %99 = arith.mulf %82, %50 : vector<8x32xf32>
    %100 = arith.mulf %71, %87 : vector<8x32xf32>
    %101 = arith.addf %99, %100 : vector<8x32xf32>
    %102 = math.tanh %101 : vector<8x32xf32>
    %103 = arith.mulf %98, %102 : vector<8x32xf32>
    %c1_i32 = arith.constant 1 : i32
    %c8_i32_78 = arith.constant 8 : i32
    %104 = arith.muli %c1_i32, %c8_i32_78 : i32
    %105 = tpu.assume_multiple %104, 8 : i32
    %106 = arith.index_cast %105 : i32 to index
    %c0_79 = arith.constant 0 : index
    %107 = vector.load %arg16[%106, %c0_79] : memref<48x32xf32, #tpu.memory_space<vmem>>, vector<8x32xf32>
    %108 = arith.index_cast %105 : i32 to index
    %c0_80 = arith.constant 0 : index
    %109 = vector.load %arg17[%108, %c0_80] : memref<48x32xf32, #tpu.memory_space<vmem>>, vector<8x32xf32>
    %110 = arith.index_cast %105 : i32 to index
    %c0_81 = arith.constant 0 : index
    %111 = vector.load %arg18[%110, %c0_81] : memref<48x32xf32, #tpu.memory_space<vmem>>, vector<8x32xf32>
    %112 = arith.index_cast %105 : i32 to index
    %c0_82 = arith.constant 0 : index
    %113 = vector.load %arg19[%112, %c0_82] : memref<48x32xf32, #tpu.memory_space<vmem>>, vector<8x32xf32>
    %cst_83 = arith.constant dense<0.000000e+00> : vector<8x32xf32>
    %114 = tpu.matmul %103, %34, %cst_83 {dimension_numbers = #tpu.dot_dimension_numbers<[1], [0], [0], [1], [0, 0, 1, 1], [], []>} : vector<8x32xf32>, vector<32x32xf32>, vector<8x32xf32> -> vector<8x32xf32>
    %115 = arith.addf %107, %114 : vector<8x32xf32>
    %116 = vector.broadcast %42 : vector<1x32xf32> to vector<8x32xf32>
    %117 = arith.addf %115, %116 : vector<8x32xf32>
    %cst_84 = arith.constant 5.000000e-01 : f32
    %118 = vector.broadcast %cst_84 : f32 to vector<8x32xf32>
    %119 = arith.mulf %118, %117 : vector<8x32xf32>
    %120 = math.tanh %119 : vector<8x32xf32>
    %cst_85 = arith.constant 5.000000e-01 : f32
    %121 = vector.broadcast %cst_85 : f32 to vector<8x32xf32>
    %122 = arith.mulf %121, %120 : vector<8x32xf32>
    %cst_86 = arith.constant 5.000000e-01 : f32
    %123 = vector.broadcast %cst_86 : f32 to vector<8x32xf32>
    %124 = arith.addf %122, %123 : vector<8x32xf32>
    %cst_87 = arith.constant dense<0.000000e+00> : vector<8x32xf32>
    %125 = tpu.matmul %103, %36, %cst_87 {dimension_numbers = #tpu.dot_dimension_numbers<[1], [0], [0], [1], [0, 0, 1, 1], [], []>} : vector<8x32xf32>, vector<32x32xf32>, vector<8x32xf32> -> vector<8x32xf32>
    %126 = arith.addf %109, %125 : vector<8x32xf32>
    %127 = vector.broadcast %44 : vector<1x32xf32> to vector<8x32xf32>
    %128 = arith.addf %126, %127 : vector<8x32xf32>
    %cst_88 = arith.constant 5.000000e-01 : f32
    %129 = vector.broadcast %cst_88 : f32 to vector<8x32xf32>
    %130 = arith.mulf %129, %128 : vector<8x32xf32>
    %131 = math.tanh %130 : vector<8x32xf32>
    %cst_89 = arith.constant 5.000000e-01 : f32
    %132 = vector.broadcast %cst_89 : f32 to vector<8x32xf32>
    %133 = arith.mulf %132, %131 : vector<8x32xf32>
    %cst_90 = arith.constant 5.000000e-01 : f32
    %134 = vector.broadcast %cst_90 : f32 to vector<8x32xf32>
    %135 = arith.addf %133, %134 : vector<8x32xf32>
    %cst_91 = arith.constant dense<0.000000e+00> : vector<8x32xf32>
    %136 = tpu.matmul %103, %38, %cst_91 {dimension_numbers = #tpu.dot_dimension_numbers<[1], [0], [0], [1], [0, 0, 1, 1], [], []>} : vector<8x32xf32>, vector<32x32xf32>, vector<8x32xf32> -> vector<8x32xf32>
    %137 = arith.addf %111, %136 : vector<8x32xf32>
    %138 = vector.broadcast %46 : vector<1x32xf32> to vector<8x32xf32>
    %139 = arith.addf %137, %138 : vector<8x32xf32>
    %140 = math.tanh %139 : vector<8x32xf32>
    %cst_92 = arith.constant dense<0.000000e+00> : vector<8x32xf32>
    %141 = tpu.matmul %103, %40, %cst_92 {dimension_numbers = #tpu.dot_dimension_numbers<[1], [0], [0], [1], [0, 0, 1, 1], [], []>} : vector<8x32xf32>, vector<32x32xf32>, vector<8x32xf32> -> vector<8x32xf32>
    %142 = arith.addf %113, %141 : vector<8x32xf32>
    %143 = vector.broadcast %48 : vector<1x32xf32> to vector<8x32xf32>
    %144 = arith.addf %142, %143 : vector<8x32xf32>
    %cst_93 = arith.constant 5.000000e-01 : f32
    %145 = vector.broadcast %cst_93 : f32 to vector<8x32xf32>
    %146 = arith.mulf %145, %144 : vector<8x32xf32>
    %147 = math.tanh %146 : vector<8x32xf32>
    %cst_94 = arith.constant 5.000000e-01 : f32
    %148 = vector.broadcast %cst_94 : f32 to vector<8x32xf32>
    %149 = arith.mulf %148, %147 : vector<8x32xf32>
    %cst_95 = arith.constant 5.000000e-01 : f32
    %150 = vector.broadcast %cst_95 : f32 to vector<8x32xf32>
    %151 = arith.addf %149, %150 : vector<8x32xf32>
    %152 = arith.mulf %135, %101 : vector<8x32xf32>
    %153 = arith.mulf %124, %140 : vector<8x32xf32>
    %154 = arith.addf %152, %153 : vector<8x32xf32>
    %155 = math.tanh %154 : vector<8x32xf32>
    %156 = arith.mulf %151, %155 : vector<8x32xf32>
    %c2_i32 = arith.constant 2 : i32
    %c8_i32_96 = arith.constant 8 : i32
    %157 = arith.muli %c2_i32, %c8_i32_96 : i32
    %158 = tpu.assume_multiple %157, 8 : i32
    %159 = arith.index_cast %158 : i32 to index
    %c0_97 = arith.constant 0 : index
    %160 = vector.load %arg16[%159, %c0_97] : memref<48x32xf32, #tpu.memory_space<vmem>>, vector<8x32xf32>
    %161 = arith.index_cast %158 : i32 to index
    %c0_98 = arith.constant 0 : index
    %162 = vector.load %arg17[%161, %c0_98] : memref<48x32xf32, #tpu.memory_space<vmem>>, vector<8x32xf32>
    %163 = arith.index_cast %158 : i32 to index
    %c0_99 = arith.constant 0 : index
    %164 = vector.load %arg18[%163, %c0_99] : memref<48x32xf32, #tpu.memory_space<vmem>>, vector<8x32xf32>
    %165 = arith.index_cast %158 : i32 to index
    %c0_100 = arith.constant 0 : index
    %166 = vector.load %arg19[%165, %c0_100] : memref<48x32xf32, #tpu.memory_space<vmem>>, vector<8x32xf32>
    %cst_101 = arith.constant dense<0.000000e+00> : vector<8x32xf32>
    %167 = tpu.matmul %156, %34, %cst_101 {dimension_numbers = #tpu.dot_dimension_numbers<[1], [0], [0], [1], [0, 0, 1, 1], [], []>} : vector<8x32xf32>, vector<32x32xf32>, vector<8x32xf32> -> vector<8x32xf32>
    %168 = arith.addf %160, %167 : vector<8x32xf32>
    %169 = vector.broadcast %42 : vector<1x32xf32> to vector<8x32xf32>
    %170 = arith.addf %168, %169 : vector<8x32xf32>
    %cst_102 = arith.constant 5.000000e-01 : f32
    %171 = vector.broadcast %cst_102 : f32 to vector<8x32xf32>
    %172 = arith.mulf %171, %170 : vector<8x32xf32>
    %173 = math.tanh %172 : vector<8x32xf32>
    %cst_103 = arith.constant 5.000000e-01 : f32
    %174 = vector.broadcast %cst_103 : f32 to vector<8x32xf32>
    %175 = arith.mulf %174, %173 : vector<8x32xf32>
    %cst_104 = arith.constant 5.000000e-01 : f32
    %176 = vector.broadcast %cst_104 : f32 to vector<8x32xf32>
    %177 = arith.addf %175, %176 : vector<8x32xf32>
    %cst_105 = arith.constant dense<0.000000e+00> : vector<8x32xf32>
    %178 = tpu.matmul %156, %36, %cst_105 {dimension_numbers = #tpu.dot_dimension_numbers<[1], [0], [0], [1], [0, 0, 1, 1], [], []>} : vector<8x32xf32>, vector<32x32xf32>, vector<8x32xf32> -> vector<8x32xf32>
    %179 = arith.addf %162, %178 : vector<8x32xf32>
    %180 = vector.broadcast %44 : vector<1x32xf32> to vector<8x32xf32>
    %181 = arith.addf %179, %180 : vector<8x32xf32>
    %cst_106 = arith.constant 5.000000e-01 : f32
    %182 = vector.broadcast %cst_106 : f32 to vector<8x32xf32>
    %183 = arith.mulf %182, %181 : vector<8x32xf32>
    %184 = math.tanh %183 : vector<8x32xf32>
    %cst_107 = arith.constant 5.000000e-01 : f32
    %185 = vector.broadcast %cst_107 : f32 to vector<8x32xf32>
    %186 = arith.mulf %185, %184 : vector<8x32xf32>
    %cst_108 = arith.constant 5.000000e-01 : f32
    %187 = vector.broadcast %cst_108 : f32 to vector<8x32xf32>
    %188 = arith.addf %186, %187 : vector<8x32xf32>
    %cst_109 = arith.constant dense<0.000000e+00> : vector<8x32xf32>
    %189 = tpu.matmul %156, %38, %cst_109 {dimension_numbers = #tpu.dot_dimension_numbers<[1], [0], [0], [1], [0, 0, 1, 1], [], []>} : vector<8x32xf32>, vector<32x32xf32>, vector<8x32xf32> -> vector<8x32xf32>
    %190 = arith.addf %164, %189 : vector<8x32xf32>
    %191 = vector.broadcast %46 : vector<1x32xf32> to vector<8x32xf32>
    %192 = arith.addf %190, %191 : vector<8x32xf32>
    %193 = math.tanh %192 : vector<8x32xf32>
    %cst_110 = arith.constant dense<0.000000e+00> : vector<8x32xf32>
    %194 = tpu.matmul %156, %40, %cst_110 {dimension_numbers = #tpu.dot_dimension_numbers<[1], [0], [0], [1], [0, 0, 1, 1], [], []>} : vector<8x32xf32>, vector<32x32xf32>, vector<8x32xf32> -> vector<8x32xf32>
    %195 = arith.addf %166, %194 : vector<8x32xf32>
    %196 = vector.broadcast %48 : vector<1x32xf32> to vector<8x32xf32>
    %197 = arith.addf %195, %196 : vector<8x32xf32>
    %cst_111 = arith.constant 5.000000e-01 : f32
    %198 = vector.broadcast %cst_111 : f32 to vector<8x32xf32>
    %199 = arith.mulf %198, %197 : vector<8x32xf32>
    %200 = math.tanh %199 : vector<8x32xf32>
    %cst_112 = arith.constant 5.000000e-01 : f32
    %201 = vector.broadcast %cst_112 : f32 to vector<8x32xf32>
    %202 = arith.mulf %201, %200 : vector<8x32xf32>
    %cst_113 = arith.constant 5.000000e-01 : f32
    %203 = vector.broadcast %cst_113 : f32 to vector<8x32xf32>
    %204 = arith.addf %202, %203 : vector<8x32xf32>
    %205 = arith.mulf %188, %154 : vector<8x32xf32>
    %206 = arith.mulf %177, %193 : vector<8x32xf32>
    %207 = arith.addf %205, %206 : vector<8x32xf32>
    %208 = math.tanh %207 : vector<8x32xf32>
    %209 = arith.mulf %204, %208 : vector<8x32xf32>
    %c3_i32 = arith.constant 3 : i32
    %c8_i32_114 = arith.constant 8 : i32
    %210 = arith.muli %c3_i32, %c8_i32_114 : i32
    %211 = tpu.assume_multiple %210, 8 : i32
    %212 = arith.index_cast %211 : i32 to index
    %c0_115 = arith.constant 0 : index
    %213 = vector.load %arg16[%212, %c0_115] : memref<48x32xf32, #tpu.memory_space<vmem>>, vector<8x32xf32>
    %214 = arith.index_cast %211 : i32 to index
    %c0_116 = arith.constant 0 : index
    %215 = vector.load %arg17[%214, %c0_116] : memref<48x32xf32, #tpu.memory_space<vmem>>, vector<8x32xf32>
    %216 = arith.index_cast %211 : i32 to index
    %c0_117 = arith.constant 0 : index
    %217 = vector.load %arg18[%216, %c0_117] : memref<48x32xf32, #tpu.memory_space<vmem>>, vector<8x32xf32>
    %218 = arith.index_cast %211 : i32 to index
    %c0_118 = arith.constant 0 : index
    %219 = vector.load %arg19[%218, %c0_118] : memref<48x32xf32, #tpu.memory_space<vmem>>, vector<8x32xf32>
    %cst_119 = arith.constant dense<0.000000e+00> : vector<8x32xf32>
    %220 = tpu.matmul %209, %34, %cst_119 {dimension_numbers = #tpu.dot_dimension_numbers<[1], [0], [0], [1], [0, 0, 1, 1], [], []>} : vector<8x32xf32>, vector<32x32xf32>, vector<8x32xf32> -> vector<8x32xf32>
    %221 = arith.addf %213, %220 : vector<8x32xf32>
    %222 = vector.broadcast %42 : vector<1x32xf32> to vector<8x32xf32>
    %223 = arith.addf %221, %222 : vector<8x32xf32>
    %cst_120 = arith.constant 5.000000e-01 : f32
    %224 = vector.broadcast %cst_120 : f32 to vector<8x32xf32>
    %225 = arith.mulf %224, %223 : vector<8x32xf32>
    %226 = math.tanh %225 : vector<8x32xf32>
    %cst_121 = arith.constant 5.000000e-01 : f32
    %227 = vector.broadcast %cst_121 : f32 to vector<8x32xf32>
    %228 = arith.mulf %227, %226 : vector<8x32xf32>
    %cst_122 = arith.constant 5.000000e-01 : f32
    %229 = vector.broadcast %cst_122 : f32 to vector<8x32xf32>
    %230 = arith.addf %228, %229 : vector<8x32xf32>
    %cst_123 = arith.constant dense<0.000000e+00> : vector<8x32xf32>
    %231 = tpu.matmul %209, %36, %cst_123 {dimension_numbers = #tpu.dot_dimension_numbers<[1], [0], [0], [1], [0, 0, 1, 1], [], []>} : vector<8x32xf32>, vector<32x32xf32>, vector<8x32xf32> -> vector<8x32xf32>
    %232 = arith.addf %215, %231 : vector<8x32xf32>
    %233 = vector.broadcast %44 : vector<1x32xf32> to vector<8x32xf32>
    %234 = arith.addf %232, %233 : vector<8x32xf32>
    %cst_124 = arith.constant 5.000000e-01 : f32
    %235 = vector.broadcast %cst_124 : f32 to vector<8x32xf32>
    %236 = arith.mulf %235, %234 : vector<8x32xf32>
    %237 = math.tanh %236 : vector<8x32xf32>
    %cst_125 = arith.constant 5.000000e-01 : f32
    %238 = vector.broadcast %cst_125 : f32 to vector<8x32xf32>
    %239 = arith.mulf %238, %237 : vector<8x32xf32>
    %cst_126 = arith.constant 5.000000e-01 : f32
    %240 = vector.broadcast %cst_126 : f32 to vector<8x32xf32>
    %241 = arith.addf %239, %240 : vector<8x32xf32>
    %cst_127 = arith.constant dense<0.000000e+00> : vector<8x32xf32>
    %242 = tpu.matmul %209, %38, %cst_127 {dimension_numbers = #tpu.dot_dimension_numbers<[1], [0], [0], [1], [0, 0, 1, 1], [], []>} : vector<8x32xf32>, vector<32x32xf32>, vector<8x32xf32> -> vector<8x32xf32>
    %243 = arith.addf %217, %242 : vector<8x32xf32>
    %244 = vector.broadcast %46 : vector<1x32xf32> to vector<8x32xf32>
    %245 = arith.addf %243, %244 : vector<8x32xf32>
    %246 = math.tanh %245 : vector<8x32xf32>
    %cst_128 = arith.constant dense<0.000000e+00> : vector<8x32xf32>
    %247 = tpu.matmul %209, %40, %cst_128 {dimension_numbers = #tpu.dot_dimension_numbers<[1], [0], [0], [1], [0, 0, 1, 1], [], []>} : vector<8x32xf32>, vector<32x32xf32>, vector<8x32xf32> -> vector<8x32xf32>
    %248 = arith.addf %219, %247 : vector<8x32xf32>
    %249 = vector.broadcast %48 : vector<1x32xf32> to vector<8x32xf32>
    %250 = arith.addf %248, %249 : vector<8x32xf32>
    %cst_129 = arith.constant 5.000000e-01 : f32
    %251 = vector.broadcast %cst_129 : f32 to vector<8x32xf32>
    %252 = arith.mulf %251, %250 : vector<8x32xf32>
    %253 = math.tanh %252 : vector<8x32xf32>
    %cst_130 = arith.constant 5.000000e-01 : f32
    %254 = vector.broadcast %cst_130 : f32 to vector<8x32xf32>
    %255 = arith.mulf %254, %253 : vector<8x32xf32>
    %cst_131 = arith.constant 5.000000e-01 : f32
    %256 = vector.broadcast %cst_131 : f32 to vector<8x32xf32>
    %257 = arith.addf %255, %256 : vector<8x32xf32>
    %258 = arith.mulf %241, %207 : vector<8x32xf32>
    %259 = arith.mulf %230, %246 : vector<8x32xf32>
    %260 = arith.addf %258, %259 : vector<8x32xf32>
    %261 = math.tanh %260 : vector<8x32xf32>
    %262 = arith.mulf %257, %261 : vector<8x32xf32>
    %c4_i32 = arith.constant 4 : i32
    %c8_i32_132 = arith.constant 8 : i32
    %263 = arith.muli %c4_i32, %c8_i32_132 : i32
    %264 = tpu.assume_multiple %263, 8 : i32
    %265 = arith.index_cast %264 : i32 to index
    %c0_133 = arith.constant 0 : index
    %266 = vector.load %arg16[%265, %c0_133] : memref<48x32xf32, #tpu.memory_space<vmem>>, vector<8x32xf32>
    %267 = arith.index_cast %264 : i32 to index
    %c0_134 = arith.constant 0 : index
    %268 = vector.load %arg17[%267, %c0_134] : memref<48x32xf32, #tpu.memory_space<vmem>>, vector<8x32xf32>
    %269 = arith.index_cast %264 : i32 to index
    %c0_135 = arith.constant 0 : index
    %270 = vector.load %arg18[%269, %c0_135] : memref<48x32xf32, #tpu.memory_space<vmem>>, vector<8x32xf32>
    %271 = arith.index_cast %264 : i32 to index
    %c0_136 = arith.constant 0 : index
    %272 = vector.load %arg19[%271, %c0_136] : memref<48x32xf32, #tpu.memory_space<vmem>>, vector<8x32xf32>
    %cst_137 = arith.constant dense<0.000000e+00> : vector<8x32xf32>
    %273 = tpu.matmul %262, %34, %cst_137 {dimension_numbers = #tpu.dot_dimension_numbers<[1], [0], [0], [1], [0, 0, 1, 1], [], []>} : vector<8x32xf32>, vector<32x32xf32>, vector<8x32xf32> -> vector<8x32xf32>
    %274 = arith.addf %266, %273 : vector<8x32xf32>
    %275 = vector.broadcast %42 : vector<1x32xf32> to vector<8x32xf32>
    %276 = arith.addf %274, %275 : vector<8x32xf32>
    %cst_138 = arith.constant 5.000000e-01 : f32
    %277 = vector.broadcast %cst_138 : f32 to vector<8x32xf32>
    %278 = arith.mulf %277, %276 : vector<8x32xf32>
    %279 = math.tanh %278 : vector<8x32xf32>
    %cst_139 = arith.constant 5.000000e-01 : f32
    %280 = vector.broadcast %cst_139 : f32 to vector<8x32xf32>
    %281 = arith.mulf %280, %279 : vector<8x32xf32>
    %cst_140 = arith.constant 5.000000e-01 : f32
    %282 = vector.broadcast %cst_140 : f32 to vector<8x32xf32>
    %283 = arith.addf %281, %282 : vector<8x32xf32>
    %cst_141 = arith.constant dense<0.000000e+00> : vector<8x32xf32>
    %284 = tpu.matmul %262, %36, %cst_141 {dimension_numbers = #tpu.dot_dimension_numbers<[1], [0], [0], [1], [0, 0, 1, 1], [], []>} : vector<8x32xf32>, vector<32x32xf32>, vector<8x32xf32> -> vector<8x32xf32>
    %285 = arith.addf %268, %284 : vector<8x32xf32>
    %286 = vector.broadcast %44 : vector<1x32xf32> to vector<8x32xf32>
    %287 = arith.addf %285, %286 : vector<8x32xf32>
    %cst_142 = arith.constant 5.000000e-01 : f32
    %288 = vector.broadcast %cst_142 : f32 to vector<8x32xf32>
    %289 = arith.mulf %288, %287 : vector<8x32xf32>
    %290 = math.tanh %289 : vector<8x32xf32>
    %cst_143 = arith.constant 5.000000e-01 : f32
    %291 = vector.broadcast %cst_143 : f32 to vector<8x32xf32>
    %292 = arith.mulf %291, %290 : vector<8x32xf32>
    %cst_144 = arith.constant 5.000000e-01 : f32
    %293 = vector.broadcast %cst_144 : f32 to vector<8x32xf32>
    %294 = arith.addf %292, %293 : vector<8x32xf32>
    %cst_145 = arith.constant dense<0.000000e+00> : vector<8x32xf32>
    %295 = tpu.matmul %262, %38, %cst_145 {dimension_numbers = #tpu.dot_dimension_numbers<[1], [0], [0], [1], [0, 0, 1, 1], [], []>} : vector<8x32xf32>, vector<32x32xf32>, vector<8x32xf32> -> vector<8x32xf32>
    %296 = arith.addf %270, %295 : vector<8x32xf32>
    %297 = vector.broadcast %46 : vector<1x32xf32> to vector<8x32xf32>
    %298 = arith.addf %296, %297 : vector<8x32xf32>
    %299 = math.tanh %298 : vector<8x32xf32>
    %cst_146 = arith.constant dense<0.000000e+00> : vector<8x32xf32>
    %300 = tpu.matmul %262, %40, %cst_146 {dimension_numbers = #tpu.dot_dimension_numbers<[1], [0], [0], [1], [0, 0, 1, 1], [], []>} : vector<8x32xf32>, vector<32x32xf32>, vector<8x32xf32> -> vector<8x32xf32>
    %301 = arith.addf %272, %300 : vector<8x32xf32>
    %302 = vector.broadcast %48 : vector<1x32xf32> to vector<8x32xf32>
    %303 = arith.addf %301, %302 : vector<8x32xf32>
    %cst_147 = arith.constant 5.000000e-01 : f32
    %304 = vector.broadcast %cst_147 : f32 to vector<8x32xf32>
    %305 = arith.mulf %304, %303 : vector<8x32xf32>
    %306 = math.tanh %305 : vector<8x32xf32>
    %cst_148 = arith.constant 5.000000e-01 : f32
    %307 = vector.broadcast %cst_148 : f32 to vector<8x32xf32>
    %308 = arith.mulf %307, %306 : vector<8x32xf32>
    %cst_149 = arith.constant 5.000000e-01 : f32
    %309 = vector.broadcast %cst_149 : f32 to vector<8x32xf32>
    %310 = arith.addf %308, %309 : vector<8x32xf32>
    %311 = arith.mulf %294, %260 : vector<8x32xf32>
    %312 = arith.mulf %283, %299 : vector<8x32xf32>
    %313 = arith.addf %311, %312 : vector<8x32xf32>
    %314 = math.tanh %313 : vector<8x32xf32>
    %315 = arith.mulf %310, %314 : vector<8x32xf32>
    %c5_i32 = arith.constant 5 : i32
    %c8_i32_150 = arith.constant 8 : i32
    %316 = arith.muli %c5_i32, %c8_i32_150 : i32
    %317 = tpu.assume_multiple %316, 8 : i32
    %318 = arith.index_cast %317 : i32 to index
    %c0_151 = arith.constant 0 : index
    %319 = vector.load %arg16[%318, %c0_151] : memref<48x32xf32, #tpu.memory_space<vmem>>, vector<8x32xf32>
    %320 = arith.index_cast %317 : i32 to index
    %c0_152 = arith.constant 0 : index
    %321 = vector.load %arg17[%320, %c0_152] : memref<48x32xf32, #tpu.memory_space<vmem>>, vector<8x32xf32>
    %322 = arith.index_cast %317 : i32 to index
    %c0_153 = arith.constant 0 : index
    %323 = vector.load %arg18[%322, %c0_153] : memref<48x32xf32, #tpu.memory_space<vmem>>, vector<8x32xf32>
    %324 = arith.index_cast %317 : i32 to index
    %c0_154 = arith.constant 0 : index
    %325 = vector.load %arg19[%324, %c0_154] : memref<48x32xf32, #tpu.memory_space<vmem>>, vector<8x32xf32>
    %cst_155 = arith.constant dense<0.000000e+00> : vector<8x32xf32>
    %326 = tpu.matmul %315, %34, %cst_155 {dimension_numbers = #tpu.dot_dimension_numbers<[1], [0], [0], [1], [0, 0, 1, 1], [], []>} : vector<8x32xf32>, vector<32x32xf32>, vector<8x32xf32> -> vector<8x32xf32>
    %327 = arith.addf %319, %326 : vector<8x32xf32>
    %328 = vector.broadcast %42 : vector<1x32xf32> to vector<8x32xf32>
    %329 = arith.addf %327, %328 : vector<8x32xf32>
    %cst_156 = arith.constant 5.000000e-01 : f32
    %330 = vector.broadcast %cst_156 : f32 to vector<8x32xf32>
    %331 = arith.mulf %330, %329 : vector<8x32xf32>
    %332 = math.tanh %331 : vector<8x32xf32>
    %cst_157 = arith.constant 5.000000e-01 : f32
    %333 = vector.broadcast %cst_157 : f32 to vector<8x32xf32>
    %334 = arith.mulf %333, %332 : vector<8x32xf32>
    %cst_158 = arith.constant 5.000000e-01 : f32
    %335 = vector.broadcast %cst_158 : f32 to vector<8x32xf32>
    %336 = arith.addf %334, %335 : vector<8x32xf32>
    %cst_159 = arith.constant dense<0.000000e+00> : vector<8x32xf32>
    %337 = tpu.matmul %315, %36, %cst_159 {dimension_numbers = #tpu.dot_dimension_numbers<[1], [0], [0], [1], [0, 0, 1, 1], [], []>} : vector<8x32xf32>, vector<32x32xf32>, vector<8x32xf32> -> vector<8x32xf32>
    %338 = arith.addf %321, %337 : vector<8x32xf32>
    %339 = vector.broadcast %44 : vector<1x32xf32> to vector<8x32xf32>
    %340 = arith.addf %338, %339 : vector<8x32xf32>
    %cst_160 = arith.constant 5.000000e-01 : f32
    %341 = vector.broadcast %cst_160 : f32 to vector<8x32xf32>
    %342 = arith.mulf %341, %340 : vector<8x32xf32>
    %343 = math.tanh %342 : vector<8x32xf32>
    %cst_161 = arith.constant 5.000000e-01 : f32
    %344 = vector.broadcast %cst_161 : f32 to vector<8x32xf32>
    %345 = arith.mulf %344, %343 : vector<8x32xf32>
    %cst_162 = arith.constant 5.000000e-01 : f32
    %346 = vector.broadcast %cst_162 : f32 to vector<8x32xf32>
    %347 = arith.addf %345, %346 : vector<8x32xf32>
    %cst_163 = arith.constant dense<0.000000e+00> : vector<8x32xf32>
    %348 = tpu.matmul %315, %38, %cst_163 {dimension_numbers = #tpu.dot_dimension_numbers<[1], [0], [0], [1], [0, 0, 1, 1], [], []>} : vector<8x32xf32>, vector<32x32xf32>, vector<8x32xf32> -> vector<8x32xf32>
    %349 = arith.addf %323, %348 : vector<8x32xf32>
    %350 = vector.broadcast %46 : vector<1x32xf32> to vector<8x32xf32>
    %351 = arith.addf %349, %350 : vector<8x32xf32>
    %352 = math.tanh %351 : vector<8x32xf32>
    %cst_164 = arith.constant dense<0.000000e+00> : vector<8x32xf32>
    %353 = tpu.matmul %315, %40, %cst_164 {dimension_numbers = #tpu.dot_dimension_numbers<[1], [0], [0], [1], [0, 0, 1, 1], [], []>} : vector<8x32xf32>, vector<32x32xf32>, vector<8x32xf32> -> vector<8x32xf32>
    %354 = arith.addf %325, %353 : vector<8x32xf32>
    %355 = vector.broadcast %48 : vector<1x32xf32> to vector<8x32xf32>
    %356 = arith.addf %354, %355 : vector<8x32xf32>
    %cst_165 = arith.constant 5.000000e-01 : f32
    %357 = vector.broadcast %cst_165 : f32 to vector<8x32xf32>
    %358 = arith.mulf %357, %356 : vector<8x32xf32>
    %359 = math.tanh %358 : vector<8x32xf32>
    %cst_166 = arith.constant 5.000000e-01 : f32
    %360 = vector.broadcast %cst_166 : f32 to vector<8x32xf32>
    %361 = arith.mulf %360, %359 : vector<8x32xf32>
    %cst_167 = arith.constant 5.000000e-01 : f32
    %362 = vector.broadcast %cst_167 : f32 to vector<8x32xf32>
    %363 = arith.addf %361, %362 : vector<8x32xf32>
    %364 = arith.mulf %347, %313 : vector<8x32xf32>
    %365 = arith.mulf %336, %352 : vector<8x32xf32>
    %366 = arith.addf %364, %365 : vector<8x32xf32>
    %367 = math.tanh %366 : vector<8x32xf32>
    %368 = arith.mulf %363, %367 : vector<8x32xf32>
    %c6_i32 = arith.constant 6 : i32
    %c0_168 = arith.constant 0 : index
    %c0_169 = arith.constant 0 : index
    %369 = vector.load %arg9[%c0_168, %c0_169] : memref<32x32xf32, #tpu.memory_space<vmem>>, vector<32x32xf32>
    %cst_170 = arith.constant dense<0.000000e+00> : vector<8x32xf32>
    %370 = tpu.matmul %368, %369, %cst_170 {dimension_numbers = #tpu.dot_dimension_numbers<[1], [0], [0], [1], [0, 0, 1, 1], [], []>} : vector<8x32xf32>, vector<32x32xf32>, vector<8x32xf32> -> vector<8x32xf32>
    %c0_171 = arith.constant 0 : index
    %c0_172 = arith.constant 0 : index
    %371 = vector.load %arg10[%c0_171, %c0_172] : memref<1x32xf32, #tpu.memory_space<vmem>>, vector<1x32xf32>
    %372 = vector.broadcast %371 : vector<1x32xf32> to vector<8x32xf32>
    %373 = arith.addf %370, %372 : vector<8x32xf32>
    %cst_173 = arith.constant 0.000000e+00 : f32
    %374 = vector.broadcast %cst_173 : f32 to vector<8x32xf32>
    %375 = arith.maximumf %373, %374 : vector<8x32xf32>
    %376 = arith.addf %375, %368 : vector<8x32xf32>
    %c0_174 = arith.constant 0 : index
    %c0_175 = arith.constant 0 : index
    %377 = vector.load %arg11[%c0_174, %c0_175] : memref<32x32xf32, #tpu.memory_space<vmem>>, vector<32x32xf32>
    %cst_176 = arith.constant dense<0.000000e+00> : vector<8x32xf32>
    %378 = tpu.matmul %376, %377, %cst_176 {dimension_numbers = #tpu.dot_dimension_numbers<[1], [0], [0], [1], [0, 0, 1, 1], [], []>} : vector<8x32xf32>, vector<32x32xf32>, vector<8x32xf32> -> vector<8x32xf32>
    %c0_177 = arith.constant 0 : index
    %c0_178 = arith.constant 0 : index
    %379 = vector.load %arg12[%c0_177, %c0_178] : memref<1x32xf32, #tpu.memory_space<vmem>>, vector<1x32xf32>
    %380 = vector.broadcast %379 : vector<1x32xf32> to vector<8x32xf32>
    %381 = arith.addf %378, %380 : vector<8x32xf32>
    %cst_179 = arith.constant 0.000000e+00 : f32
    %382 = vector.broadcast %cst_179 : f32 to vector<8x32xf32>
    %383 = arith.maximumf %381, %382 : vector<8x32xf32>
    %384 = arith.addf %383, %376 : vector<8x32xf32>
    %c0_180 = arith.constant 0 : index
    %c0_181 = arith.constant 0 : index
    %385 = vector.load %arg13[%c0_180, %c0_181] : memref<32x1xf32, #tpu.memory_space<vmem>>, vector<32x1xf32>
    %cst_182 = arith.constant dense<0.000000e+00> : vector<8x1xf32>
    %386 = tpu.matmul %384, %385, %cst_182 {dimension_numbers = #tpu.dot_dimension_numbers<[1], [0], [0], [1], [0, 0, 1, 1], [], []>} : vector<8x32xf32>, vector<32x1xf32>, vector<8x1xf32> -> vector<8x1xf32>
    %c0_183 = arith.constant 0 : index
    %c0_184 = arith.constant 0 : index
    %387 = vector.load %arg14[%c0_183, %c0_184] : memref<1x1xf32, #tpu.memory_space<vmem>>, vector<1x1xf32>
    %388 = vector.broadcast %387 : vector<1x1xf32> to vector<8x1xf32>
    %389 = arith.addf %386, %388 : vector<8x1xf32>
    %c0_185 = arith.constant 0 : index
    %c0_186 = arith.constant 0 : index
    %390 = vector.load %arg15[%c0_185, %c0_186] : memref<8x1xf32, #tpu.memory_space<vmem>>, vector<8x1xf32>
    tpu.vector_store %arg15[%c0_185, %c0_186], %389 {strides = array<i32>} : memref<8x1xf32, #tpu.memory_space<vmem>>, vector<8x1xf32>,
    return
  }
}

</mosaic_0001>

<llo_original>
// kernel: tpu_custom_call.1
$region0: #{tpu_custom_call.1}
  #allocation0 [shape = 'u32[]', space=smem, size = 0x4, offset = 0x4, fixed_abs, tag = 'smem constant byte address 0x4 - core index']
  #allocation1 [shape = 'u32[144,128]{1,0:T(1,128)}', space=vmem, size = 0x12000, scoped, tag = 'internal scratch']
  #allocation2 [shape = 'f32[48,32]{1,0:T(8,128)}', space=vmem, size = 0x6000, scoped, tag = 'scratch operand']
  #allocation3 [shape = 'f32[48,32]{1,0:T(8,128)}', space=vmem, size = 0x6000, scoped, tag = 'scratch operand']
  #allocation4 [shape = 'f32[48,32]{1,0:T(8,128)}', space=vmem, size = 0x6000, scoped, tag = 'scratch operand']
  #allocation5 [shape = 'f32[48,32]{1,0:T(8,128)}', space=vmem, size = 0x6000, scoped, tag = 'scratch operand']
  #allocation6 [shape = 'f32[1,1]{1,0:T(1,128)S(1)}', space=vmem, size = 0x200, scoped, tag = 'scoped memory for tpu_custom_call.1']
  %s0 = inlined_call_operand.vmem [shape: f32[48,16], index: 0, kind: input, shape index: {}]
  %s1 = inlined_call_operand.vmem [shape: f32[48,32], index: 1, kind: input, shape index: {}]
  %s2 = inlined_call_operand.hbm [shape: f32[16,32], index: 2, kind: input, shape index: {}]
  %s3 = inlined_call_operand.vmem [shape: f32[1,32], index: 3, kind: input, shape index: {}]
  %s4 = inlined_call_operand.vmem [shape: f32[32,32], index: 4, kind: input, shape index: {}]
  %s5 = inlined_call_operand.vmem [shape: f32[1,32], index: 5, kind: input, shape index: {}]
  %s6 = inlined_call_operand.vmem [shape: f32[4,32,32], index: 6, kind: input, shape index: {}]
  %s7 = inlined_call_operand.hbm [shape: f32[4,32,32], index: 7, kind: input, shape index: {}]
  %s8 = inlined_call_operand.vmem [shape: f32[4,1,32], index: 8, kind: input, shape index: {}]
  %s9 = inlined_call_operand.vmem [shape: f32[32,32], index: 9, kind: input, shape index: {}]
  %s10 = inlined_call_operand.vmem [shape: f32[1,32], index: 10, kind: input, shape index: {}]
  %s11 = inlined_call_operand.hbm [shape: f32[32,32], index: 11, kind: input, shape index: {}]
  %s12 = inlined_call_operand.vmem [shape: f32[1,32], index: 12, kind: input, shape index: {}]
  %s13 = inlined_call_operand.vmem [shape: f32[32,1], index: 13, kind: input, shape index: {}]
  %s14 = inlined_call_operand.<no memory space> [shape: f32[1,1], index: 14, kind: input, shape index: {}]
  %s15 = inlined_call_operand.vmem [shape: f32[8,1], index: 15, kind: output, shape index: {}]
  %s16 = sld [smem:[#allocation0]]
  $region82: #{tpu_custom_call.1} parent=0
    _
  %s18 = ssub.s32 1, %s16
  %s19 = scalar_select 0, %s18, %s16
  %v20 = vstv %s14
  %21 = vst [vmem:[#allocation6] sm:$0x1] %v20
  $region1: #{tpu_custom_call.1} parent=0
    #allocation7 [shape = 'u8[8192]{0}', space=vmem, size = 0x2000, scoped, tag = 'input window, operand 2, single buffered']
    #allocation8 [shape = 's32[1]{0}', space=sflag, size = 0x4, scoped, tag = 'scoped memory for tpu_custom_call.1']
    #allocation9 [shape = 'u8[65536]{0}', space=vmem, size = 0x10000, scoped, tag = 'input window, operand 7, single buffered']
    #allocation10 [shape = 's32[1]{0}', space=sflag, size = 0x4, scoped, tag = 'scoped memory for tpu_custom_call.1']
    #allocation11 [shape = 'u8[16384]{0}', space=vmem, size = 0x4000, scoped, tag = 'input window, operand 11, single buffered']
    %22 = vsyncpa [#allocation8], 0
    %23 = vsyncpa [#allocation10], 0
    // Predicated region
    $region2: #{tpu_custom_call.1} parent=1 // pred_check
      _
    $region3: #{tpu_custom_call.1} parent=1 // pred_check_branch
      %25 = sbr.rel (0) target = $region5
    $region4: #{tpu_custom_call.1} parent=1 // pred_region
      _
    $region5: #{tpu_custom_call.1} parent=1 // pred_fallthru
      _
    // Predicated region
    $region6: #{tpu_custom_call.1} parent=1 // pred_check
      _
    $region7: #{tpu_custom_call.1} parent=1 // pred_check_branch
      %27 = sbr.rel (0) target = $region9
    $region8: #{tpu_custom_call.1} parent=1 // pred_region
      _
    $region9: #{tpu_custom_call.1} parent=1 // pred_fallthru
      _
    // Predicated region
    $region10: #{tpu_custom_call.1} parent=1 // pred_check
      _
    $region11: #{tpu_custom_call.1} parent=1 // pred_check_branch
      %29 = sbr.rel (0) target = $region13
    $region12: #{tpu_custom_call.1} parent=1 // pred_region
      %s31 = ssub.s32 256, 256
      %32 = vsyncadd [#allocation8], %s31
      %s33 = sshll.u32 [#allocation7], 4
      %s34 = int_to_ptr.vmem [resolvable:$true] %s33
      %39 = dma.hbm_to_vmem [thread:$0]  %s2, 256, %s34, [#allocation8], 128, 128, 8
    $region13: #{tpu_custom_call.1} parent=1 // pred_fallthru
      _
    // Predicated region
    $region14: #{tpu_custom_call.1} parent=1 // pred_check
      _
    $region15: #{tpu_custom_call.1} parent=1 // pred_check_branch
      %41 = sbr.rel (0) target = $region17
    $region16: #{tpu_custom_call.1} parent=1 // pred_region
      _
    $region17: #{tpu_custom_call.1} parent=1 // pred_fallthru
      _
    // Predicated region
    $region18: #{tpu_custom_call.1} parent=1 // pred_check
      _
    $region19: #{tpu_custom_call.1} parent=1 // pred_check_branch
      %43 = sbr.rel (0) target = $region21
    $region20: #{tpu_custom_call.1} parent=1 // pred_region
      _
    $region21: #{tpu_custom_call.1} parent=1 // pred_fallthru
      _
    // Predicated region
    $region22: #{tpu_custom_call.1} parent=1 // pred_check
      _
    $region23: #{tpu_custom_call.1} parent=1 // pred_check_branch
      %45 = sbr.rel (0) target = $region25
    $region24: #{tpu_custom_call.1} parent=1 // pred_region
      _
    $region25: #{tpu_custom_call.1} parent=1 // pred_fallthru
      _
    // Predicated region
    $region26: #{tpu_custom_call.1} parent=1 // pred_check
      _
    $region27: #{tpu_custom_call.1} parent=1 // pred_check_branch
      %47 = sbr.rel (0) target = $region29
    $region28: #{tpu_custom_call.1} parent=1 // pred_region
      _
    $region29: #{tpu_custom_call.1} parent=1 // pred_fallthru
      _
    // Predicated region
    $region30: #{tpu_custom_call.1} parent=1 // pred_check
      _
    $region31: #{tpu_custom_call.1} parent=1 // pred_check_branch
      %49 = sbr.rel (0) target = $region33
    $region32: #{tpu_custom_call.1} parent=1 // pred_region
      %s51 = ssub.s32 2048, 2048
      %52 = vsyncadd [#allocation10], %s51
      %s53 = sshll.u32 [#allocation9], 4
      %s54 = int_to_ptr.vmem [resolvable:$true] %s53
      %59 = dma.hbm_to_vmem [thread:$0]  %s7, 2048, %s54, [#allocation10], 128, 128, 8
    $region33: #{tpu_custom_call.1} parent=1 // pred_fallthru
      _
    // Predicated region
    $region34: #{tpu_custom_call.1} parent=1 // pred_check
      _
    $region35: #{tpu_custom_call.1} parent=1 // pred_check_branch
      %61 = sbr.rel (0) target = $region37
    $region36: #{tpu_custom_call.1} parent=1 // pred_region
      _
    $region37: #{tpu_custom_call.1} parent=1 // pred_fallthru
      _
    // Predicated region
    $region38: #{tpu_custom_call.1} parent=1 // pred_check
      _
    $region39: #{tpu_custom_call.1} parent=1 // pred_check_branch
      %63 = sbr.rel (0) target = $region41
    $region40: #{tpu_custom_call.1} parent=1 // pred_region
      _
    $region41: #{tpu_custom_call.1} parent=1 // pred_fallthru
      _
    // Predicated region
    $region42: #{tpu_custom_call.1} parent=1 // pred_check
      _
    $region43: #{tpu_custom_call.1} parent=1 // pred_check_branch
      %65 = sbr.rel (0) target = $region45
    $region44: #{tpu_custom_call.1} parent=1 // pred_region
      _
    $region45: #{tpu_custom_call.1} parent=1 // pred_fallthru
      _
    // Predicated region
    $region46: #{tpu_custom_call.1} parent=1 // pred_check
      _
    $region47: #{tpu_custom_call.1} parent=1 // pred_check_branch
      %67 = sbr.rel (0) target = $region49
    $region48: #{tpu_custom_call.1} parent=1 // pred_region
      %s69 = ssub.s32 512, 512
      %70 = vsyncadd [#allocation10], %s69
      %s71 = sshll.u32 [#allocation11], 4
      %s72 = int_to_ptr.vmem [resolvable:$true] %s71
      %77 = dma.hbm_to_vmem [thread:$0]  %s11, 512, %s72, [#allocation10], 128, 128, 8
    $region49: #{tpu_custom_call.1} parent=1 // pred_fallthru
      _
    // Predicated region
    $region50: #{tpu_custom_call.1} parent=1 // pred_check
      _
    $region51: #{tpu_custom_call.1} parent=1 // pred_check_branch
      %79 = sbr.rel (0) target = $region53
    $region52: #{tpu_custom_call.1} parent=1 // pred_region
      _
    $region53: #{tpu_custom_call.1} parent=1 // pred_fallthru
      _
    // Predicated region
    $region54: #{tpu_custom_call.1} parent=1 // pred_check
      _
    $region55: #{tpu_custom_call.1} parent=1 // pred_check_branch
      %81 = sbr.rel (0) target = $region57
    $region56: #{tpu_custom_call.1} parent=1 // pred_region
      _
    $region57: #{tpu_custom_call.1} parent=1 // pred_fallthru
      _
    // Predicated region
    $region58: #{tpu_custom_call.1} parent=1 // pred_check
      _
    $region59: #{tpu_custom_call.1} parent=1 // pred_check_branch
      %83 = sbr.rel (0) target = $region61
    $region60: #{tpu_custom_call.1} parent=1 // pred_region
      _
    $region61: #{tpu_custom_call.1} parent=1 // pred_fallthru
      _
    // Predicated region
    $region62: #{tpu_custom_call.1} parent=1 // pred_check
      _
    $region63: #{tpu_custom_call.1} parent=1 // pred_check_branch
      %85 = sbr.rel (0) target = $region65
    $region64: #{tpu_custom_call.1} parent=1 // pred_region
      %86 = dma.done [#allocation8], 256
    $region65: #{tpu_custom_call.1} parent=1 // pred_fallthru
      _
    // Predicated region
    $region66: #{tpu_custom_call.1} parent=1 // pred_check
      _
    $region67: #{tpu_custom_call.1} parent=1 // pred_check_branch
      %88 = sbr.rel (0) target = $region69
    $region68: #{tpu_custom_call.1} parent=1 // pred_region
      %89 = dma.done [#allocation10], 2048
    $region69: #{tpu_custom_call.1} parent=1 // pred_fallthru
      _
    // Predicated region
    $region70: #{tpu_custom_call.1} parent=1 // pred_check
      _
    $region71: #{tpu_custom_call.1} parent=1 // pred_check_branch
      %91 = sbr.rel (0) target = $region73
    $region72: #{tpu_custom_call.1} parent=1 // pred_region
      %92 = dma.done [#allocation10], 512
    $region73: #{tpu_custom_call.1} parent=1 // pred_fallthru
      _
    %v93 = vld [vmem:[%s0] sm:$0xff]
    %v94 = vld [vmem:[%s0 + $0x8] sm:$0xff]
    %v95 = vld [vmem:[%s0 + $0x10] sm:$0xff]
    %v96 = vld [vmem:[%s0 + $0x18] sm:$0xff]
    %v97 = vld [vmem:[%s0 + $0x20] sm:$0xff]
    %v98 = vld [vmem:[%s0 + $0x28] sm:$0xff]
    %v99 = vld [vmem:[#allocation7] sm:$0xff]
    %v100 = vld [vmem:[#allocation7 + $0x8] sm:$0xff]
    %v101 = vld [vmem:[%s3] sm:$0x1]
    %v103 = vlaneseq
    %v104 = vshrl.u32 %v103, 7
    %v105 = vsub.s32 0, %v104
    %v106 = vrot.slane %v101, %v105
    %vm108 = vcmask 130048
    %v110 = vsel %vm108, %v93, 0
    %v113 = vsel %vm108, %v94, 0
    %v116 = vsel %vm108, %v95, 0
    %v119 = vsel %vm108, %v96, 0
    %v122 = vsel %vm108, %v97, 0
    %v125 = vsel %vm108, %v98, 0
    %127 = vmatprep.subr.mxu0 0.0
    %128 = vmatpush1.msra.mxu0 %v99
    %129 = vmatprep.subr.mxu0 0.0
    %130 = vmatpush1.msra.mxu0 %v100
    %131 = vmatprep.subr.mxu0 0.0
    %132 = vmatpush1.msra.mxu0 0.0
    %133 = vmatprep.subr.mxu0 0.0
    %134 = vmatpush1.msra.mxu0 0.0
    %135 = vmatprep.subr.mxu0 0.0
    %136 = vmatpush1.msra.mxu0 0.0
    %137 = vmatprep.subr.mxu0 0.0
    %138 = vmatpush1.msra.mxu0 0.0
    %139 = vmatprep.subr.mxu0 0.0
    %140 = vmatpush1.msra.mxu0 0.0
    %141 = vmatprep.subr.mxu0 0.0
    %142 = vmatpush1.msra.mxu0 0.0
    %143 = vmatprep.subr.mxu0 0.0
    %144 = vmatpush1.msra.mxu0 0.0
    %145 = vmatprep.subr.mxu0 0.0
    %146 = vmatpush1.msra.mxu0 0.0
    %147 = vmatprep.subr.mxu0 0.0
    %148 = vmatpush1.msra.mxu0 0.0
    %149 = vmatprep.subr.mxu0 0.0
    %150 = vmatpush1.msra.mxu0 0.0
    %151 = vmatprep.subr.mxu0 0.0
    %152 = vmatpush1.msra.mxu0 0.0
    %153 = vmatprep.subr.mxu0 0.0
    %154 = vmatpush1.msra.mxu0 0.0
    %155 = vmatprep.subr.mxu0 0.0
    %156 = vmatpush1.msra.mxu0 0.0
    %157 = vmatprep.subr.mxu0 0.0
    %158 = vmatpush1.msra.mxu0 0.0
    %159 = vmatprep.subr.mxu0 0.0
    %160 = vmatpush1.msra.mxu0 0.0
    %161 = vmatprep.subr.mxu0 0.0
    %162 = vmatpush1.msra.mxu0 0.0
    %163 = vmatprep.subr.mxu0 0.0
    %164 = vmatpush1.msra.mxu0 0.0
    %165 = vmatprep.subr.mxu0 0.0
    %166 = vmatpush1.msra.mxu0 0.0
    %167 = vmatprep.subr.mxu0 0.0
    %168 = vmatpush1.msra.mxu0 0.0
    %169 = vmatprep.subr.mxu0 0.0
    %170 = vmatpush1.msra.mxu0 0.0
    %171 = vmatprep.subr.mxu0 0.0
    %172 = vmatpush1.msra.mxu0 0.0
    %173 = vmatprep.subr.mxu0 0.0
    %174 = vmatpush1.msra.mxu0 0.0
    %175 = vmatprep.subr.mxu0 0.0
    %176 = vmatpush1.msra.mxu0 0.0
    %177 = vmatprep.subr.mxu0 0.0
    %178 = vmatpush1.msra.mxu0 0.0
    %179 = vmatprep.subr.mxu0 0.0
    %180 = vmatpush1.msra.mxu0 0.0
    %181 = vmatprep.subr.mxu0 0.0
    %182 = vmatpush1.msra.mxu0 0.0
    %183 = vmatprep.subr.mxu0 0.0
    %184 = vmatpush1.msra.mxu0 0.0
    %185 = vmatprep.subr.mxu0 0.0
    %186 = vmatpush1.msra.mxu0 0.0
    %187 = vmatprep.subr.mxu0 0.0
    %188 = vmatpush1.msra.mxu0 0.0
    %189 = vmatprep.subr.mxu0 0.0
    %190 = vmatpush1.msra.mxu0 0.0
    %191 = vmatprep.mubr.f32.mxu0 0.0
    %192 = vmatmul.mubr.f32.gmra.mrb[0].mxu0 %v110
    %v193 = vpop.f32.mrb[0].mxu0
    %v194 = vadd.f32 %v106, %v193
    %v195 = vpop.f32.mrb[0].mxu0
    %196 = vmatprep.mubr.f32.mxu0 0.0
    %197 = vmatmul.mubr.f32.gmra.mrb[0].mxu0 %v113
    %v198 = vpop.f32.mrb[0].mxu0
    %v199 = vadd.f32 %v106, %v198
    %v200 = vpop.f32.mrb[0].mxu0
    %201 = vmatprep.mubr.f32.mxu0 0.0
    %202 = vmatmul.mubr.f32.gmra.mrb[0].mxu0 %v116
    %v203 = vpop.f32.mrb[0].mxu0
    %v204 = vadd.f32 %v106, %v203
    %v205 = vpop.f32.mrb[0].mxu0
    %206 = vmatprep.mubr.f32.mxu0 0.0
    %207 = vmatmul.mubr.f32.gmra.mrb[0].mxu0 %v119
    %v208 = vpop.f32.mrb[0].mxu0
    %v209 = vadd.f32 %v106, %v208
    %v210 = vpop.f32.mrb[0].mxu0
    %211 = vmatprep.mubr.f32.mxu0 0.0
    %212 = vmatmul.mubr.f32.gmra.mrb[0].mxu0 %v122
    %v213 = vpop.f32.mrb[0].mxu0
    %v214 = vadd.f32 %v106, %v213
    %v215 = vpop.f32.mrb[0].mxu0
    %216 = vmatprep.mubr.f32.mxu0 0.0
    %217 = vmatmul.mubr.f32.gmra.mrb[0].mxu0 %v125
    %v218 = vpop.f32.mrb[0].mxu0
    %v219 = vadd.f32 %v106, %v218
    %v220 = vpop.f32.mrb[0].mxu0
    %221 = vdwg.mxu0
    %v222 = vmax.f32 %v194, 0.0
    %v223 = vmax.f32 %v199, 0.0
    %v224 = vmax.f32 %v204, 0.0
    %v225 = vmax.f32 %v209, 0.0
    %v226 = vmax.f32 %v214, 0.0
    %v227 = vmax.f32 %v219, 0.0
    %v228 = vld [vmem:[%s4] sm:$0xff]
    %v229 = vld [vmem:[%s4 + $0x8] sm:$0xff]
    %v230 = vld [vmem:[%s4 + $0x10] sm:$0xff]
    %v231 = vld [vmem:[%s4 + $0x18] sm:$0xff]
    %v232 = vld [vmem:[%s5] sm:$0x1]
    %v234 = vlaneseq
    %v235 = vshrl.u32 %v234, 7
    %v236 = vsub.s32 0, %v235
    %v237 = vrot.slane %v232, %v236
    %vm239 = vcmask 261120
    %v241 = vsel %vm239, %v222, 0
    %v244 = vsel %vm239, %v223, 0
    %v247 = vsel %vm239, %v224, 0
    %v250 = vsel %vm239, %v225, 0
    %v253 = vsel %vm239, %v226, 0
    %v256 = vsel %vm239, %v227, 0
    %258 = vmatprep.subr.mxu0 0.0
    %259 = vmatpush1.msra.mxu0 %v228
    %260 = vmatprep.subr.mxu0 0.0
    %261 = vmatpush1.msra.mxu0 %v229
    %262 = vmatprep.subr.mxu0 0.0
    %263 = vmatpush1.msra.mxu0 %v230
    %264 = vmatprep.subr.mxu0 0.0
    %265 = vmatpush1.msra.mxu0 %v231
    %266 = vmatprep.subr.mxu0 0.0
    %267 = vmatpush1.msra.mxu0 0.0
    %268 = vmatprep.subr.mxu0 0.0
    %269 = vmatpush1.msra.mxu0 0.0
    %270 = vmatprep.subr.mxu0 0.0
    %271 = vmatpush1.msra.mxu0 0.0
    %272 = vmatprep.subr.mxu0 0.0
    %273 = vmatpush1.msra.mxu0 0.0
    %274 = vmatprep.subr.mxu0 0.0
    %275 = vmatpush1.msra.mxu0 0.0
    %276 = vmatprep.subr.mxu0 0.0
    %277 = vmatpush1.msra.mxu0 0.0
    %278 = vmatprep.subr.mxu0 0.0
    %279 = vmatpush1.msra.mxu0 0.0
    %280 = vmatprep.subr.mxu0 0.0
    %281 = vmatpush1.msra.mxu0 0.0
    %282 = vmatprep.subr.mxu0 0.0
    %283 = vmatpush1.msra.mxu0 0.0
    %284 = vmatprep.subr.mxu0 0.0
    %285 = vmatpush1.msra.mxu0 0.0
    %286 = vmatprep.subr.mxu0 0.0
    %287 = vmatpush1.msra.mxu0 0.0
    %288 = vmatprep.subr.mxu0 0.0
    %289 = vmatpush1.msra.mxu0 0.0
    %290 = vmatprep.subr.mxu0 0.0
    %291 = vmatpush1.msra.mxu0 0.0
    %292 = vmatprep.subr.mxu0 0.0
    %293 = vmatpush1.msra.mxu0 0.0
    %294 = vmatprep.subr.mxu0 0.0
    %295 = vmatpush1.msra.mxu0 0.0
    %296 = vmatprep.subr.mxu0 0.0
    %297 = vmatpush1.msra.mxu0 0.0
    %298 = vmatprep.subr.mxu0 0.0
    %299 = vmatpush1.msra.mxu0 0.0
    %300 = vmatprep.subr.mxu0 0.0
    %301 = vmatpush1.msra.mxu0 0.0
    %302 = vmatprep.subr.mxu0 0.0
    %303 = vmatpush1.msra.mxu0 0.0
    %304 = vmatprep.subr.mxu0 0.0
    %305 = vmatpush1.msra.mxu0 0.0
    %306 = vmatprep.subr.mxu0 0.0
    %307 = vmatpush1.msra.mxu0 0.0
    %308 = vmatprep.subr.mxu0 0.0
    %309 = vmatpush1.msra.mxu0 0.0
    %310 = vmatprep.subr.mxu0 0.0
    %311 = vmatpush1.msra.mxu0 0.0
    %312 = vmatprep.subr.mxu0 0.0
    %313 = vmatpush1.msra.mxu0 0.0
    %314 = vmatprep.subr.mxu0 0.0
    %315 = vmatpush1.msra.mxu0 0.0
    %316 = vmatprep.subr.mxu0 0.0
    %317 = vmatpush1.msra.mxu0 0.0
    %318 = vmatprep.subr.mxu0 0.0
    %319 = vmatpush1.msra.mxu0 0.0
    %320 = vmatprep.subr.mxu0 0.0
    %321 = vmatpush1.msra.mxu0 0.0
    %322 = vmatprep.mubr.f32.mxu0 0.0
    %323 = vmatmul.mubr.f32.gmra.mrb[0].mxu0 %v241
    %v324 = vpop.f32.mrb[0].mxu0
    %v325 = vadd.f32 %v237, %v324
    %v326 = vpop.f32.mrb[0].mxu0
    %327 = vmatprep.mubr.f32.mxu0 0.0
    %328 = vmatmul.mubr.f32.gmra.mrb[0].mxu0 %v244
    %v329 = vpop.f32.mrb[0].mxu0
    %v330 = vadd.f32 %v237, %v329
    %v331 = vpop.f32.mrb[0].mxu0
    %332 = vmatprep.mubr.f32.mxu0 0.0
    %333 = vmatmul.mubr.f32.gmra.mrb[0].mxu0 %v247
    %v334 = vpop.f32.mrb[0].mxu0
    %v335 = vadd.f32 %v237, %v334
    %v336 = vpop.f32.mrb[0].mxu0
    %337 = vmatprep.mubr.f32.mxu0 0.0
    %338 = vmatmul.mubr.f32.gmra.mrb[0].mxu0 %v250
    %v339 = vpop.f32.mrb[0].mxu0
    %v340 = vadd.f32 %v237, %v339
    %v341 = vpop.f32.mrb[0].mxu0
    %342 = vmatprep.mubr.f32.mxu0 0.0
    %343 = vmatmul.mubr.f32.gmra.mrb[0].mxu0 %v253
    %v344 = vpop.f32.mrb[0].mxu0
    %v345 = vadd.f32 %v237, %v344
    %v346 = vpop.f32.mrb[0].mxu0
    %347 = vmatprep.mubr.f32.mxu0 0.0
    %348 = vmatmul.mubr.f32.gmra.mrb[0].mxu0 %v256
    %v349 = vpop.f32.mrb[0].mxu0
    %v350 = vadd.f32 %v237, %v349
    %v351 = vpop.f32.mrb[0].mxu0
    %352 = vdwg.mxu0
    %v353 = vmax.f32 %v325, 0.0
    %v354 = vmax.f32 %v330, 0.0
    %v355 = vmax.f32 %v335, 0.0
    %v356 = vmax.f32 %v340, 0.0
    %v357 = vmax.f32 %v345, 0.0
    %v358 = vmax.f32 %v350, 0.0
    %v359 = vld [vmem:[%s1] sm:$0xff]
    %v360 = vld [vmem:[%s1 + $0x8] sm:$0xff]
    %v361 = vld [vmem:[%s1 + $0x10] sm:$0xff]
    %v362 = vld [vmem:[%s1 + $0x18] sm:$0xff]
    %v363 = vld [vmem:[%s1 + $0x20] sm:$0xff]
    %v364 = vld [vmem:[%s1 + $0x28] sm:$0xff]
    %v365 = vmul.f32 %v353, %v359
    %v366 = vmul.f32 %v354, %v360
    %v367 = vmul.f32 %v355, %v361
    %v368 = vmul.f32 %v356, %v362
    %v369 = vmul.f32 %v357, %v363
    %v370 = vmul.f32 %v358, %v364
    %v371 = vld [vmem:[%s6] sm:$0xff]
    %v372 = vld [vmem:[%s6 + $0x8] sm:$0xff]
    %v373 = vld [vmem:[%s6 + $0x10] sm:$0xff]
    %v374 = vld [vmem:[%s6 + $0x18] sm:$0xff]
    %v376 = vsel %vm239, %v365, 0
    %v379 = vsel %vm239, %v366, 0
    %v382 = vsel %vm239, %v367, 0
    %v385 = vsel %vm239, %v368, 0
    %v388 = vsel %vm239, %v369, 0
    %v391 = vsel %vm239, %v370, 0
    %393 = vmatprep.subr.mxu0 0.0
    %394 = vmatpush1.msra.mxu0 %v371
    %395 = vmatprep.subr.mxu0 0.0
    %396 = vmatpush1.msra.mxu0 %v372
    %397 = vmatprep.subr.mxu0 0.0
    %398 = vmatpush1.msra.mxu0 %v373
    %399 = vmatprep.subr.mxu0 0.0
    %400 = vmatpush1.msra.mxu0 %v374
    %401 = vmatprep.subr.mxu0 0.0
    %402 = vmatpush1.msra.mxu0 0.0
    %403 = vmatprep.subr.mxu0 0.0
    %404 = vmatpush1.msra.mxu0 0.0
    %405 = vmatprep.subr.mxu0 0.0
    %406 = vmatpush1.msra.mxu0 0.0
    %407 = vmatprep.subr.mxu0 0.0
    %408 = vmatpush1.msra.mxu0 0.0
    %409 = vmatprep.subr.mxu0 0.0
    %410 = vmatpush1.msra.mxu0 0.0
    %411 = vmatprep.subr.mxu0 0.0
    %412 = vmatpush1.msra.mxu0 0.0
    %413 = vmatprep.subr.mxu0 0.0
    %414 = vmatpush1.msra.mxu0 0.0
    %415 = vmatprep.subr.mxu0 0.0
    %416 = vmatpush1.msra.mxu0 0.0
    %417 = vmatprep.subr.mxu0 0.0
    %418 = vmatpush1.msra.mxu0 0.0
    %419 = vmatprep.subr.mxu0 0.0
    %420 = vmatpush1.msra.mxu0 0.0
    %421 = vmatprep.subr.mxu0 0.0
    %422 = vmatpush1.msra.mxu0 0.0
    %423 = vmatprep.subr.mxu0 0.0
    %424 = vmatpush1.msra.mxu0 0.0
    %425 = vmatprep.subr.mxu0 0.0
    %426 = vmatpush1.msra.mxu0 0.0
    %427 = vmatprep.subr.mxu0 0.0
    %428 = vmatpush1.msra.mxu0 0.0
    %429 = vmatprep.subr.mxu0 0.0
    %430 = vmatpush1.msra.mxu0 0.0
    %431 = vmatprep.subr.mxu0 0.0
    %432 = vmatpush1.msra.mxu0 0.0
    %433 = vmatprep.subr.mxu0 0.0
    %434 = vmatpush1.msra.mxu0 0.0
    %435 = vmatprep.subr.mxu0 0.0
    %436 = vmatpush1.msra.mxu0 0.0
    %437 = vmatprep.subr.mxu0 0.0
    %438 = vmatpush1.msra.mxu0 0.0
    %439 = vmatprep.subr.mxu0 0.0
    %440 = vmatpush1.msra.mxu0 0.0
    %441 = vmatprep.subr.mxu0 0.0
    %442 = vmatpush1.msra.mxu0 0.0
    %443 = vmatprep.subr.mxu0 0.0
    %444 = vmatpush1.msra.mxu0 0.0
    %445 = vmatprep.subr.mxu0 0.0
    %446 = vmatpush1.msra.mxu0 0.0
    %447 = vmatprep.subr.mxu0 0.0
    %448 = vmatpush1.msra.mxu0 0.0
    %449 = vmatprep.subr.mxu0 0.0
    %450 = vmatpush1.msra.mxu0 0.0
    %451 = vmatprep.subr.mxu0 0.0
    %452 = vmatpush1.msra.mxu0 0.0
    %453 = vmatprep.subr.mxu0 0.0
    %454 = vmatpush1.msra.mxu0 0.0
    %455 = vmatprep.subr.mxu0 0.0
    %456 = vmatpush1.msra.mxu0 0.0
    %457 = vmatprep.mubr.f32.mxu0 0.0
    %458 = vmatmul.mubr.f32.gmra.mrb[0].mxu0 %v376
    %v459 = vpop.f32.mrb[0].mxu0
    %v460 = vadd.f32 0.0, %v459
    %v461 = vpop.f32.mrb[0].mxu0
    %462 = vmatprep.mubr.f32.mxu0 0.0
    %463 = vmatmul.mubr.f32.gmra.mrb[0].mxu0 %v379
    %v464 = vpop.f32.mrb[0].mxu0
    %v465 = vadd.f32 0.0, %v464
    %v466 = vpop.f32.mrb[0].mxu0
    %467 = vmatprep.mubr.f32.mxu0 0.0
    %468 = vmatmul.mubr.f32.gmra.mrb[0].mxu0 %v382
    %v469 = vpop.f32.mrb[0].mxu0
    %v470 = vadd.f32 0.0, %v469
    %v471 = vpop.f32.mrb[0].mxu0
    %472 = vmatprep.mubr.f32.mxu0 0.0
    %473 = vmatmul.mubr.f32.gmra.mrb[0].mxu0 %v385
    %v474 = vpop.f32.mrb[0].mxu0
    %v475 = vadd.f32 0.0, %v474
    %v476 = vpop.f32.mrb[0].mxu0
    %477 = vmatprep.mubr.f32.mxu0 0.0
    %478 = vmatmul.mubr.f32.gmra.mrb[0].mxu0 %v388
    %v479 = vpop.f32.mrb[0].mxu0
    %v480 = vadd.f32 0.0, %v479
    %v481 = vpop.f32.mrb[0].mxu0
    %482 = vmatprep.mubr.f32.mxu0 0.0
    %483 = vmatmul.mubr.f32.gmra.mrb[0].mxu0 %v391
    %v484 = vpop.f32.mrb[0].mxu0
    %v485 = vadd.f32 0.0, %v484
    %v486 = vpop.f32.mrb[0].mxu0
    %487 = vdwg.mxu0
    %488 = vst.msk [vmem:[#allocation2] sm:$0xff] %vm239, %v460
    %489 = vst.msk [vmem:[#allocation2 + $0x8] sm:$0xff] %vm239, %v465
    %490 = vst.msk [vmem:[#allocation2 + $0x10] sm:$0xff] %vm239, %v470
    %491 = vst.msk [vmem:[#allocation2 + $0x18] sm:$0xff] %vm239, %v475
    %492 = vst.msk [vmem:[#allocation2 + $0x20] sm:$0xff] %vm239, %v480
    %493 = vst.msk [vmem:[#allocation2 + $0x28] sm:$0xff] %vm239, %v485
    %s494 = scalar_lea.vmem %s6, 32
    %v495 = vld [vmem:[%s494] sm:$0xff]
    %v496 = vld [vmem:[%s494 + $0x8] sm:$0xff]
    %v497 = vld [vmem:[%s494 + $0x10] sm:$0xff]
    %v498 = vld [vmem:[%s494 + $0x18] sm:$0xff]
    %499 = vmatprep.subr.mxu0 0.0
    %500 = vmatpush1.msra.mxu0 %v495
    %501 = vmatprep.subr.mxu0 0.0
    %502 = vmatpush1.msra.mxu0 %v496
    %503 = vmatprep.subr.mxu0 0.0
    %504 = vmatpush1.msra.mxu0 %v497
    %505 = vmatprep.subr.mxu0 0.0
    %506 = vmatpush1.msra.mxu0 %v498
    %507 = vmatprep.subr.mxu0 0.0
    %508 = vmatpush1.msra.mxu0 0.0
    %509 = vmatprep.subr.mxu0 0.0
    %510 = vmatpush1.msra.mxu0 0.0
    %511 = vmatprep.subr.mxu0 0.0
    %512 = vmatpush1.msra.mxu0 0.0
    %513 = vmatprep.subr.mxu0 0.0
    %514 = vmatpush1.msra.mxu0 0.0
    %515 = vmatprep.subr.mxu0 0.0
    %516 = vmatpush1.msra.mxu0 0.0
    %517 = vmatprep.subr.mxu0 0.0
    %518 = vmatpush1.msra.mxu0 0.0
    %519 = vmatprep.subr.mxu0 0.0
    %520 = vmatpush1.msra.mxu0 0.0
    %521 = vmatprep.subr.mxu0 0.0
    %522 = vmatpush1.msra.mxu0 0.0
    %523 = vmatprep.subr.mxu0 0.0
    %524 = vmatpush1.msra.mxu0 0.0
    %525 = vmatprep.subr.mxu0 0.0
    %526 = vmatpush1.msra.mxu0 0.0
    %527 = vmatprep.subr.mxu0 0.0
    %528 = vmatpush1.msra.mxu0 0.0
    %529 = vmatprep.subr.mxu0 0.0
    %530 = vmatpush1.msra.mxu0 0.0
    %531 = vmatprep.subr.mxu0 0.0
    %532 = vmatpush1.msra.mxu0 0.0
    %533 = vmatprep.subr.mxu0 0.0
    %534 = vmatpush1.msra.mxu0 0.0
    %535 = vmatprep.subr.mxu0 0.0
    %536 = vmatpush1.msra.mxu0 0.0
    %537 = vmatprep.subr.mxu0 0.0
    %538 = vmatpush1.msra.mxu0 0.0
    %539 = vmatprep.subr.mxu0 0.0
    %540 = vmatpush1.msra.mxu0 0.0
    %541 = vmatprep.subr.mxu0 0.0
    %542 = vmatpush1.msra.mxu0 0.0
    %543 = vmatprep.subr.mxu0 0.0
    %544 = vmatpush1.msra.mxu0 0.0
    %545 = vmatprep.subr.mxu0 0.0
    %546 = vmatpush1.msra.mxu0 0.0
    %547 = vmatprep.subr.mxu0 0.0
    %548 = vmatpush1.msra.mxu0 0.0
    %549 = vmatprep.subr.mxu0 0.0
    %550 = vmatpush1.msra.mxu0 0.0
    %551 = vmatprep.subr.mxu0 0.0
    %552 = vmatpush1.msra.mxu0 0.0
    %553 = vmatprep.subr.mxu0 0.0
    %554 = vmatpush1.msra.mxu0 0.0
    %555 = vmatprep.subr.mxu0 0.0
    %556 = vmatpush1.msra.mxu0 0.0
    %557 = vmatprep.subr.mxu0 0.0
    %558 = vmatpush1.msra.mxu0 0.0
    %559 = vmatprep.subr.mxu0 0.0
    %560 = vmatpush1.msra.mxu0 0.0
    %561 = vmatprep.subr.mxu0 0.0
    %562 = vmatpush1.msra.mxu0 0.0
    %563 = vmatprep.mubr.f32.mxu0 0.0
    %564 = vmatmul.mubr.f32.gmra.mrb[0].mxu0 %v376
    %v565 = vpop.f32.mrb[0].mxu0
    %v566 = vadd.f32 0.0, %v565
    %v567 = vpop.f32.mrb[0].mxu0
    %568 = vmatprep.mubr.f32.mxu0 0.0
    %569 = vmatmul.mubr.f32.gmra.mrb[0].mxu0 %v379
    %v570 = vpop.f32.mrb[0].mxu0
    %v571 = vadd.f32 0.0, %v570
    %v572 = vpop.f32.mrb[0].mxu0
    %573 = vmatprep.mubr.f32.mxu0 0.0
    %574 = vmatmul.mubr.f32.gmra.mrb[0].mxu0 %v382
    %v575 = vpop.f32.mrb[0].mxu0
    %v576 = vadd.f32 0.0, %v575
    %v577 = vpop.f32.mrb[0].mxu0
    %578 = vmatprep.mubr.f32.mxu0 0.0
    %579 = vmatmul.mubr.f32.gmra.mrb[0].mxu0 %v385
    %v580 = vpop.f32.mrb[0].mxu0
    %v581 = vadd.f32 0.0, %v580
    %v582 = vpop.f32.mrb[0].mxu0
    %583 = vmatprep.mubr.f32.mxu0 0.0
    %584 = vmatmul.mubr.f32.gmra.mrb[0].mxu0 %v388
    %v585 = vpop.f32.mrb[0].mxu0
    %v586 = vadd.f32 0.0, %v585
    %v587 = vpop.f32.mrb[0].mxu0
    %588 = vmatprep.mubr.f32.mxu0 0.0
    %589 = vmatmul.mubr.f32.gmra.mrb[0].mxu0 %v391
    %v590 = vpop.f32.mrb[0].mxu0
    %v591 = vadd.f32 0.0, %v590
    %v592 = vpop.f32.mrb[0].mxu0
    %593 = vdwg.mxu0
    %594 = vst.msk [vmem:[#allocation3] sm:$0xff] %vm239, %v566
    %595 = vst.msk [vmem:[#allocation3 + $0x8] sm:$0xff] %vm239, %v571
    %596 = vst.msk [vmem:[#allocation3 + $0x10] sm:$0xff] %vm239, %v576
    %597 = vst.msk [vmem:[#allocation3 + $0x18] sm:$0xff] %vm239, %v581
    %598 = vst.msk [vmem:[#allocation3 + $0x20] sm:$0xff] %vm239, %v586
    %599 = vst.msk [vmem:[#allocation3 + $0x28] sm:$0xff] %vm239, %v591
    %s600 = scalar_lea.vmem %s6, 64
    %v601 = vld [vmem:[%s600] sm:$0xff]
    %v602 = vld [vmem:[%s600 + $0x8] sm:$0xff]
    %v603 = vld [vmem:[%s600 + $0x10] sm:$0xff]
    %v604 = vld [vmem:[%s600 + $0x18] sm:$0xff]
    %605 = vmatprep.subr.mxu0 0.0
    %606 = vmatpush1.msra.mxu0 %v601
    %607 = vmatprep.subr.mxu0 0.0
    %608 = vmatpush1.msra.mxu0 %v602
    %609 = vmatprep.subr.mxu0 0.0
    %610 = vmatpush1.msra.mxu0 %v603
    %611 = vmatprep.subr.mxu0 0.0
    %612 = vmatpush1.msra.mxu0 %v604
    %613 = vmatprep.subr.mxu0 0.0
    %614 = vmatpush1.msra.mxu0 0.0
    %615 = vmatprep.subr.mxu0 0.0
    %616 = vmatpush1.msra.mxu0 0.0
    %617 = vmatprep.subr.mxu0 0.0
    %618 = vmatpush1.msra.mxu0 0.0
    %619 = vmatprep.subr.mxu0 0.0
    %620 = vmatpush1.msra.mxu0 0.0
    %621 = vmatprep.subr.mxu0 0.0
    %622 = vmatpush1.msra.mxu0 0.0
    %623 = vmatprep.subr.mxu0 0.0
    %624 = vmatpush1.msra.mxu0 0.0
    %625 = vmatprep.subr.mxu0 0.0
    %626 = vmatpush1.msra.mxu0 0.0
    %627 = vmatprep.subr.mxu0 0.0
    %628 = vmatpush1.msra.mxu0 0.0
    %629 = vmatprep.subr.mxu0 0.0
    %630 = vmatpush1.msra.mxu0 0.0
    %631 = vmatprep.subr.mxu0 0.0
    %632 = vmatpush1.msra.mxu0 0.0
    %633 = vmatprep.subr.mxu0 0.0
    %634 = vmatpush1.msra.mxu0 0.0
    %635 = vmatprep.subr.mxu0 0.0
    %636 = vmatpush1.msra.mxu0 0.0
    %637 = vmatprep.subr.mxu0 0.0
    %638 = vmatpush1.msra.mxu0 0.0
    %639 = vmatprep.subr.mxu0 0.0
    %640 = vmatpush1.msra.mxu0 0.0
    %641 = vmatprep.subr.mxu0 0.0
    %642 = vmatpush1.msra.mxu0 0.0
    %643 = vmatprep.subr.mxu0 0.0
    %644 = vmatpush1.msra.mxu0 0.0
    %645 = vmatprep.subr.mxu0 0.0
    %646 = vmatpush1.msra.mxu0 0.0
    %647 = vmatprep.subr.mxu0 0.0
    %648 = vmatpush1.msra.mxu0 0.0
    %649 = vmatprep.subr.mxu0 0.0
    %650 = vmatpush1.msra.mxu0 0.0
    %651 = vmatprep.subr.mxu0 0.0
    %652 = vmatpush1.msra.mxu0 0.0
    %653 = vmatprep.subr.mxu0 0.0
    %654 = vmatpush1.msra.mxu0 0.0
    %655 = vmatprep.subr.mxu0 0.0
    %656 = vmatpush1.msra.mxu0 0.0
    %657 = vmatprep.subr.mxu0 0.0
    %658 = vmatpush1.msra.mxu0 0.0
    %659 = vmatprep.subr.mxu0 0.0
    %660 = vmatpush1.msra.mxu0 0.0
    %661 = vmatprep.subr.mxu0 0.0
    %662 = vmatpush1.msra.mxu0 0.0
    %663 = vmatprep.subr.mxu0 0.0
    %664 = vmatpush1.msra.mxu0 0.0
    %665 = vmatprep.subr.mxu0 0.0
    %666 = vmatpush1.msra.mxu0 0.0
    %667 = vmatprep.subr.mxu0 0.0
    %668 = vmatpush1.msra.mxu0 0.0
    %669 = vmatprep.mubr.f32.mxu0 0.0
    %670 = vmatmul.mubr.f32.gmra.mrb[0].mxu0 %v376
    %v671 = vpop.f32.mrb[0].mxu0
    %v672 = vadd.f32 0.0, %v671
    %v673 = vpop.f32.mrb[0].mxu0
    %674 = vmatprep.mubr.f32.mxu0 0.0
    %675 = vmatmul.mubr.f32.gmra.mrb[0].mxu0 %v379
    %v676 = vpop.f32.mrb[0].mxu0
    %v677 = vadd.f32 0.0, %v676
    %v678 = vpop.f32.mrb[0].mxu0
    %679 = vmatprep.mubr.f32.mxu0 0.0
    %680 = vmatmul.mubr.f32.gmra.mrb[0].mxu0 %v382
    %v681 = vpop.f32.mrb[0].mxu0
    %v682 = vadd.f32 0.0, %v681
    %v683 = vpop.f32.mrb[0].mxu0
    %684 = vmatprep.mubr.f32.mxu0 0.0
    %685 = vmatmul.mubr.f32.gmra.mrb[0].mxu0 %v385
    %v686 = vpop.f32.mrb[0].mxu0
    %v687 = vadd.f32 0.0, %v686
    %v688 = vpop.f32.mrb[0].mxu0
    %689 = vmatprep.mubr.f32.mxu0 0.0
    %690 = vmatmul.mubr.f32.gmra.mrb[0].mxu0 %v388
    %v691 = vpop.f32.mrb[0].mxu0
    %v692 = vadd.f32 0.0, %v691
    %v693 = vpop.f32.mrb[0].mxu0
    %694 = vmatprep.mubr.f32.mxu0 0.0
    %695 = vmatmul.mubr.f32.gmra.mrb[0].mxu0 %v391
    %v696 = vpop.f32.mrb[0].mxu0
    %v697 = vadd.f32 0.0, %v696
    %v698 = vpop.f32.mrb[0].mxu0
    %699 = vdwg.mxu0
    %700 = vst.msk [vmem:[#allocation4] sm:$0xff] %vm239, %v672
    %701 = vst.msk [vmem:[#allocation4 + $0x8] sm:$0xff] %vm239, %v677
    %702 = vst.msk [vmem:[#allocation4 + $0x10] sm:$0xff] %vm239, %v682
    %703 = vst.msk [vmem:[#allocation4 + $0x18] sm:$0xff] %vm239, %v687
    %704 = vst.msk [vmem:[#allocation4 + $0x20] sm:$0xff] %vm239, %v692
    %705 = vst.msk [vmem:[#allocation4 + $0x28] sm:$0xff] %vm239, %v697
    %s706 = scalar_lea.vmem %s6, 96
    %v707 = vld [vmem:[%s706] sm:$0xff]
    %v708 = vld [vmem:[%s706 + $0x8] sm:$0xff]
    %v709 = vld [vmem:[%s706 + $0x10] sm:$0xff]
    %v710 = vld [vmem:[%s706 + $0x18] sm:$0xff]
    %711 = vmatprep.subr.mxu0 0.0
    %712 = vmatpush1.msra.mxu0 %v707
    %713 = vmatprep.subr.mxu0 0.0
    %714 = vmatpush1.msra.mxu0 %v708
    %715 = vmatprep.subr.mxu0 0.0
    %716 = vmatpush1.msra.mxu0 %v709
    %717 = vmatprep.subr.mxu0 0.0
    %718 = vmatpush1.msra.mxu0 %v710
    %719 = vmatprep.subr.mxu0 0.0
    %720 = vmatpush1.msra.mxu0 0.0
    %721 = vmatprep.subr.mxu0 0.0
    %722 = vmatpush1.msra.mxu0 0.0
    %723 = vmatprep.subr.mxu0 0.0
    %724 = vmatpush1.msra.mxu0 0.0
    %725 = vmatprep.subr.mxu0 0.0
    %726 = vmatpush1.msra.mxu0 0.0
    %727 = vmatprep.subr.mxu0 0.0
    %728 = vmatpush1.msra.mxu0 0.0
    %729 = vmatprep.subr.mxu0 0.0
    %730 = vmatpush1.msra.mxu0 0.0
    %731 = vmatprep.subr.mxu0 0.0
    %732 = vmatpush1.msra.mxu0 0.0
    %733 = vmatprep.subr.mxu0 0.0
    %734 = vmatpush1.msra.mxu0 0.0
    %735 = vmatprep.subr.mxu0 0.0
    %736 = vmatpush1.msra.mxu0 0.0
    %737 = vmatprep.subr.mxu0 0.0
    %738 = vmatpush1.msra.mxu0 0.0
    %739 = vmatprep.subr.mxu0 0.0
    %740 = vmatpush1.msra.mxu0 0.0
    %741 = vmatprep.subr.mxu0 0.0
    %742 = vmatpush1.msra.mxu0 0.0
    %743 = vmatprep.subr.mxu0 0.0
    %744 = vmatpush1.msra.mxu0 0.0
    %745 = vmatprep.subr.mxu0 0.0
    %746 = vmatpush1.msra.mxu0 0.0
    %747 = vmatprep.subr.mxu0 0.0
    %748 = vmatpush1.msra.mxu0 0.0
    %749 = vmatprep.subr.mxu0 0.0
    %750 = vmatpush1.msra.mxu0 0.0
    %751 = vmatprep.subr.mxu0 0.0
    %752 = vmatpush1.msra.mxu0 0.0
    %753 = vmatprep.subr.mxu0 0.0
    %754 = vmatpush1.msra.mxu0 0.0
    %755 = vmatprep.subr.mxu0 0.0
    %756 = vmatpush1.msra.mxu0 0.0
    %757 = vmatprep.subr.mxu0 0.0
    %758 = vmatpush1.msra.mxu0 0.0
    %759 = vmatprep.subr.mxu0 0.0
    %760 = vmatpush1.msra.mxu0 0.0
    %761 = vmatprep.subr.mxu0 0.0
    %762 = vmatpush1.msra.mxu0 0.0
    %763 = vmatprep.subr.mxu0 0.0
    %764 = vmatpush1.msra.mxu0 0.0
    %765 = vmatprep.subr.mxu0 0.0
    %766 = vmatpush1.msra.mxu0 0.0
    %767 = vmatprep.subr.mxu0 0.0
    %768 = vmatpush1.msra.mxu0 0.0
    %769 = vmatprep.subr.mxu0 0.0
    %770 = vmatpush1.msra.mxu0 0.0
    %771 = vmatprep.subr.mxu0 0.0
    %772 = vmatpush1.msra.mxu0 0.0
    %773 = vmatprep.subr.mxu0 0.0
    %774 = vmatpush1.msra.mxu0 0.0
    %775 = vmatprep.mubr.f32.mxu0 0.0
    %776 = vmatmul.mubr.f32.gmra.mrb[0].mxu0 %v376
    %v777 = vpop.f32.mrb[0].mxu0
    %v778 = vadd.f32 0.0, %v777
    %v779 = vpop.f32.mrb[0].mxu0
    %780 = vmatprep.mubr.f32.mxu0 0.0
    %781 = vmatmul.mubr.f32.gmra.mrb[0].mxu0 %v379
    %v782 = vpop.f32.mrb[0].mxu0
    %v783 = vadd.f32 0.0, %v782
    %v784 = vpop.f32.mrb[0].mxu0
    %785 = vmatprep.mubr.f32.mxu0 0.0
    %786 = vmatmul.mubr.f32.gmra.mrb[0].mxu0 %v382
    %v787 = vpop.f32.mrb[0].mxu0
    %v788 = vadd.f32 0.0, %v787
    %v789 = vpop.f32.mrb[0].mxu0
    %790 = vmatprep.mubr.f32.mxu0 0.0
    %791 = vmatmul.mubr.f32.gmra.mrb[0].mxu0 %v385
    %v792 = vpop.f32.mrb[0].mxu0
    %v793 = vadd.f32 0.0, %v792
    %v794 = vpop.f32.mrb[0].mxu0
    %795 = vmatprep.mubr.f32.mxu0 0.0
    %796 = vmatmul.mubr.f32.gmra.mrb[0].mxu0 %v388
    %v797 = vpop.f32.mrb[0].mxu0
    %v798 = vadd.f32 0.0, %v797
    %v799 = vpop.f32.mrb[0].mxu0
    %800 = vmatprep.mubr.f32.mxu0 0.0
    %801 = vmatmul.mubr.f32.gmra.mrb[0].mxu0 %v391
    %v802 = vpop.f32.mrb[0].mxu0
    %v803 = vadd.f32 0.0, %v802
    %v804 = vpop.f32.mrb[0].mxu0
    %805 = vdwg.mxu0
    %806 = vst.msk [vmem:[#allocation5] sm:$0xff] %vm239, %v778
    %807 = vst.msk [vmem:[#allocation5 + $0x8] sm:$0xff] %vm239, %v783
    %808 = vst.msk [vmem:[#allocation5 + $0x10] sm:$0xff] %vm239, %v788
    %809 = vst.msk [vmem:[#allocation5 + $0x18] sm:$0xff] %vm239, %v793
    %810 = vst.msk [vmem:[#allocation5 + $0x20] sm:$0xff] %vm239, %v798
    %811 = vst.msk [vmem:[#allocation5 + $0x28] sm:$0xff] %vm239, %v803
    %v812 = vld [vmem:[#allocation9] sm:$0xff]
    %v813 = vld [vmem:[#allocation9 + $0x8] sm:$0xff]
    %v814 = vld [vmem:[#allocation9 + $0x10] sm:$0xff]
    %v815 = vld [vmem:[#allocation9 + $0x18] sm:$0xff]
    %s816 = scalar_lea.vmem [#allocation9], 32
    %v817 = vld [vmem:[%s816] sm:$0xff]
    %v818 = vld [vmem:[%s816 + $0x8] sm:$0xff]
    %v819 = vld [vmem:[%s816 + $0x10] sm:$0xff]
    %v820 = vld [vmem:[%s816 + $0x18] sm:$0xff]
    %s821 = scalar_lea.vmem [#allocation9], 64
    %v822 = vld [vmem:[%s821] sm:$0xff]
    %v823 = vld [vmem:[%s821 + $0x8] sm:$0xff]
    %v824 = vld [vmem:[%s821 + $0x10] sm:$0xff]
    %v825 = vld [vmem:[%s821 + $0x18] sm:$0xff]
    %s826 = scalar_lea.vmem [#allocation9], 96
    %v827 = vld [vmem:[%s826] sm:$0xff]
    %v828 = vld [vmem:[%s826 + $0x8] sm:$0xff]
    %v829 = vld [vmem:[%s826 + $0x10] sm:$0xff]
    %v830 = vld [vmem:[%s826 + $0x18] sm:$0xff]
    %v831 = vld [vmem:[%s8] sm:$0x1]
    %s832 = scalar_lea.vmem %s8, 1
    %v833 = vld [vmem:[%s832] sm:$0x1]
    %s834 = scalar_lea.vmem %s8, 2
    %v835 = vld [vmem:[%s834] sm:$0x1]
    %s836 = scalar_lea.vmem %s8, 3
    %v837 = vld [vmem:[%s836] sm:$0x1]
    %v838 = vld [vmem:[#allocation2] sm:$0xff]
    %v839 = vld [vmem:[#allocation3] sm:$0xff]
    %v840 = vld [vmem:[#allocation4] sm:$0xff]
    %v841 = vld [vmem:[#allocation5] sm:$0xff]
    %v843 = vsel %vm239, 0.0, 0
    %845 = vmatprep.subr.mxu0 0.0
    %846 = vmatpush1.msra.mxu0 %v812
    %847 = vmatprep.subr.mxu0 0.0
    %848 = vmatpush1.msra.mxu0 %v813
    %849 = vmatprep.subr.mxu0 0.0
    %850 = vmatpush1.msra.mxu0 %v814
    %851 = vmatprep.subr.mxu0 0.0
    %852 = vmatpush1.msra.mxu0 %v815
    %853 = vmatprep.subr.mxu0 0.0
    %854 = vmatpush1.msra.mxu0 0.0
    %855 = vmatprep.subr.mxu0 0.0
    %856 = vmatpush1.msra.mxu0 0.0
    %857 = vmatprep.subr.mxu0 0.0
    %858 = vmatpush1.msra.mxu0 0.0
    %859 = vmatprep.subr.mxu0 0.0
    %860 = vmatpush1.msra.mxu0 0.0
    %861 = vmatprep.subr.mxu0 0.0
    %862 = vmatpush1.msra.mxu0 0.0
    %863 = vmatprep.subr.mxu0 0.0
    %864 = vmatpush1.msra.mxu0 0.0
    %865 = vmatprep.subr.mxu0 0.0
    %866 = vmatpush1.msra.mxu0 0.0
    %867 = vmatprep.subr.mxu0 0.0
    %868 = vmatpush1.msra.mxu0 0.0
    %869 = vmatprep.subr.mxu0 0.0
    %870 = vmatpush1.msra.mxu0 0.0
    %871 = vmatprep.subr.mxu0 0.0
    %872 = vmatpush1.msra.mxu0 0.0
    %873 = vmatprep.subr.mxu0 0.0
    %874 = vmatpush1.msra.mxu0 0.0
    %875 = vmatprep.subr.mxu0 0.0
    %876 = vmatpush1.msra.mxu0 0.0
    %877 = vmatprep.subr.mxu0 0.0
    %878 = vmatpush1.msra.mxu0 0.0
    %879 = vmatprep.subr.mxu0 0.0
    %880 = vmatpush1.msra.mxu0 0.0
    %881 = vmatprep.subr.mxu0 0.0
    %882 = vmatpush1.msra.mxu0 0.0
    %883 = vmatprep.subr.mxu0 0.0
    %884 = vmatpush1.msra.mxu0 0.0
    %885 = vmatprep.subr.mxu0 0.0
    %886 = vmatpush1.msra.mxu0 0.0
    %887 = vmatprep.subr.mxu0 0.0
    %888 = vmatpush1.msra.mxu0 0.0
    %889 = vmatprep.subr.mxu0 0.0
    %890 = vmatpush1.msra.mxu0 0.0
    %891 = vmatprep.subr.mxu0 0.0
    %892 = vmatpush1.msra.mxu0 0.0
    %893 = vmatprep.subr.mxu0 0.0
    %894 = vmatpush1.msra.mxu0 0.0
    %895 = vmatprep.subr.mxu0 0.0
    %896 = vmatpush1.msra.mxu0 0.0
    %897 = vmatprep.subr.mxu0 0.0
    %898 = vmatpush1.msra.mxu0 0.0
    %899 = vmatprep.subr.mxu0 0.0
    %900 = vmatpush1.msra.mxu0 0.0
    %901 = vmatprep.subr.mxu0 0.0
    %902 = vmatpush1.msra.mxu0 0.0
    %903 = vmatprep.subr.mxu0 0.0
    %904 = vmatpush1.msra.mxu0 0.0
    %905 = vmatprep.subr.mxu0 0.0
    %906 = vmatpush1.msra.mxu0 0.0
    %907 = vmatprep.subr.mxu0 0.0
    %908 = vmatpush1.msra.mxu0 0.0
    %909 = vmatprep.mubr.f32.mxu0 0.0
    %910 = vmatmul.mubr.f32.gmra.mrb[0].mxu0 %v843
    %v911 = vpop.f32.mrb[0].mxu0
    %v912 = vadd.f32 0.0, %v911
    %v913 = vpop.f32.mrb[0].mxu0
    %914 = vdwg.mxu0
    %v915 = vadd.f32 %v838, %v912
    %v917 = vlaneseq
    %v918 = vshrl.u32 %v917, 7
    %v919 = vsub.s32 0, %v918
    %v920 = vrot.slane %v831, %v919
    %v922 = vadd.f32 %v915, %v920
    %v923 = vmul.f32 %v922, 0.5
    %v924 = vtanh.pop %v923
    %v925 = vmul.f32 %v924, 0.5
    %v926 = vadd.f32 %v925, 0.5
    %927 = vmatprep.subr.mxu0 0.0
    %928 = vmatpush1.msra.mxu0 %v817
    %929 = vmatprep.subr.mxu0 0.0
    %930 = vmatpush1.msra.mxu0 %v818
    %931 = vmatprep.subr.mxu0 0.0
    %932 = vmatpush1.msra.mxu0 %v819
    %933 = vmatprep.subr.mxu0 0.0
    %934 = vmatpush1.msra.mxu0 %v820
    %935 = vmatprep.subr.mxu0 0.0
    %936 = vmatpush1.msra.mxu0 0.0
    %937 = vmatprep.subr.mxu0 0.0
    %938 = vmatpush1.msra.mxu0 0.0
    %939 = vmatprep.subr.mxu0 0.0
    %940 = vmatpush1.msra.mxu0 0.0
    %941 = vmatprep.subr.mxu0 0.0
    %942 = vmatpush1.msra.mxu0 0.0
    %943 = vmatprep.subr.mxu0 0.0
    %944 = vmatpush1.msra.mxu0 0.0
    %945 = vmatprep.subr.mxu0 0.0
    %946 = vmatpush1.msra.mxu0 0.0
    %947 = vmatprep.subr.mxu0 0.0
    %948 = vmatpush1.msra.mxu0 0.0
    %949 = vmatprep.subr.mxu0 0.0
    %950 = vmatpush1.msra.mxu0 0.0
    %951 = vmatprep.subr.mxu0 0.0
    %952 = vmatpush1.msra.mxu0 0.0
    %953 = vmatprep.subr.mxu0 0.0
    %954 = vmatpush1.msra.mxu0 0.0
    %955 = vmatprep.subr.mxu0 0.0
    %956 = vmatpush1.msra.mxu0 0.0
    %957 = vmatprep.subr.mxu0 0.0
    %958 = vmatpush1.msra.mxu0 0.0
    %959 = vmatprep.subr.mxu0 0.0
    %960 = vmatpush1.msra.mxu0 0.0
    %961 = vmatprep.subr.mxu0 0.0
    %962 = vmatpush1.msra.mxu0 0.0
    %963 = vmatprep.subr.mxu0 0.0
    %964 = vmatpush1.msra.mxu0 0.0
    %965 = vmatprep.subr.mxu0 0.0
    %966 = vmatpush1.msra.mxu0 0.0
    %967 = vmatprep.subr.mxu0 0.0
    %968 = vmatpush1.msra.mxu0 0.0
    %969 = vmatprep.subr.mxu0 0.0
    %970 = vmatpush1.msra.mxu0 0.0
    %971 = vmatprep.subr.mxu0 0.0
    %972 = vmatpush1.msra.mxu0 0.0
    %973 = vmatprep.subr.mxu0 0.0
    %974 = vmatpush1.msra.mxu0 0.0
    %975 = vmatprep.subr.mxu0 0.0
    %976 = vmatpush1.msra.mxu0 0.0
    %977 = vmatprep.subr.mxu0 0.0
    %978 = vmatpush1.msra.mxu0 0.0
    %979 = vmatprep.subr.mxu0 0.0
    %980 = vmatpush1.msra.mxu0 0.0
    %981 = vmatprep.subr.mxu0 0.0
    %982 = vmatpush1.msra.mxu0 0.0
    %983 = vmatprep.subr.mxu0 0.0
    %984 = vmatpush1.msra.mxu0 0.0
    %985 = vmatprep.subr.mxu0 0.0
    %986 = vmatpush1.msra.mxu0 0.0
    %987 = vmatprep.subr.mxu0 0.0
    %988 = vmatpush1.msra.mxu0 0.0
    %989 = vmatprep.subr.mxu0 0.0
    %990 = vmatpush1.msra.mxu0 0.0
    %991 = vmatprep.mubr.f32.mxu0 0.0
    %992 = vmatmul.mubr.f32.gmra.mrb[0].mxu0 %v843
    %v993 = vpop.f32.mrb[0].mxu0
    %v994 = vadd.f32 0.0, %v993
    %v995 = vpop.f32.mrb[0].mxu0
    %996 = vdwg.mxu0
    %v997 = vadd.f32 %v839, %v994
    %v999 = vlaneseq
    %v1000 = vshrl.u32 %v999, 7
    %v1001 = vsub.s32 0, %v1000
    %v1002 = vrot.slane %v833, %v1001
    %v1004 = vadd.f32 %v997, %v1002
    %v1005 = vmul.f32 %v1004, 0.5
    %v1006 = vtanh.pop %v1005
    %v1007 = vmul.f32 %v1006, 0.5
    %v1008 = vadd.f32 %v1007, 0.5
    %1009 = vmatprep.subr.mxu0 0.0
    %1010 = vmatpush1.msra.mxu0 %v822
    %1011 = vmatprep.subr.mxu0 0.0
    %1012 = vmatpush1.msra.mxu0 %v823
    %1013 = vmatprep.subr.mxu0 0.0
    %1014 = vmatpush1.msra.mxu0 %v824
    %1015 = vmatprep.subr.mxu0 0.0
    %1016 = vmatpush1.msra.mxu0 %v825
    %1017 = vmatprep.subr.mxu0 0.0
    %1018 = vmatpush1.msra.mxu0 0.0
    %1019 = vmatprep.subr.mxu0 0.0
    %1020 = vmatpush1.msra.mxu0 0.0
    %1021 = vmatprep.subr.mxu0 0.0
    %1022 = vmatpush1.msra.mxu0 0.0
    %1023 = vmatprep.subr.mxu0 0.0
    %1024 = vmatpush1.msra.mxu0 0.0
    %1025 = vmatprep.subr.mxu0 0.0
    %1026 = vmatpush1.msra.mxu0 0.0
    %1027 = vmatprep.subr.mxu0 0.0
    %1028 = vmatpush1.msra.mxu0 0.0
    %1029 = vmatprep.subr.mxu0 0.0
    %1030 = vmatpush1.msra.mxu0 0.0
    %1031 = vmatprep.subr.mxu0 0.0
    %1032 = vmatpush1.msra.mxu0 0.0
    %1033 = vmatprep.subr.mxu0 0.0
    %1034 = vmatpush1.msra.mxu0 0.0
    %1035 = vmatprep.subr.mxu0 0.0
    %1036 = vmatpush1.msra.mxu0 0.0
    %1037 = vmatprep.subr.mxu0 0.0
    %1038 = vmatpush1.msra.mxu0 0.0
    %1039 = vmatprep.subr.mxu0 0.0
    %1040 = vmatpush1.msra.mxu0 0.0
    %1041 = vmatprep.subr.mxu0 0.0
    %1042 = vmatpush1.msra.mxu0 0.0
    %1043 = vmatprep.subr.mxu0 0.0
    %1044 = vmatpush1.msra.mxu0 0.0
    %1045 = vmatprep.subr.mxu0 0.0
    %1046 = vmatpush1.msra.mxu0 0.0
    %1047 = vmatprep.subr.mxu0 0.0
    %1048 = vmatpush1.msra.mxu0 0.0
    %1049 = vmatprep.subr.mxu0 0.0
    %1050 = vmatpush1.msra.mxu0 0.0
    %1051 = vmatprep.subr.mxu0 0.0
    %1052 = vmatpush1.msra.mxu0 0.0
    %1053 = vmatprep.subr.mxu0 0.0
    %1054 = vmatpush1.msra.mxu0 0.0
    %1055 = vmatprep.subr.mxu0 0.0
    %1056 = vmatpush1.msra.mxu0 0.0
    %1057 = vmatprep.subr.mxu0 0.0
    %1058 = vmatpush1.msra.mxu0 0.0
    %1059 = vmatprep.subr.mxu0 0.0
    %1060 = vmatpush1.msra.mxu0 0.0
    %1061 = vmatprep.subr.mxu0 0.0
    %1062 = vmatpush1.msra.mxu0 0.0
    %1063 = vmatprep.subr.mxu0 0.0
    %1064 = vmatpush1.msra.mxu0 0.0
    %1065 = vmatprep.subr.mxu0 0.0
    %1066 = vmatpush1.msra.mxu0 0.0
    %1067 = vmatprep.subr.mxu0 0.0
    %1068 = vmatpush1.msra.mxu0 0.0
    %1069 = vmatprep.subr.mxu0 0.0
    %1070 = vmatpush1.msra.mxu0 0.0
    %1071 = vmatprep.subr.mxu0 0.0
    %1072 = vmatpush1.msra.mxu0 0.0
    %1073 = vmatprep.mubr.f32.mxu0 0.0
    %1074 = vmatmul.mubr.f32.gmra.mrb[0].mxu0 %v843
    %v1075 = vpop.f32.mrb[0].mxu0
    %v1076 = vadd.f32 0.0, %v1075
    %v1077 = vpop.f32.mrb[0].mxu0
    %1078 = vdwg.mxu0
    %v1079 = vadd.f32 %v840, %v1076
    %v1081 = vlaneseq
    %v1082 = vshrl.u32 %v1081, 7
    %v1083 = vsub.s32 0, %v1082
    %v1084 = vrot.slane %v835, %v1083
    %v1086 = vadd.f32 %v1079, %v1084
    %v1087 = vtanh.pop %v1086
    %1088 = vmatprep.subr.mxu0 0.0
    %1089 = vmatpush1.msra.mxu0 %v827
    %1090 = vmatprep.subr.mxu0 0.0
    %1091 = vmatpush1.msra.mxu0 %v828
    %1092 = vmatprep.subr.mxu0 0.0
    %1093 = vmatpush1.msra.mxu0 %v829
    %1094 = vmatprep.subr.mxu0 0.0
    %1095 = vmatpush1.msra.mxu0 %v830
    %1096 = vmatprep.subr.mxu0 0.0
    %1097 = vmatpush1.msra.mxu0 0.0
    %1098 = vmatprep.subr.mxu0 0.0
    %1099 = vmatpush1.msra.mxu0 0.0
    %1100 = vmatprep.subr.mxu0 0.0
    %1101 = vmatpush1.msra.mxu0 0.0
    %1102 = vmatprep.subr.mxu0 0.0
    %1103 = vmatpush1.msra.mxu0 0.0
    %1104 = vmatprep.subr.mxu0 0.0
    %1105 = vmatpush1.msra.mxu0 0.0
    %1106 = vmatprep.subr.mxu0 0.0
    %1107 = vmatpush1.msra.mxu0 0.0
    %1108 = vmatprep.subr.mxu0 0.0
    %1109 = vmatpush1.msra.mxu0 0.0
    %1110 = vmatprep.subr.mxu0 0.0
    %1111 = vmatpush1.msra.mxu0 0.0
    %1112 = vmatprep.subr.mxu0 0.0
    %1113 = vmatpush1.msra.mxu0 0.0
    %1114 = vmatprep.subr.mxu0 0.0
    %1115 = vmatpush1.msra.mxu0 0.0
    %1116 = vmatprep.subr.mxu0 0.0
    %1117 = vmatpush1.msra.mxu0 0.0
    %1118 = vmatprep.subr.mxu0 0.0
    %1119 = vmatpush1.msra.mxu0 0.0
    %1120 = vmatprep.subr.mxu0 0.0
    %1121 = vmatpush1.msra.mxu0 0.0
    %1122 = vmatprep.subr.mxu0 0.0
    %1123 = vmatpush1.msra.mxu0 0.0
    %1124 = vmatprep.subr.mxu0 0.0
    %1125 = vmatpush1.msra.mxu0 0.0
    %1126 = vmatprep.subr.mxu0 0.0
    %1127 = vmatpush1.msra.mxu0 0.0
    %1128 = vmatprep.subr.mxu0 0.0
    %1129 = vmatpush1.msra.mxu0 0.0
    %1130 = vmatprep.subr.mxu0 0.0
    %1131 = vmatpush1.msra.mxu0 0.0
    %1132 = vmatprep.subr.mxu0 0.0
    %1133 = vmatpush1.msra.mxu0 0.0
    %1134 = vmatprep.subr.mxu0 0.0
    %1135 = vmatpush1.msra.mxu0 0.0
    %1136 = vmatprep.subr.mxu0 0.0
    %1137 = vmatpush1.msra.mxu0 0.0
    %1138 = vmatprep.subr.mxu0 0.0
    %1139 = vmatpush1.msra.mxu0 0.0
    %1140 = vmatprep.subr.mxu0 0.0
    %1141 = vmatpush1.msra.mxu0 0.0
    %1142 = vmatprep.subr.mxu0 0.0
    %1143 = vmatpush1.msra.mxu0 0.0
    %1144 = vmatprep.subr.mxu0 0.0
    %1145 = vmatpush1.msra.mxu0 0.0
    %1146 = vmatprep.subr.mxu0 0.0
    %1147 = vmatpush1.msra.mxu0 0.0
    %1148 = vmatprep.subr.mxu0 0.0
    %1149 = vmatpush1.msra.mxu0 0.0
    %1150 = vmatprep.subr.mxu0 0.0
    %1151 = vmatpush1.msra.mxu0 0.0
    %1152 = vmatprep.mubr.f32.mxu0 0.0
    %1153 = vmatmul.mubr.f32.gmra.mrb[0].mxu0 %v843
    %v1154 = vpop.f32.mrb[0].mxu0
    %v1155 = vadd.f32 0.0, %v1154
    %v1156 = vpop.f32.mrb[0].mxu0
    %1157 = vdwg.mxu0
    %v1158 = vadd.f32 %v841, %v1155
    %v1160 = vlaneseq
    %v1161 = vshrl.u32 %v1160, 7
    %v1162 = vsub.s32 0, %v1161
    %v1163 = vrot.slane %v837, %v1162
    %v1165 = vadd.f32 %v1158, %v1163
    %v1166 = vmul.f32 %v1165, 0.5
    %v1167 = vtanh.pop %v1166
    %v1168 = vmul.f32 %v1167, 0.5
    %v1169 = vadd.f32 %v1168, 0.5
    %v1170 = vmul.f32 %v1008, 0.0
    %v1171 = vmul.f32 %v926, %v1087
    %v1172 = vadd.f32 %v1170, %v1171
    %v1173 = vtanh.pop %v1172
    %v1174 = vmul.f32 %v1169, %v1173
    %s1175 = scalar_lea.vmem [#allocation2], 8
    %v1176 = vld [vmem:[%s1175] sm:$0xff]
    %s1177 = scalar_lea.vmem [#allocation3], 8
    %v1178 = vld [vmem:[%s1177] sm:$0xff]
    %s1179 = scalar_lea.vmem [#allocation4], 8
    %v1180 = vld [vmem:[%s1179] sm:$0xff]
    %s1181 = scalar_lea.vmem [#allocation5], 8
    %v1182 = vld [vmem:[%s1181] sm:$0xff]
    %v1184 = vsel %vm239, %v1174, 0
    %1186 = vmatprep.subr.mxu0 0.0
    %1187 = vmatpush1.msra.mxu0 %v812
    %1188 = vmatprep.subr.mxu0 0.0
    %1189 = vmatpush1.msra.mxu0 %v813
    %1190 = vmatprep.subr.mxu0 0.0
    %1191 = vmatpush1.msra.mxu0 %v814
    %1192 = vmatprep.subr.mxu0 0.0
    %1193 = vmatpush1.msra.mxu0 %v815
    %1194 = vmatprep.subr.mxu0 0.0
    %1195 = vmatpush1.msra.mxu0 0.0
    %1196 = vmatprep.subr.mxu0 0.0
    %1197 = vmatpush1.msra.mxu0 0.0
    %1198 = vmatprep.subr.mxu0 0.0
    %1199 = vmatpush1.msra.mxu0 0.0
    %1200 = vmatprep.subr.mxu0 0.0
    %1201 = vmatpush1.msra.mxu0 0.0
    %1202 = vmatprep.subr.mxu0 0.0
    %1203 = vmatpush1.msra.mxu0 0.0
    %1204 = vmatprep.subr.mxu0 0.0
    %1205 = vmatpush1.msra.mxu0 0.0
    %1206 = vmatprep.subr.mxu0 0.0
    %1207 = vmatpush1.msra.mxu0 0.0
    %1208 = vmatprep.subr.mxu0 0.0
    %1209 = vmatpush1.msra.mxu0 0.0
    %1210 = vmatprep.subr.mxu0 0.0
    %1211 = vmatpush1.msra.mxu0 0.0
    %1212 = vmatprep.subr.mxu0 0.0
    %1213 = vmatpush1.msra.mxu0 0.0
    %1214 = vmatprep.subr.mxu0 0.0
    %1215 = vmatpush1.msra.mxu0 0.0
    %1216 = vmatprep.subr.mxu0 0.0
    %1217 = vmatpush1.msra.mxu0 0.0
    %1218 = vmatprep.subr.mxu0 0.0
    %1219 = vmatpush1.msra.mxu0 0.0
    %1220 = vmatprep.subr.mxu0 0.0
    %1221 = vmatpush1.msra.mxu0 0.0
    %1222 = vmatprep.subr.mxu0 0.0
    %1223 = vmatpush1.msra.mxu0 0.0
    %1224 = vmatprep.subr.mxu0 0.0
    %1225 = vmatpush1.msra.mxu0 0.0
    %1226 = vmatprep.subr.mxu0 0.0
    %1227 = vmatpush1.msra.mxu0 0.0
    %1228 = vmatprep.subr.mxu0 0.0
    %1229 = vmatpush1.msra.mxu0 0.0
    %1230 = vmatprep.subr.mxu0 0.0
    %1231 = vmatpush1.msra.mxu0 0.0
    %1232 = vmatprep.subr.mxu0 0.0
    %1233 = vmatpush1.msra.mxu0 0.0
    %1234 = vmatprep.subr.mxu0 0.0
    %1235 = vmatpush1.msra.mxu0 0.0
    %1236 = vmatprep.subr.mxu0 0.0
    %1237 = vmatpush1.msra.mxu0 0.0
    %1238 = vmatprep.subr.mxu0 0.0
    %1239 = vmatpush1.msra.mxu0 0.0
    %1240 = vmatprep.subr.mxu0 0.0
    %1241 = vmatpush1.msra.mxu0 0.0
    %1242 = vmatprep.subr.mxu0 0.0
    %1243 = vmatpush1.msra.mxu0 0.0
    %1244 = vmatprep.subr.mxu0 0.0
    %1245 = vmatpush1.msra.mxu0 0.0
    %1246 = vmatprep.subr.mxu0 0.0
    %1247 = vmatpush1.msra.mxu0 0.0
    %1248 = vmatprep.subr.mxu0 0.0
    %1249 = vmatpush1.msra.mxu0 0.0
    %1250 = vmatprep.mubr.f32.mxu0 0.0
    %1251 = vmatmul.mubr.f32.gmra.mrb[0].mxu0 %v1184
    %v1252 = vpop.f32.mrb[0].mxu0
    %v1253 = vadd.f32 0.0, %v1252
    %v1254 = vpop.f32.mrb[0].mxu0
    %1255 = vdwg.mxu0
    %v1256 = vadd.f32 %v1176, %v1253
    %v1257 = vadd.f32 %v1256, %v920
    %v1258 = vmul.f32 %v1257, 0.5
    %v1259 = vtanh.pop %v1258
    %v1260 = vmul.f32 %v1259, 0.5
    %v1261 = vadd.f32 %v1260, 0.5
    %1262 = vmatprep.subr.mxu0 0.0
    %1263 = vmatpush1.msra.mxu0 %v817
    %1264 = vmatprep.subr.mxu0 0.0
    %1265 = vmatpush1.msra.mxu0 %v818
    %1266 = vmatprep.subr.mxu0 0.0
    %1267 = vmatpush1.msra.mxu0 %v819
    %1268 = vmatprep.subr.mxu0 0.0
    %1269 = vmatpush1.msra.mxu0 %v820
    %1270 = vmatprep.subr.mxu0 0.0
    %1271 = vmatpush1.msra.mxu0 0.0
    %1272 = vmatprep.subr.mxu0 0.0
    %1273 = vmatpush1.msra.mxu0 0.0
    %1274 = vmatprep.subr.mxu0 0.0
    %1275 = vmatpush1.msra.mxu0 0.0
    %1276 = vmatprep.subr.mxu0 0.0
    %1277 = vmatpush1.msra.mxu0 0.0
    %1278 = vmatprep.subr.mxu0 0.0
    %1279 = vmatpush1.msra.mxu0 0.0
    %1280 = vmatprep.subr.mxu0 0.0
    %1281 = vmatpush1.msra.mxu0 0.0
    %1282 = vmatprep.subr.mxu0 0.0
    %1283 = vmatpush1.msra.mxu0 0.0
    %1284 = vmatprep.subr.mxu0 0.0
    %1285 = vmatpush1.msra.mxu0 0.0
    %1286 = vmatprep.subr.mxu0 0.0
    %1287 = vmatpush1.msra.mxu0 0.0
    %1288 = vmatprep.subr.mxu0 0.0
    %1289 = vmatpush1.msra.mxu0 0.0
    %1290 = vmatprep.subr.mxu0 0.0
    %1291 = vmatpush1.msra.mxu0 0.0
    %1292 = vmatprep.subr.mxu0 0.0
    %1293 = vmatpush1.msra.mxu0 0.0
    %1294 = vmatprep.subr.mxu0 0.0
    %1295 = vmatpush1.msra.mxu0 0.0
    %1296 = vmatprep.subr.mxu0 0.0
    %1297 = vmatpush1.msra.mxu0 0.0
    %1298 = vmatprep.subr.mxu0 0.0
    %1299 = vmatpush1.msra.mxu0 0.0
    %1300 = vmatprep.subr.mxu0 0.0
    %1301 = vmatpush1.msra.mxu0 0.0
    %1302 = vmatprep.subr.mxu0 0.0
    %1303 = vmatpush1.msra.mxu0 0.0
    %1304 = vmatprep.subr.mxu0 0.0
    %1305 = vmatpush1.msra.mxu0 0.0
    %1306 = vmatprep.subr.mxu0 0.0
    %1307 = vmatpush1.msra.mxu0 0.0
    %1308 = vmatprep.subr.mxu0 0.0
    %1309 = vmatpush1.msra.mxu0 0.0
    %1310 = vmatprep.subr.mxu0 0.0
    %1311 = vmatpush1.msra.mxu0 0.0
    %1312 = vmatprep.subr.mxu0 0.0
    %1313 = vmatpush1.msra.mxu0 0.0
    %1314 = vmatprep.subr.mxu0 0.0
    %1315 = vmatpush1.msra.mxu0 0.0
    %1316 = vmatprep.subr.mxu0 0.0
    %1317 = vmatpush1.msra.mxu0 0.0
    %1318 = vmatprep.subr.mxu0 0.0
    %1319 = vmatpush1.msra.mxu0 0.0
    %1320 = vmatprep.subr.mxu0 0.0
    %1321 = vmatpush1.msra.mxu0 0.0
    %1322 = vmatprep.subr.mxu0 0.0
    %1323 = vmatpush1.msra.mxu0 0.0
    %1324 = vmatprep.subr.mxu0 0.0
    %1325 = vmatpush1.msra.mxu0 0.0
    %1326 = vmatprep.mubr.f32.mxu0 0.0
    %1327 = vmatmul.mubr.f32.gmra.mrb[0].mxu0 %v1184
    %v1328 = vpop.f32.mrb[0].mxu0
    %v1329 = vadd.f32 0.0, %v1328
    %v1330 = vpop.f32.mrb[0].mxu0
    %1331 = vdwg.mxu0
    %v1332 = vadd.f32 %v1178, %v1329
    %v1333 = vadd.f32 %v1332, %v1002
    %v1334 = vmul.f32 %v1333, 0.5
    %v1335 = vtanh.pop %v1334
    %v1336 = vmul.f32 %v1335, 0.5
    %v1337 = vadd.f32 %v1336, 0.5
    %1338 = vmatprep.subr.mxu0 0.0
    %1339 = vmatpush1.msra.mxu0 %v822
    %1340 = vmatprep.subr.mxu0 0.0
    %1341 = vmatpush1.msra.mxu0 %v823
    %1342 = vmatprep.subr.mxu0 0.0
    %1343 = vmatpush1.msra.mxu0 %v824
    %1344 = vmatprep.subr.mxu0 0.0
    %1345 = vmatpush1.msra.mxu0 %v825
    %1346 = vmatprep.subr.mxu0 0.0
    %1347 = vmatpush1.msra.mxu0 0.0
    %1348 = vmatprep.subr.mxu0 0.0
    %1349 = vmatpush1.msra.mxu0 0.0
    %1350 = vmatprep.subr.mxu0 0.0
    %1351 = vmatpush1.msra.mxu0 0.0
    %1352 = vmatprep.subr.mxu0 0.0
    %1353 = vmatpush1.msra.mxu0 0.0
    %1354 = vmatprep.subr.mxu0 0.0
    %1355 = vmatpush1.msra.mxu0 0.0
    %1356 = vmatprep.subr.mxu0 0.0
    %1357 = vmatpush1.msra.mxu0 0.0
    %1358 = vmatprep.subr.mxu0 0.0
    %1359 = vmatpush1.msra.mxu0 0.0
    %1360 = vmatprep.subr.mxu0 0.0
    %1361 = vmatpush1.msra.mxu0 0.0
    %1362 = vmatprep.subr.mxu0 0.0
    %1363 = vmatpush1.msra.mxu0 0.0
    %1364 = vmatprep.subr.mxu0 0.0
    %1365 = vmatpush1.msra.mxu0 0.0
    %1366 = vmatprep.subr.mxu0 0.0
    %1367 = vmatpush1.msra.mxu0 0.0
    %1368 = vmatprep.subr.mxu0 0.0
    %1369 = vmatpush1.msra.mxu0 0.0
    %1370 = vmatprep.subr.mxu0 0.0
    %1371 = vmatpush1.msra.mxu0 0.0
    %1372 = vmatprep.subr.mxu0 0.0
    %1373 = vmatpush1.msra.mxu0 0.0
    %1374 = vmatprep.subr.mxu0 0.0
    %1375 = vmatpush1.msra.mxu0 0.0
    %1376 = vmatprep.subr.mxu0 0.0
    %1377 = vmatpush1.msra.mxu0 0.0
    %1378 = vmatprep.subr.mxu0 0.0
    %1379 = vmatpush1.msra.mxu0 0.0
    %1380 = vmatprep.subr.mxu0 0.0
    %1381 = vmatpush1.msra.mxu0 0.0
    %1382 = vmatprep.subr.mxu0 0.0
    %1383 = vmatpush1.msra.mxu0 0.0
    %1384 = vmatprep.subr.mxu0 0.0
    %1385 = vmatpush1.msra.mxu0 0.0
    %1386 = vmatprep.subr.mxu0 0.0
    %1387 = vmatpush1.msra.mxu0 0.0
    %1388 = vmatprep.subr.mxu0 0.0
    %1389 = vmatpush1.msra.mxu0 0.0
    %1390 = vmatprep.subr.mxu0 0.0
    %1391 = vmatpush1.msra.mxu0 0.0
    %1392 = vmatprep.subr.mxu0 0.0
    %1393 = vmatpush1.msra.mxu0 0.0
    %1394 = vmatprep.subr.mxu0 0.0
    %1395 = vmatpush1.msra.mxu0 0.0
    %1396 = vmatprep.subr.mxu0 0.0
    %1397 = vmatpush1.msra.mxu0 0.0
    %1398 = vmatprep.subr.mxu0 0.0
    %1399 = vmatpush1.msra.mxu0 0.0
    %1400 = vmatprep.subr.mxu0 0.0
    %1401 = vmatpush1.msra.mxu0 0.0
    %1402 = vmatprep.mubr.f32.mxu0 0.0
    %1403 = vmatmul.mubr.f32.gmra.mrb[0].mxu0 %v1184
    %v1404 = vpop.f32.mrb[0].mxu0
    %v1405 = vadd.f32 0.0, %v1404
    %v1406 = vpop.f32.mrb[0].mxu0
    %1407 = vdwg.mxu0
    %v1408 = vadd.f32 %v1180, %v1405
    %v1409 = vadd.f32 %v1408, %v1084
    %v1410 = vtanh.pop %v1409
    %1411 = vmatprep.subr.mxu0 0.0
    %1412 = vmatpush1.msra.mxu0 %v827
    %1413 = vmatprep.subr.mxu0 0.0
    %1414 = vmatpush1.msra.mxu0 %v828
    %1415 = vmatprep.subr.mxu0 0.0
    %1416 = vmatpush1.msra.mxu0 %v829
    %1417 = vmatprep.subr.mxu0 0.0
    %1418 = vmatpush1.msra.mxu0 %v830
    %1419 = vmatprep.subr.mxu0 0.0
    %1420 = vmatpush1.msra.mxu0 0.0
    %1421 = vmatprep.subr.mxu0 0.0
    %1422 = vmatpush1.msra.mxu0 0.0
    %1423 = vmatprep.subr.mxu0 0.0
    %1424 = vmatpush1.msra.mxu0 0.0
    %1425 = vmatprep.subr.mxu0 0.0
    %1426 = vmatpush1.msra.mxu0 0.0
    %1427 = vmatprep.subr.mxu0 0.0
    %1428 = vmatpush1.msra.mxu0 0.0
    %1429 = vmatprep.subr.mxu0 0.0
    %1430 = vmatpush1.msra.mxu0 0.0
    %1431 = vmatprep.subr.mxu0 0.0
    %1432 = vmatpush1.msra.mxu0 0.0
    %1433 = vmatprep.subr.mxu0 0.0
    %1434 = vmatpush1.msra.mxu0 0.0
    %1435 = vmatprep.subr.mxu0 0.0
    %1436 = vmatpush1.msra.mxu0 0.0
    %1437 = vmatprep.subr.mxu0 0.0
    %1438 = vmatpush1.msra.mxu0 0.0
    %1439 = vmatprep.subr.mxu0 0.0
    %1440 = vmatpush1.msra.mxu0 0.0
    %1441 = vmatprep.subr.mxu0 0.0
    %1442 = vmatpush1.msra.mxu0 0.0
    %1443 = vmatprep.subr.mxu0 0.0
    %1444 = vmatpush1.msra.mxu0 0.0
    %1445 = vmatprep.subr.mxu0 0.0
    %1446 = vmatpush1.msra.mxu0 0.0
    %1447 = vmatprep.subr.mxu0 0.0
    %1448 = vmatpush1.msra.mxu0 0.0
    %1449 = vmatprep.subr.mxu0 0.0
    %1450 = vmatpush1.msra.mxu0 0.0
    %1451 = vmatprep.subr.mxu0 0.0
    %1452 = vmatpush1.msra.mxu0 0.0
    %1453 = vmatprep.subr.mxu0 0.0
    %1454 = vmatpush1.msra.mxu0 0.0
    %1455 = vmatprep.subr.mxu0 0.0
    %1456 = vmatpush1.msra.mxu0 0.0
    %1457 = vmatprep.subr.mxu0 0.0
    %1458 = vmatpush1.msra.mxu0 0.0
    %1459 = vmatprep.subr.mxu0 0.0
    %1460 = vmatpush1.msra.mxu0 0.0
    %1461 = vmatprep.subr.mxu0 0.0
    %1462 = vmatpush1.msra.mxu0 0.0
    %1463 = vmatprep.subr.mxu0 0.0
    %1464 = vmatpush1.msra.mxu0 0.0
    %1465 = vmatprep.subr.mxu0 0.0
    %1466 = vmatpush1.msra.mxu0 0.0
    %1467 = vmatprep.subr.mxu0 0.0
    %1468 = vmatpush1.msra.mxu0 0.0
    %1469 = vmatprep.subr.mxu0 0.0
    %1470 = vmatpush1.msra.mxu0 0.0
    %1471 = vmatprep.subr.mxu0 0.0
    %1472 = vmatpush1.msra.mxu0 0.0
    %1473 = vmatprep.subr.mxu0 0.0
    %1474 = vmatpush1.msra.mxu0 0.0
    %1475 = vmatprep.mubr.f32.mxu0 0.0
    %1476 = vmatmul.mubr.f32.gmra.mrb[0].mxu0 %v1184
    %v1477 = vpop.f32.mrb[0].mxu0
    %v1478 = vadd.f32 0.0, %v1477
    %v1479 = vpop.f32.mrb[0].mxu0
    %1480 = vdwg.mxu0
    %v1481 = vadd.f32 %v1182, %v1478
    %v1482 = vadd.f32 %v1481, %v1163
    %v1483 = vmul.f32 %v1482, 0.5
    %v1484 = vtanh.pop %v1483
    %v1485 = vmul.f32 %v1484, 0.5
    %v1486 = vadd.f32 %v1485, 0.5
    %v1487 = vmul.f32 %v1337, %v1172
    %v1488 = vmul.f32 %v1261, %v1410
    %v1489 = vadd.f32 %v1487, %v1488
    %v1490 = vtanh.pop %v1489
    %v1491 = vmul.f32 %v1486, %v1490
    %s1492 = scalar_lea.vmem [#allocation2], 16
    %v1493 = vld [vmem:[%s1492] sm:$0xff]
    %s1494 = scalar_lea.vmem [#allocation3], 16
    %v1495 = vld [vmem:[%s1494] sm:$0xff]
    %s1496 = scalar_lea.vmem [#allocation4], 16
    %v1497 = vld [vmem:[%s1496] sm:$0xff]
    %s1498 = scalar_lea.vmem [#allocation5], 16
    %v1499 = vld [vmem:[%s1498] sm:$0xff]
    %v1501 = vsel %vm239, %v1491, 0
    %1503 = vmatprep.subr.mxu0 0.0
    %1504 = vmatpush1.msra.mxu0 %v812
    %1505 = vmatprep.subr.mxu0 0.0
    %1506 = vmatpush1.msra.mxu0 %v813
    %1507 = vmatprep.subr.mxu0 0.0
    %1508 = vmatpush1.msra.mxu0 %v814
    %1509 = vmatprep.subr.mxu0 0.0
    %1510 = vmatpush1.msra.mxu0 %v815
    %1511 = vmatprep.subr.mxu0 0.0
    %1512 = vmatpush1.msra.mxu0 0.0
    %1513 = vmatprep.subr.mxu0 0.0
    %1514 = vmatpush1.msra.mxu0 0.0
    %1515 = vmatprep.subr.mxu0 0.0
    %1516 = vmatpush1.msra.mxu0 0.0
    %1517 = vmatprep.subr.mxu0 0.0
    %1518 = vmatpush1.msra.mxu0 0.0
    %1519 = vmatprep.subr.mxu0 0.0
    %1520 = vmatpush1.msra.mxu0 0.0
    %1521 = vmatprep.subr.mxu0 0.0
    %1522 = vmatpush1.msra.mxu0 0.0
    %1523 = vmatprep.subr.mxu0 0.0
    %1524 = vmatpush1.msra.mxu0 0.0
    %1525 = vmatprep.subr.mxu0 0.0
    %1526 = vmatpush1.msra.mxu0 0.0
    %1527 = vmatprep.subr.mxu0 0.0
    %1528 = vmatpush1.msra.mxu0 0.0
    %1529 = vmatprep.subr.mxu0 0.0
    %1530 = vmatpush1.msra.mxu0 0.0
    %1531 = vmatprep.subr.mxu0 0.0
    %1532 = vmatpush1.msra.mxu0 0.0
    %1533 = vmatprep.subr.mxu0 0.0
    %1534 = vmatpush1.msra.mxu0 0.0
    %1535 = vmatprep.subr.mxu0 0.0
    %1536 = vmatpush1.msra.mxu0 0.0
    %1537 = vmatprep.subr.mxu0 0.0
    %1538 = vmatpush1.msra.mxu0 0.0
    %1539 = vmatprep.subr.mxu0 0.0
    %1540 = vmatpush1.msra.mxu0 0.0
    %1541 = vmatprep.subr.mxu0 0.0
    %1542 = vmatpush1.msra.mxu0 0.0
    %1543 = vmatprep.subr.mxu0 0.0
    %1544 = vmatpush1.msra.mxu0 0.0
    %1545 = vmatprep.subr.mxu0 0.0
    %1546 = vmatpush1.msra.mxu0 0.0
    %1547 = vmatprep.subr.mxu0 0.0
    %1548 = vmatpush1.msra.mxu0 0.0
    %1549 = vmatprep.subr.mxu0 0.0
    %1550 = vmatpush1.msra.mxu0 0.0
    %1551 = vmatprep.subr.mxu0 0.0
    %1552 = vmatpush1.msra.mxu0 0.0
    %1553 = vmatprep.subr.mxu0 0.0
    %1554 = vmatpush1.msra.mxu0 0.0
    %1555 = vmatprep.subr.mxu0 0.0
    %1556 = vmatpush1.msra.mxu0 0.0
    %1557 = vmatprep.subr.mxu0 0.0
    %1558 = vmatpush1.msra.mxu0 0.0
    %1559 = vmatprep.subr.mxu0 0.0
    %1560 = vmatpush1.msra.mxu0 0.0
    %1561 = vmatprep.subr.mxu0 0.0
    %1562 = vmatpush1.msra.mxu0 0.0
    %1563 = vmatprep.subr.mxu0 0.0
    %1564 = vmatpush1.msra.mxu0 0.0
    %1565 = vmatprep.subr.mxu0 0.0
    %1566 = vmatpush1.msra.mxu0 0.0
    %1567 = vmatprep.mubr.f32.mxu0 0.0
    %1568 = vmatmul.mubr.f32.gmra.mrb[0].mxu0 %v1501
    %v1569 = vpop.f32.mrb[0].mxu0
    %v1570 = vadd.f32 0.0, %v1569
    %v1571 = vpop.f32.mrb[0].mxu0
    %1572 = vdwg.mxu0
    %v1573 = vadd.f32 %v1493, %v1570
    %v1574 = vadd.f32 %v1573, %v920
    %v1575 = vmul.f32 %v1574, 0.5
    %v1576 = vtanh.pop %v1575
    %v1577 = vmul.f32 %v1576, 0.5
    %v1578 = vadd.f32 %v1577, 0.5
    %1579 = vmatprep.subr.mxu0 0.0
    %1580 = vmatpush1.msra.mxu0 %v817
    %1581 = vmatprep.subr.mxu0 0.0
    %1582 = vmatpush1.msra.mxu0 %v818
    %1583 = vmatprep.subr.mxu0 0.0
    %1584 = vmatpush1.msra.mxu0 %v819
    %1585 = vmatprep.subr.mxu0 0.0
    %1586 = vmatpush1.msra.mxu0 %v820
    %1587 = vmatprep.subr.mxu0 0.0
    %1588 = vmatpush1.msra.mxu0 0.0
    %1589 = vmatprep.subr.mxu0 0.0
    %1590 = vmatpush1.msra.mxu0 0.0
    %1591 = vmatprep.subr.mxu0 0.0
    %1592 = vmatpush1.msra.mxu0 0.0
    %1593 = vmatprep.subr.mxu0 0.0
    %1594 = vmatpush1.msra.mxu0 0.0
    %1595 = vmatprep.subr.mxu0 0.0
    %1596 = vmatpush1.msra.mxu0 0.0
    %1597 = vmatprep.subr.mxu0 0.0
    %1598 = vmatpush1.msra.mxu0 0.0
    %1599 = vmatprep.subr.mxu0 0.0
    %1600 = vmatpush1.msra.mxu0 0.0
    %1601 = vmatprep.subr.mxu0 0.0
    %1602 = vmatpush1.msra.mxu0 0.0
    %1603 = vmatprep.subr.mxu0 0.0
    %1604 = vmatpush1.msra.mxu0 0.0
    %1605 = vmatprep.subr.mxu0 0.0
    %1606 = vmatpush1.msra.mxu0 0.0
    %1607 = vmatprep.subr.mxu0 0.0
    %1608 = vmatpush1.msra.mxu0 0.0
    %1609 = vmatprep.subr.mxu0 0.0
    %1610 = vmatpush1.msra.mxu0 0.0
    %1611 = vmatprep.subr.mxu0 0.0
    %1612 = vmatpush1.msra.mxu0 0.0
    %1613 = vmatprep.subr.mxu0 0.0
    %1614 = vmatpush1.msra.mxu0 0.0
    %1615 = vmatprep.subr.mxu0 0.0
    %1616 = vmatpush1.msra.mxu0 0.0
    %1617 = vmatprep.subr.mxu0 0.0
    %1618 = vmatpush1.msra.mxu0 0.0
    %1619 = vmatprep.subr.mxu0 0.0
    %1620 = vmatpush1.msra.mxu0 0.0
    %1621 = vmatprep.subr.mxu0 0.0
    %1622 = vmatpush1.msra.mxu0 0.0
    %1623 = vmatprep.subr.mxu0 0.0
    %1624 = vmatpush1.msra.mxu0 0.0
    %1625 = vmatprep.subr.mxu0 0.0
    %1626 = vmatpush1.msra.mxu0 0.0
    %1627 = vmatprep.subr.mxu0 0.0
    %1628 = vmatpush1.msra.mxu0 0.0
    %1629 = vmatprep.subr.mxu0 0.0
    %1630 = vmatpush1.msra.mxu0 0.0
    %1631 = vmatprep.subr.mxu0 0.0
    %1632 = vmatpush1.msra.mxu0 0.0
    %1633 = vmatprep.subr.mxu0 0.0
    %1634 = vmatpush1.msra.mxu0 0.0
    %1635 = vmatprep.subr.mxu0 0.0
    %1636 = vmatpush1.msra.mxu0 0.0
    %1637 = vmatprep.subr.mxu0 0.0
    %1638 = vmatpush1.msra.mxu0 0.0
    %1639 = vmatprep.subr.mxu0 0.0
    %1640 = vmatpush1.msra.mxu0 0.0
    %1641 = vmatprep.subr.mxu0 0.0
    %1642 = vmatpush1.msra.mxu0 0.0
    %1643 = vmatprep.mubr.f32.mxu0 0.0
    %1644 = vmatmul.mubr.f32.gmra.mrb[0].mxu0 %v1501
    %v1645 = vpop.f32.mrb[0].mxu0
    %v1646 = vadd.f32 0.0, %v1645
    %v1647 = vpop.f32.mrb[0].mxu0
    %1648 = vdwg.mxu0
    %v1649 = vadd.f32 %v1495, %v1646
    %v1650 = vadd.f32 %v1649, %v1002
    %v1651 = vmul.f32 %v1650, 0.5
    %v1652 = vtanh.pop %v1651
    %v1653 = vmul.f32 %v1652, 0.5
    %v1654 = vadd.f32 %v1653, 0.5
    %1655 = vmatprep.subr.mxu0 0.0
    %1656 = vmatpush1.msra.mxu0 %v822
    %1657 = vmatprep.subr.mxu0 0.0
    %1658 = vmatpush1.msra.mxu0 %v823
    %1659 = vmatprep.subr.mxu0 0.0
    %1660 = vmatpush1.msra.mxu0 %v824
    %1661 = vmatprep.subr.mxu0 0.0
    %1662 = vmatpush1.msra.mxu0 %v825
    %1663 = vmatprep.subr.mxu0 0.0
    %1664 = vmatpush1.msra.mxu0 0.0
    %1665 = vmatprep.subr.mxu0 0.0
    %1666 = vmatpush1.msra.mxu0 0.0
    %1667 = vmatprep.subr.mxu0 0.0
    %1668 = vmatpush1.msra.mxu0 0.0
    %1669 = vmatprep.subr.mxu0 0.0
    %1670 = vmatpush1.msra.mxu0 0.0
    %1671 = vmatprep.subr.mxu0 0.0
    %1672 = vmatpush1.msra.mxu0 0.0
    %1673 = vmatprep.subr.mxu0 0.0
    %1674 = vmatpush1.msra.mxu0 0.0
    %1675 = vmatprep.subr.mxu0 0.0
    %1676 = vmatpush1.msra.mxu0 0.0
    %1677 = vmatprep.subr.mxu0 0.0
    %1678 = vmatpush1.msra.mxu0 0.0
    %1679 = vmatprep.subr.mxu0 0.0
    %1680 = vmatpush1.msra.mxu0 0.0
    %1681 = vmatprep.subr.mxu0 0.0
    %1682 = vmatpush1.msra.mxu0 0.0
    %1683 = vmatprep.subr.mxu0 0.0
    %1684 = vmatpush1.msra.mxu0 0.0
    %1685 = vmatprep.subr.mxu0 0.0
    %1686 = vmatpush1.msra.mxu0 0.0
    %1687 = vmatprep.subr.mxu0 0.0
    %1688 = vmatpush1.msra.mxu0 0.0
    %1689 = vmatprep.subr.mxu0 0.0
    %1690 = vmatpush1.msra.mxu0 0.0
    %1691 = vmatprep.subr.mxu0 0.0
    %1692 = vmatpush1.msra.mxu0 0.0
    %1693 = vmatprep.subr.mxu0 0.0
    %1694 = vmatpush1.msra.mxu0 0.0
    %1695 = vmatprep.subr.mxu0 0.0
    %1696 = vmatpush1.msra.mxu0 0.0
    %1697 = vmatprep.subr.mxu0 0.0
    %1698 = vmatpush1.msra.mxu0 0.0
    %1699 = vmatprep.subr.mxu0 0.0
    %1700 = vmatpush1.msra.mxu0 0.0
    %1701 = vmatprep.subr.mxu0 0.0
    %1702 = vmatpush1.msra.mxu0 0.0
    %1703 = vmatprep.subr.mxu0 0.0
    %1704 = vmatpush1.msra.mxu0 0.0
    %1705 = vmatprep.subr.mxu0 0.0
    %1706 = vmatpush1.msra.mxu0 0.0
    %1707 = vmatprep.subr.mxu0 0.0
    %1708 = vmatpush1.msra.mxu0 0.0
    %1709 = vmatprep.subr.mxu0 0.0
    %1710 = vmatpush1.msra.mxu0 0.0
    %1711 = vmatprep.subr.mxu0 0.0
    %1712 = vmatpush1.msra.mxu0 0.0
    %1713 = vmatprep.subr.mxu0 0.0
    %1714 = vmatpush1.msra.mxu0 0.0
    %1715 = vmatprep.subr.mxu0 0.0
    %1716 = vmatpush1.msra.mxu0 0.0
    %1717 = vmatprep.subr.mxu0 0.0
    %1718 = vmatpush1.msra.mxu0 0.0
    %1719 = vmatprep.mubr.f32.mxu0 0.0
    %1720 = vmatmul.mubr.f32.gmra.mrb[0].mxu0 %v1501
    %v1721 = vpop.f32.mrb[0].mxu0
    %v1722 = vadd.f32 0.0, %v1721
    %v1723 = vpop.f32.mrb[0].mxu0
    %1724 = vdwg.mxu0
    %v1725 = vadd.f32 %v1497, %v1722
    %v1726 = vadd.f32 %v1725, %v1084
    %v1727 = vtanh.pop %v1726
    %1728 = vmatprep.subr.mxu0 0.0
    %1729 = vmatpush1.msra.mxu0 %v827
    %1730 = vmatprep.subr.mxu0 0.0
    %1731 = vmatpush1.msra.mxu0 %v828
    %1732 = vmatprep.subr.mxu0 0.0
    %1733 = vmatpush1.msra.mxu0 %v829
    %1734 = vmatprep.subr.mxu0 0.0
    %1735 = vmatpush1.msra.mxu0 %v830
    %1736 = vmatprep.subr.mxu0 0.0
    %1737 = vmatpush1.msra.mxu0 0.0
    %1738 = vmatprep.subr.mxu0 0.0
    %1739 = vmatpush1.msra.mxu0 0.0
    %1740 = vmatprep.subr.mxu0 0.0
    %1741 = vmatpush1.msra.mxu0 0.0
    %1742 = vmatprep.subr.mxu0 0.0
    %1743 = vmatpush1.msra.mxu0 0.0
    %1744 = vmatprep.subr.mxu0 0.0
    %1745 = vmatpush1.msra.mxu0 0.0
    %1746 = vmatprep.subr.mxu0 0.0
    %1747 = vmatpush1.msra.mxu0 0.0
    %1748 = vmatprep.subr.mxu0 0.0
    %1749 = vmatpush1.msra.mxu0 0.0
    %1750 = vmatprep.subr.mxu0 0.0
    %1751 = vmatpush1.msra.mxu0 0.0
    %1752 = vmatprep.subr.mxu0 0.0
    %1753 = vmatpush1.msra.mxu0 0.0
    %1754 = vmatprep.subr.mxu0 0.0
    %1755 = vmatpush1.msra.mxu0 0.0
    %1756 = vmatprep.subr.mxu0 0.0
    %1757 = vmatpush1.msra.mxu0 0.0
    %1758 = vmatprep.subr.mxu0 0.0
    %1759 = vmatpush1.msra.mxu0 0.0
    %1760 = vmatprep.subr.mxu0 0.0
    %1761 = vmatpush1.msra.mxu0 0.0
    %1762 = vmatprep.subr.mxu0 0.0
    %1763 = vmatpush1.msra.mxu0 0.0
    %1764 = vmatprep.subr.mxu0 0.0
    %1765 = vmatpush1.msra.mxu0 0.0
    %1766 = vmatprep.subr.mxu0 0.0
    %1767 = vmatpush1.msra.mxu0 0.0
    %1768 = vmatprep.subr.mxu0 0.0
    %1769 = vmatpush1.msra.mxu0 0.0
    %1770 = vmatprep.subr.mxu0 0.0
    %1771 = vmatpush1.msra.mxu0 0.0
    %1772 = vmatprep.subr.mxu0 0.0
    %1773 = vmatpush1.msra.mxu0 0.0
    %1774 = vmatprep.subr.mxu0 0.0
    %1775 = vmatpush1.msra.mxu0 0.0
    %1776 = vmatprep.subr.mxu0 0.0
    %1777 = vmatpush1.msra.mxu0 0.0
    %1778 = vmatprep.subr.mxu0 0.0
    %1779 = vmatpush1.msra.mxu0 0.0
    %1780 = vmatprep.subr.mxu0 0.0
    %1781 = vmatpush1.msra.mxu0 0.0
    %1782 = vmatprep.subr.mxu0 0.0
    %1783 = vmatpush1.msra.mxu0 0.0
    %1784 = vmatprep.subr.mxu0 0.0
    %1785 = vmatpush1.msra.mxu0 0.0
    %1786 = vmatprep.subr.mxu0 0.0
    %1787 = vmatpush1.msra.mxu0 0.0
    %1788 = vmatprep.subr.mxu0 0.0
    %1789 = vmatpush1.msra.mxu0 0.0
    %1790 = vmatprep.subr.mxu0 0.0
    %1791 = vmatpush1.msra.mxu0 0.0
    %1792 = vmatprep.mubr.f32.mxu0 0.0
    %1793 = vmatmul.mubr.f32.gmra.mrb[0].mxu0 %v1501
    %v1794 = vpop.f32.mrb[0].mxu0
    %v1795 = vadd.f32 0.0, %v1794
    %v1796 = vpop.f32.mrb[0].mxu0
    %1797 = vdwg.mxu0
    %v1798 = vadd.f32 %v1499, %v1795
    %v1799 = vadd.f32 %v1798, %v1163
    %v1800 = vmul.f32 %v1799, 0.5
    %v1801 = vtanh.pop %v1800
    %v1802 = vmul.f32 %v1801, 0.5
    %v1803 = vadd.f32 %v1802, 0.5
    %v1804 = vmul.f32 %v1654, %v1489
    %v1805 = vmul.f32 %v1578, %v1727
    %v1806 = vadd.f32 %v1804, %v1805
    %v1807 = vtanh.pop %v1806
    %v1808 = vmul.f32 %v1803, %v1807
    %s1809 = scalar_lea.vmem [#allocation2], 24
    %v1810 = vld [vmem:[%s1809] sm:$0xff]
    %s1811 = scalar_lea.vmem [#allocation3], 24
    %v1812 = vld [vmem:[%s1811] sm:$0xff]
    %s1813 = scalar_lea.vmem [#allocation4], 24
    %v1814 = vld [vmem:[%s1813] sm:$0xff]
    %s1815 = scalar_lea.vmem [#allocation5], 24
    %v1816 = vld [vmem:[%s1815] sm:$0xff]
    %v1818 = vsel %vm239, %v1808, 0
    %1820 = vmatprep.subr.mxu0 0.0
    %1821 = vmatpush1.msra.mxu0 %v812
    %1822 = vmatprep.subr.mxu0 0.0
    %1823 = vmatpush1.msra.mxu0 %v813
    %1824 = vmatprep.subr.mxu0 0.0
    %1825 = vmatpush1.msra.mxu0 %v814
    %1826 = vmatprep.subr.mxu0 0.0
    %1827 = vmatpush1.msra.mxu0 %v815
    %1828 = vmatprep.subr.mxu0 0.0
    %1829 = vmatpush1.msra.mxu0 0.0
    %1830 = vmatprep.subr.mxu0 0.0
    %1831 = vmatpush1.msra.mxu0 0.0
    %1832 = vmatprep.subr.mxu0 0.0
    %1833 = vmatpush1.msra.mxu0 0.0
    %1834 = vmatprep.subr.mxu0 0.0
    %1835 = vmatpush1.msra.mxu0 0.0
    %1836 = vmatprep.subr.mxu0 0.0
    %1837 = vmatpush1.msra.mxu0 0.0
    %1838 = vmatprep.subr.mxu0 0.0
    %1839 = vmatpush1.msra.mxu0 0.0
    %1840 = vmatprep.subr.mxu0 0.0
    %1841 = vmatpush1.msra.mxu0 0.0
    %1842 = vmatprep.subr.mxu0 0.0
    %1843 = vmatpush1.msra.mxu0 0.0
    %1844 = vmatprep.subr.mxu0 0.0
    %1845 = vmatpush1.msra.mxu0 0.0
    %1846 = vmatprep.subr.mxu0 0.0
    %1847 = vmatpush1.msra.mxu0 0.0
    %1848 = vmatprep.subr.mxu0 0.0
    %1849 = vmatpush1.msra.mxu0 0.0
    %1850 = vmatprep.subr.mxu0 0.0
    %1851 = vmatpush1.msra.mxu0 0.0
    %1852 = vmatprep.subr.mxu0 0.0
    %1853 = vmatpush1.msra.mxu0 0.0
    %1854 = vmatprep.subr.mxu0 0.0
    %1855 = vmatpush1.msra.mxu0 0.0
    %1856 = vmatprep.subr.mxu0 0.0
    %1857 = vmatpush1.msra.mxu0 0.0
    %1858 = vmatprep.subr.mxu0 0.0
    %1859 = vmatpush1.msra.mxu0 0.0
    %1860 = vmatprep.subr.mxu0 0.0
    %1861 = vmatpush1.msra.mxu0 0.0
    %1862 = vmatprep.subr.mxu0 0.0
    %1863 = vmatpush1.msra.mxu0 0.0
    %1864 = vmatprep.subr.mxu0 0.0
    %1865 = vmatpush1.msra.mxu0 0.0
    %1866 = vmatprep.subr.mxu0 0.0
    %1867 = vmatpush1.msra.mxu0 0.0
    %1868 = vmatprep.subr.mxu0 0.0
    %1869 = vmatpush1.msra.mxu0 0.0
    %1870 = vmatprep.subr.mxu0 0.0
    %1871 = vmatpush1.msra.mxu0 0.0
    %1872 = vmatprep.subr.mxu0 0.0
    %1873 = vmatpush1.msra.mxu0 0.0
    %1874 = vmatprep.subr.mxu0 0.0
    %1875 = vmatpush1.msra.mxu0 0.0
    %1876 = vmatprep.subr.mxu0 0.0
    %1877 = vmatpush1.msra.mxu0 0.0
    %1878 = vmatprep.subr.mxu0 0.0
    %1879 = vmatpush1.msra.mxu0 0.0
    %1880 = vmatprep.subr.mxu0 0.0
    %1881 = vmatpush1.msra.mxu0 0.0
    %1882 = vmatprep.subr.mxu0 0.0
    %1883 = vmatpush1.msra.mxu0 0.0
    %1884 = vmatprep.mubr.f32.mxu0 0.0
    %1885 = vmatmul.mubr.f32.gmra.mrb[0].mxu0 %v1818
    %v1886 = vpop.f32.mrb[0].mxu0
    %v1887 = vadd.f32 0.0, %v1886
    %v1888 = vpop.f32.mrb[0].mxu0
    %1889 = vdwg.mxu0
    %v1890 = vadd.f32 %v1810, %v1887
    %v1891 = vadd.f32 %v1890, %v920
    %v1892 = vmul.f32 %v1891, 0.5
    %v1893 = vtanh.pop %v1892
    %v1894 = vmul.f32 %v1893, 0.5
    %v1895 = vadd.f32 %v1894, 0.5
    %1896 = vmatprep.subr.mxu0 0.0
    %1897 = vmatpush1.msra.mxu0 %v817
    %1898 = vmatprep.subr.mxu0 0.0
    %1899 = vmatpush1.msra.mxu0 %v818
    %1900 = vmatprep.subr.mxu0 0.0
    %1901 = vmatpush1.msra.mxu0 %v819
    %1902 = vmatprep.subr.mxu0 0.0
    %1903 = vmatpush1.msra.mxu0 %v820
    %1904 = vmatprep.subr.mxu0 0.0
    %1905 = vmatpush1.msra.mxu0 0.0
    %1906 = vmatprep.subr.mxu0 0.0
    %1907 = vmatpush1.msra.mxu0 0.0
    %1908 = vmatprep.subr.mxu0 0.0
    %1909 = vmatpush1.msra.mxu0 0.0
    %1910 = vmatprep.subr.mxu0 0.0
    %1911 = vmatpush1.msra.mxu0 0.0
    %1912 = vmatprep.subr.mxu0 0.0
    %1913 = vmatpush1.msra.mxu0 0.0
    %1914 = vmatprep.subr.mxu0 0.0
    %1915 = vmatpush1.msra.mxu0 0.0
    %1916 = vmatprep.subr.mxu0 0.0
    %1917 = vmatpush1.msra.mxu0 0.0
    %1918 = vmatprep.subr.mxu0 0.0
    %1919 = vmatpush1.msra.mxu0 0.0
    %1920 = vmatprep.subr.mxu0 0.0
    %1921 = vmatpush1.msra.mxu0 0.0
    %1922 = vmatprep.subr.mxu0 0.0
    %1923 = vmatpush1.msra.mxu0 0.0
    %1924 = vmatprep.subr.mxu0 0.0
    %1925 = vmatpush1.msra.mxu0 0.0
    %1926 = vmatprep.subr.mxu0 0.0
    %1927 = vmatpush1.msra.mxu0 0.0
    %1928 = vmatprep.subr.mxu0 0.0
    %1929 = vmatpush1.msra.mxu0 0.0
    %1930 = vmatprep.subr.mxu0 0.0
    %1931 = vmatpush1.msra.mxu0 0.0
    %1932 = vmatprep.subr.mxu0 0.0
    %1933 = vmatpush1.msra.mxu0 0.0
    %1934 = vmatprep.subr.mxu0 0.0
    %1935 = vmatpush1.msra.mxu0 0.0
    %1936 = vmatprep.subr.mxu0 0.0
    %1937 = vmatpush1.msra.mxu0 0.0
    %1938 = vmatprep.subr.mxu0 0.0
    %1939 = vmatpush1.msra.mxu0 0.0
    %1940 = vmatprep.subr.mxu0 0.0
    %1941 = vmatpush1.msra.mxu0 0.0
    %1942 = vmatprep.subr.mxu0 0.0
    %1943 = vmatpush1.msra.mxu0 0.0
    %1944 = vmatprep.subr.mxu0 0.0
    %1945 = vmatpush1.msra.mxu0 0.0
    %1946 = vmatprep.subr.mxu0 0.0
    %1947 = vmatpush1.msra.mxu0 0.0
    %1948 = vmatprep.subr.mxu0 0.0
    %1949 = vmatpush1.msra.mxu0 0.0
    %1950 = vmatprep.subr.mxu0 0.0
    %1951 = vmatpush1.msra.mxu0 0.0
    %1952 = vmatprep.subr.mxu0 0.0
    %1953 = vmatpush1.msra.mxu0 0.0
    %1954 = vmatprep.subr.mxu0 0.0
    %1955 = vmatpush1.msra.mxu0 0.0
    %1956 = vmatprep.subr.mxu0 0.0
    %1957 = vmatpush1.msra.mxu0 0.0
    %1958 = vmatprep.subr.mxu0 0.0
    %1959 = vmatpush1.msra.mxu0 0.0
    %1960 = vmatprep.mubr.f32.mxu0 0.0
    %1961 = vmatmul.mubr.f32.gmra.mrb[0].mxu0 %v1818
    %v1962 = vpop.f32.mrb[0].mxu0
    %v1963 = vadd.f32 0.0, %v1962
    %v1964 = vpop.f32.mrb[0].mxu0
    %1965 = vdwg.mxu0
    %v1966 = vadd.f32 %v1812, %v1963
    %v1967 = vadd.f32 %v1966, %v1002
    %v1968 = vmul.f32 %v1967, 0.5
    %v1969 = vtanh.pop %v1968
    %v1970 = vmul.f32 %v1969, 0.5
    %v1971 = vadd.f32 %v1970, 0.5
    %1972 = vmatprep.subr.mxu0 0.0
    %1973 = vmatpush1.msra.mxu0 %v822
    %1974 = vmatprep.subr.mxu0 0.0
    %1975 = vmatpush1.msra.mxu0 %v823
    %1976 = vmatprep.subr.mxu0 0.0
    %1977 = vmatpush1.msra.mxu0 %v824
    %1978 = vmatprep.subr.mxu0 0.0
    %1979 = vmatpush1.msra.mxu0 %v825
    %1980 = vmatprep.subr.mxu0 0.0
    %1981 = vmatpush1.msra.mxu0 0.0
    %1982 = vmatprep.subr.mxu0 0.0
    %1983 = vmatpush1.msra.mxu0 0.0
    %1984 = vmatprep.subr.mxu0 0.0
    %1985 = vmatpush1.msra.mxu0 0.0
    %1986 = vmatprep.subr.mxu0 0.0
    %1987 = vmatpush1.msra.mxu0 0.0
    %1988 = vmatprep.subr.mxu0 0.0
    %1989 = vmatpush1.msra.mxu0 0.0
    %1990 = vmatprep.subr.mxu0 0.0
    %1991 = vmatpush1.msra.mxu0 0.0
    %1992 = vmatprep.subr.mxu0 0.0
    %1993 = vmatpush1.msra.mxu0 0.0
    %1994 = vmatprep.subr.mxu0 0.0
    %1995 = vmatpush1.msra.mxu0 0.0
    %1996 = vmatprep.subr.mxu0 0.0
    %1997 = vmatpush1.msra.mxu0 0.0
    %1998 = vmatprep.subr.mxu0 0.0
    %1999 = vmatpush1.msra.mxu0 0.0
    %2000 = vmatprep.subr.mxu0 0.0
    %2001 = vmatpush1.msra.mxu0 0.0
    %2002 = vmatprep.subr.mxu0 0.0
    %2003 = vmatpush1.msra.mxu0 0.0
    %2004 = vmatprep.subr.mxu0 0.0
    %2005 = vmatpush1.msra.mxu0 0.0
    %2006 = vmatprep.subr.mxu0 0.0
    %2007 = vmatpush1.msra.mxu0 0.0
    %2008 = vmatprep.subr.mxu0 0.0
    %2009 = vmatpush1.msra.mxu0 0.0
    %2010 = vmatprep.subr.mxu0 0.0
    %2011 = vmatpush1.msra.mxu0 0.0
    %2012 = vmatprep.subr.mxu0 0.0
    %2013 = vmatpush1.msra.mxu0 0.0
    %2014 = vmatprep.subr.mxu0 0.0
    %2015 = vmatpush1.msra.mxu0 0.0
    %2016 = vmatprep.subr.mxu0 0.0
    %2017 = vmatpush1.msra.mxu0 0.0
    %2018 = vmatprep.subr.mxu0 0.0
    %2019 = vmatpush1.msra.mxu0 0.0
    %2020 = vmatprep.subr.mxu0 0.0
    %2021 = vmatpush1.msra.mxu0 0.0
    %2022 = vmatprep.subr.mxu0 0.0
    %2023 = vmatpush1.msra.mxu0 0.0
    %2024 = vmatprep.subr.mxu0 0.0
    %2025 = vmatpush1.msra.mxu0 0.0
    %2026 = vmatprep.subr.mxu0 0.0
    %2027 = vmatpush1.msra.mxu0 0.0
    %2028 = vmatprep.subr.mxu0 0.0
    %2029 = vmatpush1.msra.mxu0 0.0
    %2030 = vmatprep.subr.mxu0 0.0
    %2031 = vmatpush1.msra.mxu0 0.0
    %2032 = vmatprep.subr.mxu0 0.0
    %2033 = vmatpush1.msra.mxu0 0.0
    %2034 = vmatprep.subr.mxu0 0.0
    %2035 = vmatpush1.msra.mxu0 0.0
    %2036 = vmatprep.mubr.f32.mxu0 0.0
    %2037 = vmatmul.mubr.f32.gmra.mrb[0].mxu0 %v1818
    %v2038 = vpop.f32.mrb[0].mxu0
    %v2039 = vadd.f32 0.0, %v2038
    %v2040 = vpop.f32.mrb[0].mxu0
    %2041 = vdwg.mxu0
    %v2042 = vadd.f32 %v1814, %v2039
    %v2043 = vadd.f32 %v2042, %v1084
    %v2044 = vtanh.pop %v2043
    %2045 = vmatprep.subr.mxu0 0.0
    %2046 = vmatpush1.msra.mxu0 %v827
    %2047 = vmatprep.subr.mxu0 0.0
    %2048 = vmatpush1.msra.mxu0 %v828
    %2049 = vmatprep.subr.mxu0 0.0
    %2050 = vmatpush1.msra.mxu0 %v829
    %2051 = vmatprep.subr.mxu0 0.0
    %2052 = vmatpush1.msra.mxu0 %v830
    %2053 = vmatprep.subr.mxu0 0.0
    %2054 = vmatpush1.msra.mxu0 0.0
    %2055 = vmatprep.subr.mxu0 0.0
    %2056 = vmatpush1.msra.mxu0 0.0
    %2057 = vmatprep.subr.mxu0 0.0
    %2058 = vmatpush1.msra.mxu0 0.0
    %2059 = vmatprep.subr.mxu0 0.0
    %2060 = vmatpush1.msra.mxu0 0.0
    %2061 = vmatprep.subr.mxu0 0.0
    %2062 = vmatpush1.msra.mxu0 0.0
    %2063 = vmatprep.subr.mxu0 0.0
    %2064 = vmatpush1.msra.mxu0 0.0
    %2065 = vmatprep.subr.mxu0 0.0
    %2066 = vmatpush1.msra.mxu0 0.0
    %2067 = vmatprep.subr.mxu0 0.0
    %2068 = vmatpush1.msra.mxu0 0.0
    %2069 = vmatprep.subr.mxu0 0.0
    %2070 = vmatpush1.msra.mxu0 0.0
    %2071 = vmatprep.subr.mxu0 0.0
    %2072 = vmatpush1.msra.mxu0 0.0
    %2073 = vmatprep.subr.mxu0 0.0
    %2074 = vmatpush1.msra.mxu0 0.0
    %2075 = vmatprep.subr.mxu0 0.0
    %2076 = vmatpush1.msra.mxu0 0.0
    %2077 = vmatprep.subr.mxu0 0.0
    %2078 = vmatpush1.msra.mxu0 0.0
    %2079 = vmatprep.subr.mxu0 0.0
    %2080 = vmatpush1.msra.mxu0 0.0
    %2081 = vmatprep.subr.mxu0 0.0
    %2082 = vmatpush1.msra.mxu0 0.0
    %2083 = vmatprep.subr.mxu0 0.0
    %2084 = vmatpush1.msra.mxu0 0.0
    %2085 = vmatprep.subr.mxu0 0.0
    %2086 = vmatpush1.msra.mxu0 0.0
    %2087 = vmatprep.subr.mxu0 0.0
    %2088 = vmatpush1.msra.mxu0 0.0
    %2089 = vmatprep.subr.mxu0 0.0
    %2090 = vmatpush1.msra.mxu0 0.0
    %2091 = vmatprep.subr.mxu0 0.0
    %2092 = vmatpush1.msra.mxu0 0.0
    %2093 = vmatprep.subr.mxu0 0.0
    %2094 = vmatpush1.msra.mxu0 0.0
    %2095 = vmatprep.subr.mxu0 0.0
    %2096 = vmatpush1.msra.mxu0 0.0
    %2097 = vmatprep.subr.mxu0 0.0
    %2098 = vmatpush1.msra.mxu0 0.0
    %2099 = vmatprep.subr.mxu0 0.0
    %2100 = vmatpush1.msra.mxu0 0.0
    %2101 = vmatprep.subr.mxu0 0.0
    %2102 = vmatpush1.msra.mxu0 0.0
    %2103 = vmatprep.subr.mxu0 0.0
    %2104 = vmatpush1.msra.mxu0 0.0
    %2105 = vmatprep.subr.mxu0 0.0
    %2106 = vmatpush1.msra.mxu0 0.0
    %2107 = vmatprep.subr.mxu0 0.0
    %2108 = vmatpush1.msra.mxu0 0.0
    %2109 = vmatprep.mubr.f32.mxu0 0.0
    %2110 = vmatmul.mubr.f32.gmra.mrb[0].mxu0 %v1818
    %v2111 = vpop.f32.mrb[0].mxu0
    %v2112 = vadd.f32 0.0, %v2111
    %v2113 = vpop.f32.mrb[0].mxu0
    %2114 = vdwg.mxu0
    %v2115 = vadd.f32 %v1816, %v2112
    %v2116 = vadd.f32 %v2115, %v1163
    %v2117 = vmul.f32 %v2116, 0.5
    %v2118 = vtanh.pop %v2117
    %v2119 = vmul.f32 %v2118, 0.5
    %v2120 = vadd.f32 %v2119, 0.5
    %v2121 = vmul.f32 %v1971, %v1806
    %v2122 = vmul.f32 %v1895, %v2044
    %v2123 = vadd.f32 %v2121, %v2122
    %v2124 = vtanh.pop %v2123
    %v2125 = vmul.f32 %v2120, %v2124
    %s2126 = scalar_lea.vmem [#allocation2], 32
    %v2127 = vld [vmem:[%s2126] sm:$0xff]
    %s2128 = scalar_lea.vmem [#allocation3], 32
    %v2129 = vld [vmem:[%s2128] sm:$0xff]
    %s2130 = scalar_lea.vmem [#allocation4], 32
    %v2131 = vld [vmem:[%s2130] sm:$0xff]
    %s2132 = scalar_lea.vmem [#allocation5], 32
    %v2133 = vld [vmem:[%s2132] sm:$0xff]
    %v2135 = vsel %vm239, %v2125, 0
    %2137 = vmatprep.subr.mxu0 0.0
    %2138 = vmatpush1.msra.mxu0 %v812
    %2139 = vmatprep.subr.mxu0 0.0
    %2140 = vmatpush1.msra.mxu0 %v813
    %2141 = vmatprep.subr.mxu0 0.0
    %2142 = vmatpush1.msra.mxu0 %v814
    %2143 = vmatprep.subr.mxu0 0.0
    %2144 = vmatpush1.msra.mxu0 %v815
    %2145 = vmatprep.subr.mxu0 0.0
    %2146 = vmatpush1.msra.mxu0 0.0
    %2147 = vmatprep.subr.mxu0 0.0
    %2148 = vmatpush1.msra.mxu0 0.0
    %2149 = vmatprep.subr.mxu0 0.0
    %2150 = vmatpush1.msra.mxu0 0.0
    %2151 = vmatprep.subr.mxu0 0.0
    %2152 = vmatpush1.msra.mxu0 0.0
    %2153 = vmatprep.subr.mxu0 0.0
    %2154 = vmatpush1.msra.mxu0 0.0
    %2155 = vmatprep.subr.mxu0 0.0
    %2156 = vmatpush1.msra.mxu0 0.0
    %2157 = vmatprep.subr.mxu0 0.0
    %2158 = vmatpush1.msra.mxu0 0.0
    %2159 = vmatprep.subr.mxu0 0.0
    %2160 = vmatpush1.msra.mxu0 0.0
    %2161 = vmatprep.subr.mxu0 0.0
    %2162 = vmatpush1.msra.mxu0 0.0
    %2163 = vmatprep.subr.mxu0 0.0
    %2164 = vmatpush1.msra.mxu0 0.0
    %2165 = vmatprep.subr.mxu0 0.0
    %2166 = vmatpush1.msra.mxu0 0.0
    %2167 = vmatprep.subr.mxu0 0.0
    %2168 = vmatpush1.msra.mxu0 0.0
    %2169 = vmatprep.subr.mxu0 0.0
    %2170 = vmatpush1.msra.mxu0 0.0
    %2171 = vmatprep.subr.mxu0 0.0
    %2172 = vmatpush1.msra.mxu0 0.0
    %2173 = vmatprep.subr.mxu0 0.0
    %2174 = vmatpush1.msra.mxu0 0.0
    %2175 = vmatprep.subr.mxu0 0.0
    %2176 = vmatpush1.msra.mxu0 0.0
    %2177 = vmatprep.subr.mxu0 0.0
    %2178 = vmatpush1.msra.mxu0 0.0
    %2179 = vmatprep.subr.mxu0 0.0
    %2180 = vmatpush1.msra.mxu0 0.0
    %2181 = vmatprep.subr.mxu0 0.0
    %2182 = vmatpush1.msra.mxu0 0.0
    %2183 = vmatprep.subr.mxu0 0.0
    %2184 = vmatpush1.msra.mxu0 0.0
    %2185 = vmatprep.subr.mxu0 0.0
    %2186 = vmatpush1.msra.mxu0 0.0
    %2187 = vmatprep.subr.mxu0 0.0
    %2188 = vmatpush1.msra.mxu0 0.0
    %2189 = vmatprep.subr.mxu0 0.0
    %2190 = vmatpush1.msra.mxu0 0.0
    %2191 = vmatprep.subr.mxu0 0.0
    %2192 = vmatpush1.msra.mxu0 0.0
    %2193 = vmatprep.subr.mxu0 0.0
    %2194 = vmatpush1.msra.mxu0 0.0
    %2195 = vmatprep.subr.mxu0 0.0
    %2196 = vmatpush1.msra.mxu0 0.0
    %2197 = vmatprep.subr.mxu0 0.0
    %2198 = vmatpush1.msra.mxu0 0.0
    %2199 = vmatprep.subr.mxu0 0.0
    %2200 = vmatpush1.msra.mxu0 0.0
    %2201 = vmatprep.mubr.f32.mxu0 0.0
    %2202 = vmatmul.mubr.f32.gmra.mrb[0].mxu0 %v2135
    %v2203 = vpop.f32.mrb[0].mxu0
    %v2204 = vadd.f32 0.0, %v2203
    %v2205 = vpop.f32.mrb[0].mxu0
    %2206 = vdwg.mxu0
    %v2207 = vadd.f32 %v2127, %v2204
    %v2208 = vadd.f32 %v2207, %v920
    %v2209 = vmul.f32 %v2208, 0.5
    %v2210 = vtanh.pop %v2209
    %v2211 = vmul.f32 %v2210, 0.5
    %v2212 = vadd.f32 %v2211, 0.5
    %2213 = vmatprep.subr.mxu0 0.0
    %2214 = vmatpush1.msra.mxu0 %v817
    %2215 = vmatprep.subr.mxu0 0.0
    %2216 = vmatpush1.msra.mxu0 %v818
    %2217 = vmatprep.subr.mxu0 0.0
    %2218 = vmatpush1.msra.mxu0 %v819
    %2219 = vmatprep.subr.mxu0 0.0
    %2220 = vmatpush1.msra.mxu0 %v820
    %2221 = vmatprep.subr.mxu0 0.0
    %2222 = vmatpush1.msra.mxu0 0.0
    %2223 = vmatprep.subr.mxu0 0.0
    %2224 = vmatpush1.msra.mxu0 0.0
    %2225 = vmatprep.subr.mxu0 0.0
    %2226 = vmatpush1.msra.mxu0 0.0
    %2227 = vmatprep.subr.mxu0 0.0
    %2228 = vmatpush1.msra.mxu0 0.0
    %2229 = vmatprep.subr.mxu0 0.0
    %2230 = vmatpush1.msra.mxu0 0.0
    %2231 = vmatprep.subr.mxu0 0.0
    %2232 = vmatpush1.msra.mxu0 0.0
    %2233 = vmatprep.subr.mxu0 0.0
    %2234 = vmatpush1.msra.mxu0 0.0
    %2235 = vmatprep.subr.mxu0 0.0
    %2236 = vmatpush1.msra.mxu0 0.0
    %2237 = vmatprep.subr.mxu0 0.0
    %2238 = vmatpush1.msra.mxu0 0.0
    %2239 = vmatprep.subr.mxu0 0.0
    %2240 = vmatpush1.msra.mxu0 0.0
    %2241 = vmatprep.subr.mxu0 0.0
    %2242 = vmatpush1.msra.mxu0 0.0
    %2243 = vmatprep.subr.mxu0 0.0
    %2244 = vmatpush1.msra.mxu0 0.0
    %2245 = vmatprep.subr.mxu0 0.0
    %2246 = vmatpush1.msra.mxu0 0.0
    %2247 = vmatprep.subr.mxu0 0.0
    %2248 = vmatpush1.msra.mxu0 0.0
    %2249 = vmatprep.subr.mxu0 0.0
    %2250 = vmatpush1.msra.mxu0 0.0
    %2251 = vmatprep.subr.mxu0 0.0
    %2252 = vmatpush1.msra.mxu0 0.0
    %2253 = vmatprep.subr.mxu0 0.0
    %2254 = vmatpush1.msra.mxu0 0.0
    %2255 = vmatprep.subr.mxu0 0.0
    %2256 = vmatpush1.msra.mxu0 0.0
    %2257 = vmatprep.subr.mxu0 0.0
    %2258 = vmatpush1.msra.mxu0 0.0
    %2259 = vmatprep.subr.mxu0 0.0
    %2260 = vmatpush1.msra.mxu0 0.0
    %2261 = vmatprep.subr.mxu0 0.0
    %2262 = vmatpush1.msra.mxu0 0.0
    %2263 = vmatprep.subr.mxu0 0.0
    %2264 = vmatpush1.msra.mxu0 0.0
    %2265 = vmatprep.subr.mxu0 0.0
    %2266 = vmatpush1.msra.mxu0 0.0
    %2267 = vmatprep.subr.mxu0 0.0
    %2268 = vmatpush1.msra.mxu0 0.0
    %2269 = vmatprep.subr.mxu0 0.0
    %2270 = vmatpush1.msra.mxu0 0.0
    %2271 = vmatprep.subr.mxu0 0.0
    %2272 = vmatpush1.msra.mxu0 0.0
    %2273 = vmatprep.subr.mxu0 0.0
    %2274 = vmatpush1.msra.mxu0 0.0
    %2275 = vmatprep.subr.mxu0 0.0
    %2276 = vmatpush1.msra.mxu0 0.0
    %2277 = vmatprep.mubr.f32.mxu0 0.0
    %2278 = vmatmul.mubr.f32.gmra.mrb[0].mxu0 %v2135
    %v2279 = vpop.f32.mrb[0].mxu0
    %v2280 = vadd.f32 0.0, %v2279
    %v2281 = vpop.f32.mrb[0].mxu0
    %2282 = vdwg.mxu0
    %v2283 = vadd.f32 %v2129, %v2280
    %v2284 = vadd.f32 %v2283, %v1002
    %v2285 = vmul.f32 %v2284, 0.5
    %v2286 = vtanh.pop %v2285
    %v2287 = vmul.f32 %v2286, 0.5
    %v2288 = vadd.f32 %v2287, 0.5
    %2289 = vmatprep.subr.mxu0 0.0
    %2290 = vmatpush1.msra.mxu0 %v822
    %2291 = vmatprep.subr.mxu0 0.0
    %2292 = vmatpush1.msra.mxu0 %v823
    %2293 = vmatprep.subr.mxu0 0.0
    %2294 = vmatpush1.msra.mxu0 %v824
    %2295 = vmatprep.subr.mxu0 0.0
    %2296 = vmatpush1.msra.mxu0 %v825
    %2297 = vmatprep.subr.mxu0 0.0
    %2298 = vmatpush1.msra.mxu0 0.0
    %2299 = vmatprep.subr.mxu0 0.0
    %2300 = vmatpush1.msra.mxu0 0.0
    %2301 = vmatprep.subr.mxu0 0.0
    %2302 = vmatpush1.msra.mxu0 0.0
    %2303 = vmatprep.subr.mxu0 0.0
    %2304 = vmatpush1.msra.mxu0 0.0
    %2305 = vmatprep.subr.mxu0 0.0
    %2306 = vmatpush1.msra.mxu0 0.0
    %2307 = vmatprep.subr.mxu0 0.0
    %2308 = vmatpush1.msra.mxu0 0.0
    %2309 = vmatprep.subr.mxu0 0.0
    %2310 = vmatpush1.msra.mxu0 0.0
    %2311 = vmatprep.subr.mxu0 0.0
    %2312 = vmatpush1.msra.mxu0 0.0
    %2313 = vmatprep.subr.mxu0 0.0
    %2314 = vmatpush1.msra.mxu0 0.0
    %2315 = vmatprep.subr.mxu0 0.0
    %2316 = vmatpush1.msra.mxu0 0.0
    %2317 = vmatprep.subr.mxu0 0.0
    %2318 = vmatpush1.msra.mxu0 0.0
    %2319 = vmatprep.subr.mxu0 0.0
    %2320 = vmatpush1.msra.mxu0 0.0
    %2321 = vmatprep.subr.mxu0 0.0
    %2322 = vmatpush1.msra.mxu0 0.0
    %2323 = vmatprep.subr.mxu0 0.0
    %2324 = vmatpush1.msra.mxu0 0.0
    %2325 = vmatprep.subr.mxu0 0.0
    %2326 = vmatpush1.msra.mxu0 0.0
    %2327 = vmatprep.subr.mxu0 0.0
    %2328 = vmatpush1.msra.mxu0 0.0
    %2329 = vmatprep.subr.mxu0 0.0
    %2330 = vmatpush1.msra.mxu0 0.0
    %2331 = vmatprep.subr.mxu0 0.0
    %2332 = vmatpush1.msra.mxu0 0.0
    %2333 = vmatprep.subr.mxu0 0.0
    %2334 = vmatpush1.msra.mxu0 0.0
    %2335 = vmatprep.subr.mxu0 0.0
    %2336 = vmatpush1.msra.mxu0 0.0
    %2337 = vmatprep.subr.mxu0 0.0
    %2338 = vmatpush1.msra.mxu0 0.0
    %2339 = vmatprep.subr.mxu0 0.0
    %2340 = vmatpush1.msra.mxu0 0.0
    %2341 = vmatprep.subr.mxu0 0.0
    %2342 = vmatpush1.msra.mxu0 0.0
    %2343 = vmatprep.subr.mxu0 0.0
    %2344 = vmatpush1.msra.mxu0 0.0
    %2345 = vmatprep.subr.mxu0 0.0
    %2346 = vmatpush1.msra.mxu0 0.0
    %2347 = vmatprep.subr.mxu0 0.0
    %2348 = vmatpush1.msra.mxu0 0.0
    %2349 = vmatprep.subr.mxu0 0.0
    %2350 = vmatpush1.msra.mxu0 0.0
    %2351 = vmatprep.subr.mxu0 0.0
    %2352 = vmatpush1.msra.mxu0 0.0
    %2353 = vmatprep.mubr.f32.mxu0 0.0
    %2354 = vmatmul.mubr.f32.gmra.mrb[0].mxu0 %v2135
    %v2355 = vpop.f32.mrb[0].mxu0
    %v2356 = vadd.f32 0.0, %v2355
    %v2357 = vpop.f32.mrb[0].mxu0
    %2358 = vdwg.mxu0
    %v2359 = vadd.f32 %v2131, %v2356
    %v2360 = vadd.f32 %v2359, %v1084
    %v2361 = vtanh.pop %v2360
    %2362 = vmatprep.subr.mxu0 0.0
    %2363 = vmatpush1.msra.mxu0 %v827
    %2364 = vmatprep.subr.mxu0 0.0
    %2365 = vmatpush1.msra.mxu0 %v828
    %2366 = vmatprep.subr.mxu0 0.0
    %2367 = vmatpush1.msra.mxu0 %v829
    %2368 = vmatprep.subr.mxu0 0.0
    %2369 = vmatpush1.msra.mxu0 %v830
    %2370 = vmatprep.subr.mxu0 0.0
    %2371 = vmatpush1.msra.mxu0 0.0
    %2372 = vmatprep.subr.mxu0 0.0
    %2373 = vmatpush1.msra.mxu0 0.0
    %2374 = vmatprep.subr.mxu0 0.0
    %2375 = vmatpush1.msra.mxu0 0.0
    %2376 = vmatprep.subr.mxu0 0.0
    %2377 = vmatpush1.msra.mxu0 0.0
    %2378 = vmatprep.subr.mxu0 0.0
    %2379 = vmatpush1.msra.mxu0 0.0
    %2380 = vmatprep.subr.mxu0 0.0
    %2381 = vmatpush1.msra.mxu0 0.0
    %2382 = vmatprep.subr.mxu0 0.0
    %2383 = vmatpush1.msra.mxu0 0.0
    %2384 = vmatprep.subr.mxu0 0.0
    %2385 = vmatpush1.msra.mxu0 0.0
    %2386 = vmatprep.subr.mxu0 0.0
    %2387 = vmatpush1.msra.mxu0 0.0
    %2388 = vmatprep.subr.mxu0 0.0
    %2389 = vmatpush1.msra.mxu0 0.0
    %2390 = vmatprep.subr.mxu0 0.0
    %2391 = vmatpush1.msra.mxu0 0.0
    %2392 = vmatprep.subr.mxu0 0.0
    %2393 = vmatpush1.msra.mxu0 0.0
    %2394 = vmatprep.subr.mxu0 0.0
    %2395 = vmatpush1.msra.mxu0 0.0
    %2396 = vmatprep.subr.mxu0 0.0
    %2397 = vmatpush1.msra.mxu0 0.0
    %2398 = vmatprep.subr.mxu0 0.0
    %2399 = vmatpush1.msra.mxu0 0.0
    %2400 = vmatprep.subr.mxu0 0.0
    %2401 = vmatpush1.msra.mxu0 0.0
    %2402 = vmatprep.subr.mxu0 0.0
    %2403 = vmatpush1.msra.mxu0 0.0
    %2404 = vmatprep.subr.mxu0 0.0
    %2405 = vmatpush1.msra.mxu0 0.0
    %2406 = vmatprep.subr.mxu0 0.0
    %2407 = vmatpush1.msra.mxu0 0.0
    %2408 = vmatprep.subr.mxu0 0.0
    %2409 = vmatpush1.msra.mxu0 0.0
    %2410 = vmatprep.subr.mxu0 0.0
    %2411 = vmatpush1.msra.mxu0 0.0
    %2412 = vmatprep.subr.mxu0 0.0
    %2413 = vmatpush1.msra.mxu0 0.0
    %2414 = vmatprep.subr.mxu0 0.0
    %2415 = vmatpush1.msra.mxu0 0.0
    %2416 = vmatprep.subr.mxu0 0.0
    %2417 = vmatpush1.msra.mxu0 0.0
    %2418 = vmatprep.subr.mxu0 0.0
    %2419 = vmatpush1.msra.mxu0 0.0
    %2420 = vmatprep.subr.mxu0 0.0
    %2421 = vmatpush1.msra.mxu0 0.0
    %2422 = vmatprep.subr.mxu0 0.0
    %2423 = vmatpush1.msra.mxu0 0.0
    %2424 = vmatprep.subr.mxu0 0.0
    %2425 = vmatpush1.msra.mxu0 0.0
    %2426 = vmatprep.mubr.f32.mxu0 0.0
    %2427 = vmatmul.mubr.f32.gmra.mrb[0].mxu0 %v2135
    %v2428 = vpop.f32.mrb[0].mxu0
    %v2429 = vadd.f32 0.0, %v2428
    %v2430 = vpop.f32.mrb[0].mxu0
    %2431 = vdwg.mxu0
    %v2432 = vadd.f32 %v2133, %v2429
    %v2433 = vadd.f32 %v2432, %v1163
    %v2434 = vmul.f32 %v2433, 0.5
    %v2435 = vtanh.pop %v2434
    %v2436 = vmul.f32 %v2435, 0.5
    %v2437 = vadd.f32 %v2436, 0.5
    %v2438 = vmul.f32 %v2288, %v2123
    %v2439 = vmul.f32 %v2212, %v2361
    %v2440 = vadd.f32 %v2438, %v2439
    %v2441 = vtanh.pop %v2440
    %v2442 = vmul.f32 %v2437, %v2441
    %s2443 = scalar_lea.vmem [#allocation2], 40
    %v2444 = vld [vmem:[%s2443] sm:$0xff]
    %s2445 = scalar_lea.vmem [#allocation3], 40
    %v2446 = vld [vmem:[%s2445] sm:$0xff]
    %s2447 = scalar_lea.vmem [#allocation4], 40
    %v2448 = vld [vmem:[%s2447] sm:$0xff]
    %s2449 = scalar_lea.vmem [#allocation5], 40
    %v2450 = vld [vmem:[%s2449] sm:$0xff]
    %v2452 = vsel %vm239, %v2442, 0
    %2454 = vmatprep.subr.mxu0 0.0
    %2455 = vmatpush1.msra.mxu0 %v812
    %2456 = vmatprep.subr.mxu0 0.0
    %2457 = vmatpush1.msra.mxu0 %v813
    %2458 = vmatprep.subr.mxu0 0.0
    %2459 = vmatpush1.msra.mxu0 %v814
    %2460 = vmatprep.subr.mxu0 0.0
    %2461 = vmatpush1.msra.mxu0 %v815
    %2462 = vmatprep.subr.mxu0 0.0
    %2463 = vmatpush1.msra.mxu0 0.0
    %2464 = vmatprep.subr.mxu0 0.0
    %2465 = vmatpush1.msra.mxu0 0.0
    %2466 = vmatprep.subr.mxu0 0.0
    %2467 = vmatpush1.msra.mxu0 0.0
    %2468 = vmatprep.subr.mxu0 0.0
    %2469 = vmatpush1.msra.mxu0 0.0
    %2470 = vmatprep.subr.mxu0 0.0
    %2471 = vmatpush1.msra.mxu0 0.0
    %2472 = vmatprep.subr.mxu0 0.0
    %2473 = vmatpush1.msra.mxu0 0.0
    %2474 = vmatprep.subr.mxu0 0.0
    %2475 = vmatpush1.msra.mxu0 0.0
    %2476 = vmatprep.subr.mxu0 0.0
    %2477 = vmatpush1.msra.mxu0 0.0
    %2478 = vmatprep.subr.mxu0 0.0
    %2479 = vmatpush1.msra.mxu0 0.0
    %2480 = vmatprep.subr.mxu0 0.0
    %2481 = vmatpush1.msra.mxu0 0.0
    %2482 = vmatprep.subr.mxu0 0.0
    %2483 = vmatpush1.msra.mxu0 0.0
    %2484 = vmatprep.subr.mxu0 0.0
    %2485 = vmatpush1.msra.mxu0 0.0
    %2486 = vmatprep.subr.mxu0 0.0
    %2487 = vmatpush1.msra.mxu0 0.0
    %2488 = vmatprep.subr.mxu0 0.0
    %2489 = vmatpush1.msra.mxu0 0.0
    %2490 = vmatprep.subr.mxu0 0.0
    %2491 = vmatpush1.msra.mxu0 0.0
    %2492 = vmatprep.subr.mxu0 0.0
    %2493 = vmatpush1.msra.mxu0 0.0
    %2494 = vmatprep.subr.mxu0 0.0
    %2495 = vmatpush1.msra.mxu0 0.0
    %2496 = vmatprep.subr.mxu0 0.0
    %2497 = vmatpush1.msra.mxu0 0.0
    %2498 = vmatprep.subr.mxu0 0.0
    %2499 = vmatpush1.msra.mxu0 0.0
    %2500 = vmatprep.subr.mxu0 0.0
    %2501 = vmatpush1.msra.mxu0 0.0
    %2502 = vmatprep.subr.mxu0 0.0
    %2503 = vmatpush1.msra.mxu0 0.0
    %2504 = vmatprep.subr.mxu0 0.0
    %2505 = vmatpush1.msra.mxu0 0.0
    %2506 = vmatprep.subr.mxu0 0.0
    %2507 = vmatpush1.msra.mxu0 0.0
    %2508 = vmatprep.subr.mxu0 0.0
    %2509 = vmatpush1.msra.mxu0 0.0
    %2510 = vmatprep.subr.mxu0 0.0
    %2511 = vmatpush1.msra.mxu0 0.0
    %2512 = vmatprep.subr.mxu0 0.0
    %2513 = vmatpush1.msra.mxu0 0.0
    %2514 = vmatprep.subr.mxu0 0.0
    %2515 = vmatpush1.msra.mxu0 0.0
    %2516 = vmatprep.subr.mxu0 0.0
    %2517 = vmatpush1.msra.mxu0 0.0
    %2518 = vmatprep.mubr.f32.mxu0 0.0
    %2519 = vmatmul.mubr.f32.gmra.mrb[0].mxu0 %v2452
    %v2520 = vpop.f32.mrb[0].mxu0
    %v2521 = vadd.f32 0.0, %v2520
    %v2522 = vpop.f32.mrb[0].mxu0
    %2523 = vdwg.mxu0
    %v2524 = vadd.f32 %v2444, %v2521
    %v2525 = vadd.f32 %v2524, %v920
    %v2526 = vmul.f32 %v2525, 0.5
    %v2527 = vtanh.pop %v2526
    %v2528 = vmul.f32 %v2527, 0.5
    %v2529 = vadd.f32 %v2528, 0.5
    %2530 = vmatprep.subr.mxu0 0.0
    %2531 = vmatpush1.msra.mxu0 %v817
    %2532 = vmatprep.subr.mxu0 0.0
    %2533 = vmatpush1.msra.mxu0 %v818
    %2534 = vmatprep.subr.mxu0 0.0
    %2535 = vmatpush1.msra.mxu0 %v819
    %2536 = vmatprep.subr.mxu0 0.0
    %2537 = vmatpush1.msra.mxu0 %v820
    %2538 = vmatprep.subr.mxu0 0.0
    %2539 = vmatpush1.msra.mxu0 0.0
    %2540 = vmatprep.subr.mxu0 0.0
    %2541 = vmatpush1.msra.mxu0 0.0
    %2542 = vmatprep.subr.mxu0 0.0
    %2543 = vmatpush1.msra.mxu0 0.0
    %2544 = vmatprep.subr.mxu0 0.0
    %2545 = vmatpush1.msra.mxu0 0.0
    %2546 = vmatprep.subr.mxu0 0.0
    %2547 = vmatpush1.msra.mxu0 0.0
    %2548 = vmatprep.subr.mxu0 0.0
    %2549 = vmatpush1.msra.mxu0 0.0
    %2550 = vmatprep.subr.mxu0 0.0
    %2551 = vmatpush1.msra.mxu0 0.0
    %2552 = vmatprep.subr.mxu0 0.0
    %2553 = vmatpush1.msra.mxu0 0.0
    %2554 = vmatprep.subr.mxu0 0.0
    %2555 = vmatpush1.msra.mxu0 0.0
    %2556 = vmatprep.subr.mxu0 0.0
    %2557 = vmatpush1.msra.mxu0 0.0
    %2558 = vmatprep.subr.mxu0 0.0
    %2559 = vmatpush1.msra.mxu0 0.0
    %2560 = vmatprep.subr.mxu0 0.0
    %2561 = vmatpush1.msra.mxu0 0.0
    %2562 = vmatprep.subr.mxu0 0.0
    %2563 = vmatpush1.msra.mxu0 0.0
    %2564 = vmatprep.subr.mxu0 0.0
    %2565 = vmatpush1.msra.mxu0 0.0
    %2566 = vmatprep.subr.mxu0 0.0
    %2567 = vmatpush1.msra.mxu0 0.0
    %2568 = vmatprep.subr.mxu0 0.0
    %2569 = vmatpush1.msra.mxu0 0.0
    %2570 = vmatprep.subr.mxu0 0.0
    %2571 = vmatpush1.msra.mxu0 0.0
    %2572 = vmatprep.subr.mxu0 0.0
    %2573 = vmatpush1.msra.mxu0 0.0
    %2574 = vmatprep.subr.mxu0 0.0
    %2575 = vmatpush1.msra.mxu0 0.0
    %2576 = vmatprep.subr.mxu0 0.0
    %2577 = vmatpush1.msra.mxu0 0.0
    %2578 = vmatprep.subr.mxu0 0.0
    %2579 = vmatpush1.msra.mxu0 0.0
    %2580 = vmatprep.subr.mxu0 0.0
    %2581 = vmatpush1.msra.mxu0 0.0
    %2582 = vmatprep.subr.mxu0 0.0
    %2583 = vmatpush1.msra.mxu0 0.0
    %2584 = vmatprep.subr.mxu0 0.0
    %2585 = vmatpush1.msra.mxu0 0.0
    %2586 = vmatprep.subr.mxu0 0.0
    %2587 = vmatpush1.msra.mxu0 0.0
    %2588 = vmatprep.subr.mxu0 0.0
    %2589 = vmatpush1.msra.mxu0 0.0
    %2590 = vmatprep.subr.mxu0 0.0
    %2591 = vmatpush1.msra.mxu0 0.0
    %2592 = vmatprep.subr.mxu0 0.0
    %2593 = vmatpush1.msra.mxu0 0.0
    %2594 = vmatprep.mubr.f32.mxu0 0.0
    %2595 = vmatmul.mubr.f32.gmra.mrb[0].mxu0 %v2452
    %v2596 = vpop.f32.mrb[0].mxu0
    %v2597 = vadd.f32 0.0, %v2596
    %v2598 = vpop.f32.mrb[0].mxu0
    %2599 = vdwg.mxu0
    %v2600 = vadd.f32 %v2446, %v2597
    %v2601 = vadd.f32 %v2600, %v1002
    %v2602 = vmul.f32 %v2601, 0.5
    %v2603 = vtanh.pop %v2602
    %v2604 = vmul.f32 %v2603, 0.5
    %v2605 = vadd.f32 %v2604, 0.5
    %2606 = vmatprep.subr.mxu0 0.0
    %2607 = vmatpush1.msra.mxu0 %v822
    %2608 = vmatprep.subr.mxu0 0.0
    %2609 = vmatpush1.msra.mxu0 %v823
    %2610 = vmatprep.subr.mxu0 0.0
    %2611 = vmatpush1.msra.mxu0 %v824
    %2612 = vmatprep.subr.mxu0 0.0
    %2613 = vmatpush1.msra.mxu0 %v825
    %2614 = vmatprep.subr.mxu0 0.0
    %2615 = vmatpush1.msra.mxu0 0.0
    %2616 = vmatprep.subr.mxu0 0.0
    %2617 = vmatpush1.msra.mxu0 0.0
    %2618 = vmatprep.subr.mxu0 0.0
    %2619 = vmatpush1.msra.mxu0 0.0
    %2620 = vmatprep.subr.mxu0 0.0
    %2621 = vmatpush1.msra.mxu0 0.0
    %2622 = vmatprep.subr.mxu0 0.0
    %2623 = vmatpush1.msra.mxu0 0.0
    %2624 = vmatprep.subr.mxu0 0.0
    %2625 = vmatpush1.msra.mxu0 0.0
    %2626 = vmatprep.subr.mxu0 0.0
    %2627 = vmatpush1.msra.mxu0 0.0
    %2628 = vmatprep.subr.mxu0 0.0
    %2629 = vmatpush1.msra.mxu0 0.0
    %2630 = vmatprep.subr.mxu0 0.0
    %2631 = vmatpush1.msra.mxu0 0.0
    %2632 = vmatprep.subr.mxu0 0.0
    %2633 = vmatpush1.msra.mxu0 0.0
    %2634 = vmatprep.subr.mxu0 0.0
    %2635 = vmatpush1.msra.mxu0 0.0
    %2636 = vmatprep.subr.mxu0 0.0
    %2637 = vmatpush1.msra.mxu0 0.0
    %2638 = vmatprep.subr.mxu0 0.0
    %2639 = vmatpush1.msra.mxu0 0.0
    %2640 = vmatprep.subr.mxu0 0.0
    %2641 = vmatpush1.msra.mxu0 0.0
    %2642 = vmatprep.subr.mxu0 0.0
    %2643 = vmatpush1.msra.mxu0 0.0
    %2644 = vmatprep.subr.mxu0 0.0
    %2645 = vmatpush1.msra.mxu0 0.0
    %2646 = vmatprep.subr.mxu0 0.0
    %2647 = vmatpush1.msra.mxu0 0.0
    %2648 = vmatprep.subr.mxu0 0.0
    %2649 = vmatpush1.msra.mxu0 0.0
    %2650 = vmatprep.subr.mxu0 0.0
    %2651 = vmatpush1.msra.mxu0 0.0
    %2652 = vmatprep.subr.mxu0 0.0
    %2653 = vmatpush1.msra.mxu0 0.0
    %2654 = vmatprep.subr.mxu0 0.0
    %2655 = vmatpush1.msra.mxu0 0.0
    %2656 = vmatprep.subr.mxu0 0.0
    %2657 = vmatpush1.msra.mxu0 0.0
    %2658 = vmatprep.subr.mxu0 0.0
    %2659 = vmatpush1.msra.mxu0 0.0
    %2660 = vmatprep.subr.mxu0 0.0
    %2661 = vmatpush1.msra.mxu0 0.0
    %2662 = vmatprep.subr.mxu0 0.0
    %2663 = vmatpush1.msra.mxu0 0.0
    %2664 = vmatprep.subr.mxu0 0.0
    %2665 = vmatpush1.msra.mxu0 0.0
    %2666 = vmatprep.subr.mxu0 0.0
    %2667 = vmatpush1.msra.mxu0 0.0
    %2668 = vmatprep.subr.mxu0 0.0
    %2669 = vmatpush1.msra.mxu0 0.0
    %2670 = vmatprep.mubr.f32.mxu0 0.0
    %2671 = vmatmul.mubr.f32.gmra.mrb[0].mxu0 %v2452
    %v2672 = vpop.f32.mrb[0].mxu0
    %v2673 = vadd.f32 0.0, %v2672
    %v2674 = vpop.f32.mrb[0].mxu0
    %2675 = vdwg.mxu0
    %v2676 = vadd.f32 %v2448, %v2673
    %v2677 = vadd.f32 %v2676, %v1084
    %v2678 = vtanh.pop %v2677
    %2679 = vmatprep.subr.mxu0 0.0
    %2680 = vmatpush1.msra.mxu0 %v827
    %2681 = vmatprep.subr.mxu0 0.0
    %2682 = vmatpush1.msra.mxu0 %v828
    %2683 = vmatprep.subr.mxu0 0.0
    %2684 = vmatpush1.msra.mxu0 %v829
    %2685 = vmatprep.subr.mxu0 0.0
    %2686 = vmatpush1.msra.mxu0 %v830
    %2687 = vmatprep.subr.mxu0 0.0
    %2688 = vmatpush1.msra.mxu0 0.0
    %2689 = vmatprep.subr.mxu0 0.0
    %2690 = vmatpush1.msra.mxu0 0.0
    %2691 = vmatprep.subr.mxu0 0.0
    %2692 = vmatpush1.msra.mxu0 0.0
    %2693 = vmatprep.subr.mxu0 0.0
    %2694 = vmatpush1.msra.mxu0 0.0
    %2695 = vmatprep.subr.mxu0 0.0
    %2696 = vmatpush1.msra.mxu0 0.0
    %2697 = vmatprep.subr.mxu0 0.0
    %2698 = vmatpush1.msra.mxu0 0.0
    %2699 = vmatprep.subr.mxu0 0.0
    %2700 = vmatpush1.msra.mxu0 0.0
    %2701 = vmatprep.subr.mxu0 0.0
    %2702 = vmatpush1.msra.mxu0 0.0
    %2703 = vmatprep.subr.mxu0 0.0
    %2704 = vmatpush1.msra.mxu0 0.0
    %2705 = vmatprep.subr.mxu0 0.0
    %2706 = vmatpush1.msra.mxu0 0.0
    %2707 = vmatprep.subr.mxu0 0.0
    %2708 = vmatpush1.msra.mxu0 0.0
    %2709 = vmatprep.subr.mxu0 0.0
    %2710 = vmatpush1.msra.mxu0 0.0
    %2711 = vmatprep.subr.mxu0 0.0
    %2712 = vmatpush1.msra.mxu0 0.0
    %2713 = vmatprep.subr.mxu0 0.0
    %2714 = vmatpush1.msra.mxu0 0.0
    %2715 = vmatprep.subr.mxu0 0.0
    %2716 = vmatpush1.msra.mxu0 0.0
    %2717 = vmatprep.subr.mxu0 0.0
    %2718 = vmatpush1.msra.mxu0 0.0
    %2719 = vmatprep.subr.mxu0 0.0
    %2720 = vmatpush1.msra.mxu0 0.0
    %2721 = vmatprep.subr.mxu0 0.0
    %2722 = vmatpush1.msra.mxu0 0.0
    %2723 = vmatprep.subr.mxu0 0.0
    %2724 = vmatpush1.msra.mxu0 0.0
    %2725 = vmatprep.subr.mxu0 0.0
    %2726 = vmatpush1.msra.mxu0 0.0
    %2727 = vmatprep.subr.mxu0 0.0
    %2728 = vmatpush1.msra.mxu0 0.0
    %2729 = vmatprep.subr.mxu0 0.0
    %2730 = vmatpush1.msra.mxu0 0.0
    %2731 = vmatprep.subr.mxu0 0.0
    %2732 = vmatpush1.msra.mxu0 0.0
    %2733 = vmatprep.subr.mxu0 0.0
    %2734 = vmatpush1.msra.mxu0 0.0
    %2735 = vmatprep.subr.mxu0 0.0
    %2736 = vmatpush1.msra.mxu0 0.0
    %2737 = vmatprep.subr.mxu0 0.0
    %2738 = vmatpush1.msra.mxu0 0.0
    %2739 = vmatprep.subr.mxu0 0.0
    %2740 = vmatpush1.msra.mxu0 0.0
    %2741 = vmatprep.subr.mxu0 0.0
    %2742 = vmatpush1.msra.mxu0 0.0
    %2743 = vmatprep.mubr.f32.mxu0 0.0
    %2744 = vmatmul.mubr.f32.gmra.mrb[0].mxu0 %v2452
    %v2745 = vpop.f32.mrb[0].mxu0
    %v2746 = vadd.f32 0.0, %v2745
    %v2747 = vpop.f32.mrb[0].mxu0
    %2748 = vdwg.mxu0
    %v2749 = vadd.f32 %v2450, %v2746
    %v2750 = vadd.f32 %v2749, %v1163
    %v2751 = vmul.f32 %v2750, 0.5
    %v2752 = vtanh.pop %v2751
    %v2753 = vmul.f32 %v2752, 0.5
    %v2754 = vadd.f32 %v2753, 0.5
    %v2755 = vmul.f32 %v2605, %v2440
    %v2756 = vmul.f32 %v2529, %v2678
    %v2757 = vadd.f32 %v2755, %v2756
    %v2758 = vtanh.pop %v2757
    %v2759 = vmul.f32 %v2754, %v2758
    %v2760 = vld [vmem:[%s9] sm:$0xff]
    %v2761 = vld [vmem:[%s9 + $0x8] sm:$0xff]
    %v2762 = vld [vmem:[%s9 + $0x10] sm:$0xff]
    %v2763 = vld [vmem:[%s9 + $0x18] sm:$0xff]
    %v2764 = vld [vmem:[%s10] sm:$0x1]
    %v2766 = vlaneseq
    %v2767 = vshrl.u32 %v2766, 7
    %v2768 = vsub.s32 0, %v2767
    %v2769 = vrot.slane %v2764, %v2768
    %v2772 = vsel %vm239, %v2759, 0
    %2774 = vmatprep.subr.mxu0 0.0
    %2775 = vmatpush1.msra.mxu0 %v2760
    %2776 = vmatprep.subr.mxu0 0.0
    %2777 = vmatpush1.msra.mxu0 %v2761
    %2778 = vmatprep.subr.mxu0 0.0
    %2779 = vmatpush1.msra.mxu0 %v2762
    %2780 = vmatprep.subr.mxu0 0.0
    %2781 = vmatpush1.msra.mxu0 %v2763
    %2782 = vmatprep.subr.mxu0 0.0
    %2783 = vmatpush1.msra.mxu0 0.0
    %2784 = vmatprep.subr.mxu0 0.0
    %2785 = vmatpush1.msra.mxu0 0.0
    %2786 = vmatprep.subr.mxu0 0.0
    %2787 = vmatpush1.msra.mxu0 0.0
    %2788 = vmatprep.subr.mxu0 0.0
    %2789 = vmatpush1.msra.mxu0 0.0
    %2790 = vmatprep.subr.mxu0 0.0
    %2791 = vmatpush1.msra.mxu0 0.0
    %2792 = vmatprep.subr.mxu0 0.0
    %2793 = vmatpush1.msra.mxu0 0.0
    %2794 = vmatprep.subr.mxu0 0.0
    %2795 = vmatpush1.msra.mxu0 0.0
    %2796 = vmatprep.subr.mxu0 0.0
    %2797 = vmatpush1.msra.mxu0 0.0
    %2798 = vmatprep.subr.mxu0 0.0
    %2799 = vmatpush1.msra.mxu0 0.0
    %2800 = vmatprep.subr.mxu0 0.0
    %2801 = vmatpush1.msra.mxu0 0.0
    %2802 = vmatprep.subr.mxu0 0.0
    %2803 = vmatpush1.msra.mxu0 0.0
    %2804 = vmatprep.subr.mxu0 0.0
    %2805 = vmatpush1.msra.mxu0 0.0
    %2806 = vmatprep.subr.mxu0 0.0
    %2807 = vmatpush1.msra.mxu0 0.0
    %2808 = vmatprep.subr.mxu0 0.0
    %2809 = vmatpush1.msra.mxu0 0.0
    %2810 = vmatprep.subr.mxu0 0.0
    %2811 = vmatpush1.msra.mxu0 0.0
    %2812 = vmatprep.subr.mxu0 0.0
    %2813 = vmatpush1.msra.mxu0 0.0
    %2814 = vmatprep.subr.mxu0 0.0
    %2815 = vmatpush1.msra.mxu0 0.0
    %2816 = vmatprep.subr.mxu0 0.0
    %2817 = vmatpush1.msra.mxu0 0.0
    %2818 = vmatprep.subr.mxu0 0.0
    %2819 = vmatpush1.msra.mxu0 0.0
    %2820 = vmatprep.subr.mxu0 0.0
    %2821 = vmatpush1.msra.mxu0 0.0
    %2822 = vmatprep.subr.mxu0 0.0
    %2823 = vmatpush1.msra.mxu0 0.0
    %2824 = vmatprep.subr.mxu0 0.0
    %2825 = vmatpush1.msra.mxu0 0.0
    %2826 = vmatprep.subr.mxu0 0.0
    %2827 = vmatpush1.msra.mxu0 0.0
    %2828 = vmatprep.subr.mxu0 0.0
    %2829 = vmatpush1.msra.mxu0 0.0
    %2830 = vmatprep.subr.mxu0 0.0
    %2831 = vmatpush1.msra.mxu0 0.0
    %2832 = vmatprep.subr.mxu0 0.0
    %2833 = vmatpush1.msra.mxu0 0.0
    %2834 = vmatprep.subr.mxu0 0.0
    %2835 = vmatpush1.msra.mxu0 0.0
    %2836 = vmatprep.subr.mxu0 0.0
    %2837 = vmatpush1.msra.mxu0 0.0
    %2838 = vmatprep.mubr.f32.mxu0 0.0
    %2839 = vmatmul.mubr.f32.gmra.mrb[0].mxu0 %v2772
    %v2840 = vpop.f32.mrb[0].mxu0
    %v2841 = vadd.f32 %v2769, %v2840
    %v2842 = vpop.f32.mrb[0].mxu0
    %2843 = vdwg.mxu0
    %v2844 = vmax.f32 %v2841, 0.0
    %v2845 = vadd.f32 %v2844, %v2759
    %v2846 = vld [vmem:[#allocation11] sm:$0xff]
    %v2847 = vld [vmem:[#allocation11 + $0x8] sm:$0xff]
    %v2848 = vld [vmem:[#allocation11 + $0x10] sm:$0xff]
    %v2849 = vld [vmem:[#allocation11 + $0x18] sm:$0xff]
    %v2850 = vld [vmem:[%s12] sm:$0x1]
    %v2852 = vlaneseq
    %v2853 = vshrl.u32 %v2852, 7
    %v2854 = vsub.s32 0, %v2853
    %v2855 = vrot.slane %v2850, %v2854
    %v2858 = vsel %vm239, %v2845, 0
    %2860 = vmatprep.subr.mxu0 0.0
    %2861 = vmatpush1.msra.mxu0 %v2846
    %2862 = vmatprep.subr.mxu0 0.0
    %2863 = vmatpush1.msra.mxu0 %v2847
    %2864 = vmatprep.subr.mxu0 0.0
    %2865 = vmatpush1.msra.mxu0 %v2848
    %2866 = vmatprep.subr.mxu0 0.0
    %2867 = vmatpush1.msra.mxu0 %v2849
    %2868 = vmatprep.subr.mxu0 0.0
    %2869 = vmatpush1.msra.mxu0 0.0
    %2870 = vmatprep.subr.mxu0 0.0
    %2871 = vmatpush1.msra.mxu0 0.0
    %2872 = vmatprep.subr.mxu0 0.0
    %2873 = vmatpush1.msra.mxu0 0.0
    %2874 = vmatprep.subr.mxu0 0.0
    %2875 = vmatpush1.msra.mxu0 0.0
    %2876 = vmatprep.subr.mxu0 0.0
    %2877 = vmatpush1.msra.mxu0 0.0
    %2878 = vmatprep.subr.mxu0 0.0
    %2879 = vmatpush1.msra.mxu0 0.0
    %2880 = vmatprep.subr.mxu0 0.0
    %2881 = vmatpush1.msra.mxu0 0.0
    %2882 = vmatprep.subr.mxu0 0.0
    %2883 = vmatpush1.msra.mxu0 0.0
    %2884 = vmatprep.subr.mxu0 0.0
    %2885 = vmatpush1.msra.mxu0 0.0
    %2886 = vmatprep.subr.mxu0 0.0
    %2887 = vmatpush1.msra.mxu0 0.0
    %2888 = vmatprep.subr.mxu0 0.0
    %2889 = vmatpush1.msra.mxu0 0.0
    %2890 = vmatprep.subr.mxu0 0.0
    %2891 = vmatpush1.msra.mxu0 0.0
    %2892 = vmatprep.subr.mxu0 0.0
    %2893 = vmatpush1.msra.mxu0 0.0
    %2894 = vmatprep.subr.mxu0 0.0
    %2895 = vmatpush1.msra.mxu0 0.0
    %2896 = vmatprep.subr.mxu0 0.0
    %2897 = vmatpush1.msra.mxu0 0.0
    %2898 = vmatprep.subr.mxu0 0.0
    %2899 = vmatpush1.msra.mxu0 0.0
    %2900 = vmatprep.subr.mxu0 0.0
    %2901 = vmatpush1.msra.mxu0 0.0
    %2902 = vmatprep.subr.mxu0 0.0
    %2903 = vmatpush1.msra.mxu0 0.0
    %2904 = vmatprep.subr.mxu0 0.0
    %2905 = vmatpush1.msra.mxu0 0.0
    %2906 = vmatprep.subr.mxu0 0.0
    %2907 = vmatpush1.msra.mxu0 0.0
    %2908 = vmatprep.subr.mxu0 0.0
    %2909 = vmatpush1.msra.mxu0 0.0
    %2910 = vmatprep.subr.mxu0 0.0
    %2911 = vmatpush1.msra.mxu0 0.0
    %2912 = vmatprep.subr.mxu0 0.0
    %2913 = vmatpush1.msra.mxu0 0.0
    %2914 = vmatprep.subr.mxu0 0.0
    %2915 = vmatpush1.msra.mxu0 0.0
    %2916 = vmatprep.subr.mxu0 0.0
    %2917 = vmatpush1.msra.mxu0 0.0
    %2918 = vmatprep.subr.mxu0 0.0
    %2919 = vmatpush1.msra.mxu0 0.0
    %2920 = vmatprep.subr.mxu0 0.0
    %2921 = vmatpush1.msra.mxu0 0.0
    %2922 = vmatprep.subr.mxu0 0.0
    %2923 = vmatpush1.msra.mxu0 0.0
    %2924 = vmatprep.mubr.f32.mxu0 0.0
    %2925 = vmatmul.mubr.f32.gmra.mrb[0].mxu0 %v2858
    %v2926 = vpop.f32.mrb[0].mxu0
    %v2927 = vadd.f32 %v2855, %v2926
    %v2928 = vpop.f32.mrb[0].mxu0
    %2929 = vdwg.mxu0
    %v2930 = vmax.f32 %v2927, 0.0
    %v2931 = vadd.f32 %v2930, %v2845
    %v2932 = vld [vmem:[%s13] sm:$0xff]
    %v2933 = vld [vmem:[%s13 + $0x8] sm:$0xff]
    %v2934 = vld [vmem:[%s13 + $0x10] sm:$0xff]
    %v2935 = vld [vmem:[%s13 + $0x18] sm:$0xff]
    %v2936 = vld [vmem:[#allocation6] sm:$0x1]
    %v2938 = vlaneseq
    %v2939 = vshrl.u32 %v2938, 7
    %v2940 = vsub.s32 0, %v2939
    %v2941 = vrot.slane %v2936, %v2940
    %v2944 = vsel %vm239, %v2931, 0
    %2946 = vmatprep.subr.mxu0 0.0
    %2947 = vmatpush1.msra.mxu0 %v2932
    %2948 = vmatprep.subr.mxu0 0.0
    %2949 = vmatpush1.msra.mxu0 %v2933
    %2950 = vmatprep.subr.mxu0 0.0
    %2951 = vmatpush1.msra.mxu0 %v2934
    %2952 = vmatprep.subr.mxu0 0.0
    %2953 = vmatpush1.msra.mxu0 %v2935
    %2954 = vmatprep.subr.mxu0 0.0
    %2955 = vmatpush1.msra.mxu0 0.0
    %2956 = vmatprep.subr.mxu0 0.0
    %2957 = vmatpush1.msra.mxu0 0.0
    %2958 = vmatprep.subr.mxu0 0.0
    %2959 = vmatpush1.msra.mxu0 0.0
    %2960 = vmatprep.subr.mxu0 0.0
    %2961 = vmatpush1.msra.mxu0 0.0
    %2962 = vmatprep.subr.mxu0 0.0
    %2963 = vmatpush1.msra.mxu0 0.0
    %2964 = vmatprep.subr.mxu0 0.0
    %2965 = vmatpush1.msra.mxu0 0.0
    %2966 = vmatprep.subr.mxu0 0.0
    %2967 = vmatpush1.msra.mxu0 0.0
    %2968 = vmatprep.subr.mxu0 0.0
    %2969 = vmatpush1.msra.mxu0 0.0
    %2970 = vmatprep.subr.mxu0 0.0
    %2971 = vmatpush1.msra.mxu0 0.0
    %2972 = vmatprep.subr.mxu0 0.0
    %2973 = vmatpush1.msra.mxu0 0.0
    %2974 = vmatprep.subr.mxu0 0.0
    %2975 = vmatpush1.msra.mxu0 0.0
    %2976 = vmatprep.subr.mxu0 0.0
    %2977 = vmatpush1.msra.mxu0 0.0
    %2978 = vmatprep.subr.mxu0 0.0
    %2979 = vmatpush1.msra.mxu0 0.0
    %2980 = vmatprep.subr.mxu0 0.0
    %2981 = vmatpush1.msra.mxu0 0.0
    %2982 = vmatprep.subr.mxu0 0.0
    %2983 = vmatpush1.msra.mxu0 0.0
    %2984 = vmatprep.subr.mxu0 0.0
    %2985 = vmatpush1.msra.mxu0 0.0
    %2986 = vmatprep.subr.mxu0 0.0
    %2987 = vmatpush1.msra.mxu0 0.0
    %2988 = vmatprep.subr.mxu0 0.0
    %2989 = vmatpush1.msra.mxu0 0.0
    %2990 = vmatprep.subr.mxu0 0.0
    %2991 = vmatpush1.msra.mxu0 0.0
    %2992 = vmatprep.subr.mxu0 0.0
    %2993 = vmatpush1.msra.mxu0 0.0
    %2994 = vmatprep.subr.mxu0 0.0
    %2995 = vmatpush1.msra.mxu0 0.0
    %2996 = vmatprep.subr.mxu0 0.0
    %2997 = vmatpush1.msra.mxu0 0.0
    %2998 = vmatprep.subr.mxu0 0.0
    %2999 = vmatpush1.msra.mxu0 0.0
    %3000 = vmatprep.subr.mxu0 0.0
    %3001 = vmatpush1.msra.mxu0 0.0
    %3002 = vmatprep.subr.mxu0 0.0
    %3003 = vmatpush1.msra.mxu0 0.0
    %3004 = vmatprep.subr.mxu0 0.0
    %3005 = vmatpush1.msra.mxu0 0.0
    %3006 = vmatprep.subr.mxu0 0.0
    %3007 = vmatpush1.msra.mxu0 0.0
    %3008 = vmatprep.subr.mxu0 0.0
    %3009 = vmatpush1.msra.mxu0 0.0
    %3010 = vmatprep.mubr.f32.mxu0 0.0
    %3011 = vmatmul.mubr.f32.gmra.mrb[0].mxu0 %v2944
    %v3012 = vpop.f32.mrb[0].mxu0
    %v3013 = vadd.f32 %v2941, %v3012
    %v3014 = vpop.f32.mrb[0].mxu0
    %3015 = vdwg.mxu0
    %vm3016 = vcmask 7168
    %3017 = vst.msk [vmem:[%s15] sm:$0xff] %vm3016, %v3013
    // Predicated region
    $region74: #{tpu_custom_call.1} parent=1 // pred_check
      _
    $region75: #{tpu_custom_call.1} parent=1 // pred_check_branch
      %3019 = sbr.rel (0) target = $region77
    $region76: #{tpu_custom_call.1} parent=1 // pred_region
      _
    $region77: #{tpu_custom_call.1} parent=1 // pred_fallthru
      _
    // Predicated region
    $region78: #{tpu_custom_call.1} parent=1 // pred_check
      _
    $region79: #{tpu_custom_call.1} parent=1 // pred_check_branch
      %3021 = sbr.rel (0) target = $region81
    $region80: #{tpu_custom_call.1} parent=1 // pred_region
      _
    $region81: #{tpu_custom_call.1} parent=1 // pred_fallthru
      _
    %3022 = vsyncpa [#allocation8], 1
    %3023 = vsyncpa [#allocation10], 1

</llo_original>
